<compile_context>
chip_gen: v7x
topology: tpu7x:2x2x1
jax: 0.10.0
libtpu: 0.0.40
codegen_flags: <defaults>
</compile_context>

<pallas_src>
import functools
import math

import jax
import jax.numpy as jnp
from jax.experimental import pallas as pl
from jax.experimental.pallas import tpu as pltpu


def _layernorm(x, gamma, beta, eps=1e-5):
    mu = jnp.mean(x, axis=-1, keepdims=True)
    var = jnp.mean((x - mu) ** 2, axis=-1, keepdims=True)
    return (x - mu) * jax.lax.rsqrt(var + eps) * gamma + beta


def _choose_blocking(seq_len: int, n_batch: int, heads: int):
    """Pick (nb, n_padded): sequences per grid step and padded batch size.

    nb is a multiple of 8 (keeps the (L, nb, E) -> (L*nb, E) flatten a layout-preserving
    retiling), chosen so packed M = L*nb targets ~256-512 (fills the 256-wide MXU on
    v6e/v7x) while the packed (H, M, M) attention tensors stay within a small VMEM
    budget, and >= 2 grid steps remain for megacore when the batch allows it.
    For long sequences (L >= 128) nb = 1: attention is per-sequence (no packed waste)
    and the dense layers already have >= 128 rows.
    """
    if seq_len >= 128:
        return 1, n_batch
    n_pad = ((n_batch + 7) // 8) * 8
    best = None
    for nb in range(8, n_pad + 1, 8):
        if n_pad % nb:
            continue
        m = seq_len * nb
        if m > 512 or 2 * heads * m * m * 4 > (8 << 20):
            break
        if n_pad >= 16 and n_pad // nb < 2:
            continue  # keep >= 2 parallel grid steps for megacore
        best = nb
    if best is None:
        return 1, n_batch
    return best, n_pad


def _packed_mask(mask, seq_len: int, nb: int):
    """Expand the per-sequence (L, L) additive mask to the packed (L*nb, L*nb) token
    axis; cross-sequence entries get a large negative bias (exactly 0 after softmax)."""
    m = mask.astype(jnp.float32)
    if nb == 1:
        return m
    mm = seq_len * nb
    pos = jnp.arange(mm) // nb   # sequence position of each packed row
    seq = jnp.arange(mm) % nb    # which sequence within the batch block
    same = seq[:, None] == seq[None, :]
    return jnp.where(same, m[pos[:, None], pos[None, :]], jnp.float32(-1e9))


def _vmem_limit_bytes(seq_len, nb, embed, hidden, heads, weight_bytes):
    m = seq_len * max(nb, 1)
    weights = (4 * embed * embed + 2 * embed * hidden) * weight_bytes  # single-buffered
    mask_b = m * m * 4
    io = 4 * seq_len * max(nb, 1) * embed * 4 * 2                      # q,k,v,out x 2 buffers
    acts = (8 * m * embed + 3 * heads * m * m + m * hidden) * 4
    small = 16 * embed * 4 + 2 * hidden * 4 + 3 * embed * 128 * 4
    est = weights + mask_b + io + acts + small
    return int(min(64 << 20, max(2 * est, 16 << 20)))


def transformer_block_kernel(
    q_ref, k_ref, v_ref, mask_ref,
    wqkv_ref, bqkv_ref, wo_ref, bo_ref,
    g1_ref, be1_ref, w1_ref, b1_ref, w2_ref, b2_ref, g2_ref, be2_ref,
    out_ref,
    *, heads: int, matmul_dtype,
):
    f32 = jnp.float32
    E = q_ref.shape[-1]
    M = math.prod(q_ref.shape[:-1])
    dh = E // heads
    scale = 1.0 / math.sqrt(dh)

    # Hoisted parameter loads (weights already arrive in matmul_dtype; the rest is f32).
    bo = bo_ref[...]
    g1, be1 = g1_ref[...], be1_ref[...]
    b1, b2 = b1_ref[...], b2_ref[...]
    g2, be2 = g2_ref[...], be2_ref[...]

    # Packed token matrices (M, E); layout-preserving since nb is 1 or a multiple of 8.
    q2 = q_ref[...].reshape(M, E)
    k2 = k_ref[...].reshape(M, E)
    v2 = v_ref[...].reshape(M, E)

    # --- Q/K/V projections straight into head-major transposed layout -------------
    #   projT[o, m] = sum_e w_t[o, e] * x[m, e]   (w_t stored PyTorch-style (E_out, E_in))
    def proj_t(x2, w_t, b_t):
        y = jax.lax.dot_general(
            w_t, x2.astype(matmul_dtype),
            dimension_numbers=(((1,), (1,)), ((), ())),
            preferred_element_type=f32)
        return y + b_t                                                  # (E, M) f32

    qT = proj_t(q2, wqkv_ref[0], bqkv_ref[0]) * scale
    kT = proj_t(k2, wqkv_ref[1], bqkv_ref[1])
    vT = proj_t(v2, wqkv_ref[2], bqkv_ref[2])
    qT3 = qT.reshape(heads, dh, M).astype(matmul_dtype)                 # (H, dh, M)
    kT3 = kT.reshape(heads, dh, M).astype(matmul_dtype)
    vT3 = vT.reshape(heads, dh, M).astype(matmul_dtype)

    # --- multi-head attention ------------------------------------------------------
    # Scores for all heads in one batched dot_general: contract dh, batch H.
    s = jax.lax.dot_general(
        qT3, kT3, dimension_numbers=(((1,), (1,)), ((0,), (0,))),
        preferred_element_type=f32)                                     # (H, M, M)
    s = s + mask_ref[...][None, :, :]
    s = s - jnp.max(s, axis=-1, keepdims=True)
    p = jnp.exp(s)
    p = p * pl.reciprocal(jnp.sum(p, axis=-1, keepdims=True), approx=True)

    # P @ V for all heads (NT batched); heads re-merge via a leading-dim reshape.
    o_t = jax.lax.dot_general(
        vT3, p.astype(matmul_dtype),
        dimension_numbers=(((2,), (2,)), ((0,), (0,))),
        preferred_element_type=f32)                                     # (H, dh, M)
    attn_t = o_t.reshape(E, M)

    # Output projection with the transpose folded into the contraction dims:
    #   out[m, o] = sum_e attn_t[e, m] * wo[e, o]
    attn = jax.lax.dot_general(
        attn_t.astype(matmul_dtype), wo_ref[...],
        dimension_numbers=(((0,), (0,)), ((), ())),
        preferred_element_type=f32) + bo                                # (M, E)

    # --- residual + LayerNorm 1 (dropout = identity, eval) --------------------------
    x = _layernorm(attn + q2.astype(f32), g1, be1)

    # --- feed-forward: Linear -> ReLU -> Linear -------------------------------------
    h1 = jax.lax.dot_general(
        x.astype(matmul_dtype), w1_ref[...],
        dimension_numbers=(((1,), (0,)), ((), ())),
        preferred_element_type=f32) + b1
    h1 = jnp.maximum(h1, 0.0)
    ff = jax.lax.dot_general(
        h1.astype(matmul_dtype), w2_ref[...],
        dimension_numbers=(((1,), (0,)), ((), ())),
        preferred_element_type=f32) + b2

    # --- residual + LayerNorm 2 ------------------------------------------------------
    out = _layernorm(ff + x, g2, be2)
    out_ref[...] = out.reshape(out_ref.shape).astype(out_ref.dtype)


def transformer_block(query, key, value, mask, params, *, heads: int,
                      matmul_dtype=jnp.bfloat16):
    """query/key/value: (L, N, E) (PyTorch seq-first, batch_first=False).

    mask: (L, L) additive float attn_mask shared across batch and heads.
    matmul_dtype: dtype of MXU operands only (bf16 is MXU-native on v5e/v6e/v7x and is
    the default); all elementwise math (LayerNorm, softmax, residuals) stays float32.
    Pass jnp.float32 for exact (multi-pass MXU) semantics.
    """
    L, N, E = query.shape
    hidden = params["w1"].shape[-1]
    nb, n_pad = _choose_blocking(L, N, heads)
    m = L * max(nb, 1)

    if nb > 1 and n_pad != N:
        pad = ((0, 0), (0, n_pad - N), (0, 0))
        query = jnp.pad(query, pad)
        key = jnp.pad(key, pad)
        value = jnp.pad(value, pad)

    packed_mask = _packed_mask(mask, L, nb)

    # MXU weights pre-cast once in the wrapper (no per-step in-kernel weight cast).
    wqkv = params["wqkv"].astype(matmul_dtype)
    wo = params["wo"].astype(matmul_dtype)
    w1 = params["w1"].astype(matmul_dtype)
    w2 = params["w2"].astype(matmul_dtype)

    blk = (L, nb, E) if nb > 1 else (L, None, E)
    seq_idx = lambda b: (0, b, 0)

    def const_spec(shape):
        # Constant-index operand: fetched once, single-buffered (no double buffering).
        idx = lambda b: (0,) * len(shape)
        try:
            return pl.BlockSpec(shape, idx, pipeline_mode=pl.Buffered(1))
        except (TypeError, ValueError):
            # TODO(synk): pipeline_mode unavailable in this JAX build -> default buffering.
            return pl.BlockSpec(shape, idx)

    in_specs = [
        pl.BlockSpec(blk, seq_idx), pl.BlockSpec(blk, seq_idx), pl.BlockSpec(blk, seq_idx),
        const_spec((m, m)),                                # packed additive mask
        const_spec((3, E, E)), const_spec((3, E, 1)),      # qkv weights (out,in) / biases
        const_spec((E, E)), const_spec((1, E)),            # wo (in,out), bo
        const_spec((1, E)), const_spec((1, E)),            # ln1 gamma, beta
        const_spec((E, hidden)), const_spec((1, hidden)),  # w1, b1
        const_spec((hidden, E)), const_spec((1, E)),       # w2, b2
        const_spec((1, E)), const_spec((1, E)),            # ln2 gamma, beta
    ]

    w_bytes = jnp.dtype(matmul_dtype).itemsize
    cost = pl.CostEstimate(
        flops=n_pad * L * (8 * E * E + 4 * E * hidden) + 4 * n_pad * max(nb, 1) * L * L * E,
        transcendentals=n_pad * max(nb, 1) * heads * L * L,
        bytes_accessed=(4 * 4 * n_pad * L * E
                        + w_bytes * (4 * E * E + 2 * E * hidden)
                        + 4 * m * m),
    )

    kernel = functools.partial(transformer_block_kernel, heads=heads,
                               matmul_dtype=matmul_dtype)

    out = pl.pallas_call(
        kernel,
        out_shape=jax.ShapeDtypeStruct((L, n_pad, E), query.dtype),
        grid=(n_pad // max(nb, 1),),
        in_specs=in_specs,
        out_specs=pl.BlockSpec(blk, seq_idx),
        compiler_params=pltpu.CompilerParams(
            dimension_semantics=("parallel",),
            vmem_limit_bytes=_vmem_limit_bytes(L, nb, E, hidden, heads, w_bytes),
        ),
        cost_estimate=cost,
    )(
        query, key, value, packed_mask,
        wqkv, params["bqkv"], wo, params["bo"],
        params["g1"], params["be1"],
        w1, params["b1"], w2, params["b2"],
        params["g2"], params["be2"],
    )
    return out if n_pad == N else out[:, :N, :]


def transformer_block_ref(query, key, value, mask, params, *, heads: int):
    """Pure-JAX reference with identical math (for verification)."""
    L, N, E = query.shape
    dh = E // heads
    scale = 1.0 / math.sqrt(dh)
    wq_t, wk_t, wv_t = params["wqkv"][0], params["wqkv"][1], params["wqkv"][2]
    bq = params["bqkv"][0].reshape(1, E)
    bk = params["bqkv"][1].reshape(1, E)
    bv = params["bqkv"][2].reshape(1, E)

    def one_seq(q, k, v):                      # each (L, E)
        qp = (q @ wq_t.T + bq) * scale
        kp = k @ wk_t.T + bk
        vp = v @ wv_t.T + bv
        outs = []
        for h in range(heads):
            sl = slice(h * dh, (h + 1) * dh)
            s = qp[:, sl] @ kp[:, sl].T + mask
            p = jax.nn.softmax(s, axis=-1)
            outs.append(p @ vp[:, sl])
        attn = jnp.concatenate(outs, axis=-1) @ params["wo"] + params["bo"]
        x = _layernorm(attn + q, params["g1"], params["be1"])
        h1 = jnp.maximum(x @ params["w1"] + params["b1"], 0.0)
        ff = h1 @ params["w2"] + params["b2"]
        return _layernorm(ff + x, params["g2"], params["be2"])

    return jax.vmap(one_seq, in_axes=(1, 1, 1), out_axes=1)(query, key, value)


def init_params(key, embed_size, forward_expansion):
    E = embed_size
    hidden = forward_expansion * E
    ks = jax.random.split(key, 10)
    scale = 0.05

    def w(k, shape, s=scale):
        return (s * jax.random.normal(k, shape)).astype(jnp.float32)

    return {
        # Attention in-projection in PyTorch layout (3, E_out, E_in): y = x @ W^T + b.
        "wqkv": w(ks[0], (3, E, E)),
        "bqkv": w(ks[1], (3, E, 1)),
        # Output projection / FFN stored as (in, out): y = x @ W + b.
        "wo": w(ks[2], (E, E)), "bo": w(ks[3], (1, E)),
        "g1": jnp.ones((1, E), jnp.float32), "be1": w(ks[4], (1, E)),
        "w1": w(ks[5], (E, hidden)), "b1": w(ks[6], (1, hidden)),
        "w2": w(ks[7], (hidden, E)), "b2": w(ks[8], (1, E)),
        "g2": jnp.ones((1, E), jnp.float32), "be2": w(ks[9], (1, E)),
    }


if __name__ == "__main__":
    embed_size, heads, forward_expansion = 32, 4, 4
    L, N = 8, 16  # seq len, batch (multiple of 8 -> aligned blocks, 2 parallel grid steps)

    root = jax.random.PRNGKey(0)
    kq, kk, kv, kp = jax.random.split(root, 4)
    query = jax.random.normal(kq, (L, N, embed_size), dtype=jnp.float32)
    key_t = jax.random.normal(kk, (L, N, embed_size), dtype=jnp.float32)
    value = jax.random.normal(kv, (L, N, embed_size), dtype=jnp.float32)

    # additive float attn_mask (causal), as accepted by nn.MultiheadAttention
    causal = jnp.tril(jnp.ones((L, L), dtype=jnp.float32))
    mask = jnp.where(causal > 0, 0.0, -1e9).astype(jnp.float32)

    params = init_params(kp, embed_size, forward_expansion)

    ref = transformer_block_ref(query, key_t, value, mask, params, heads=heads)

    # f32 MXU operands: matches the PyTorch module numerics (up to approx-reciprocal).
    out = transformer_block(query, key_t, value, mask, params, heads=heads,
                            matmul_dtype=jnp.float32)
    out = jax.block_until_ready(out)
    assert out.shape == (L, N, embed_size)
    assert bool(jnp.allclose(out, ref, atol=5e-3, rtol=5e-3)), "f32 kernel mismatch vs reference"

    # Default bf16 MXU operands (MXU-native on v5e/v6e/v7x); elementwise math stays f32.
    out_bf16 = transformer_block(query, key_t, value, mask, params, heads=heads)
    out_bf16 = jax.block_until_ready(out_bf16)
    assert bool(jnp.allclose(out_bf16, ref, atol=1e-1, rtol=1e-1)), "bf16 kernel mismatch vs reference"

    print("KERNEL_OK")
</pallas_src>

<mosaic_0001>
module attributes {stable_mosaic.version = 11 : i64} {
  func.func @transformer_block_kernel(%arg0: i32, %arg1: memref<8x8x32xf32, #tpu.memory_space<vmem>>, %arg2: memref<8x8x32xf32, #tpu.memory_space<vmem>>, %arg3: memref<8x8x32xf32, #tpu.memory_space<vmem>>, %arg4: memref<64x64xf32, #tpu.memory_space<vmem>>, %arg5: memref<3x32x32xf32, #tpu.memory_space<vmem>>, %arg6: memref<3x32x1xf32, #tpu.memory_space<vmem>>, %arg7: memref<32x32xf32, #tpu.memory_space<vmem>>, %arg8: memref<1x32xf32, #tpu.memory_space<vmem>>, %arg9: memref<1x32xf32, #tpu.memory_space<vmem>>, %arg10: memref<1x32xf32, #tpu.memory_space<vmem>>, %arg11: memref<32x128xf32, #tpu.memory_space<vmem>>, %arg12: memref<1x128xf32, #tpu.memory_space<vmem>>, %arg13: memref<128x32xf32, #tpu.memory_space<vmem>>, %arg14: memref<1x32xf32, #tpu.memory_space<vmem>>, %arg15: memref<1x32xf32, #tpu.memory_space<vmem>>, %arg16: memref<1x32xf32, #tpu.memory_space<vmem>>, %arg17: memref<8x8x32xf32, #tpu.memory_space<vmem>>) attributes {dimension_semantics = [#tpu.dimension_semantics<parallel>], iteration_bounds = array<i64: 2>, scalar_prefetch = 0 : i64, scratch_operands = 0 : i64, tpu.core_type = #tpu.core_type<tc>, window_params = [{transform_indices = @transform_0, window_bounds = array<i64: 8, 8, 32>}, {transform_indices = @transform_1, window_bounds = array<i64: 8, 8, 32>}, {transform_indices = @transform_2, window_bounds = array<i64: 8, 8, 32>}, {pipeline_mode = #tpu.pipeline_mode<synchronous>, transform_indices = @transform_3, window_bounds = array<i64: 64, 64>}, {pipeline_mode = #tpu.pipeline_mode<synchronous>, transform_indices = @transform_4, window_bounds = array<i64: 3, 32, 32>}, {pipeline_mode = #tpu.pipeline_mode<synchronous>, transform_indices = @transform_5, window_bounds = array<i64: 3, 32, 1>}, {pipeline_mode = #tpu.pipeline_mode<synchronous>, transform_indices = @transform_6, window_bounds = array<i64: 32, 32>}, {pipeline_mode = #tpu.pipeline_mode<synchronous>, transform_indices = @transform_7, window_bounds = array<i64: 1, 32>}, {pipeline_mode = #tpu.pipeline_mode<synchronous>, transform_indices = @transform_8, window_bounds = array<i64: 1, 32>}, {pipeline_mode = #tpu.pipeline_mode<synchronous>, transform_indices = @transform_9, window_bounds = array<i64: 1, 32>}, {pipeline_mode = #tpu.pipeline_mode<synchronous>, transform_indices = @transform_10, window_bounds = array<i64: 32, 128>}, {pipeline_mode = #tpu.pipeline_mode<synchronous>, transform_indices = @transform_11, window_bounds = array<i64: 1, 128>}, {pipeline_mode = #tpu.pipeline_mode<synchronous>, transform_indices = @transform_12, window_bounds = array<i64: 128, 32>}, {pipeline_mode = #tpu.pipeline_mode<synchronous>, transform_indices = @transform_13, window_bounds = array<i64: 1, 32>}, {pipeline_mode = #tpu.pipeline_mode<synchronous>, transform_indices = @transform_14, window_bounds = array<i64: 1, 32>}, {pipeline_mode = #tpu.pipeline_mode<synchronous>, transform_indices = @transform_15, window_bounds = array<i64: 1, 32>}, {transform_indices = @transform_16, window_bounds = array<i64: 8, 8, 32>}]} {
    %c0 = arith.constant 0 : index
    %c0_0 = arith.constant 0 : index
    %0 = vector.load %arg8[%c0, %c0_0] : memref<1x32xf32, #tpu.memory_space<vmem>>, vector<1x32xf32>
    %c0_1 = arith.constant 0 : index
    %c0_2 = arith.constant 0 : index
    %1 = vector.load %arg9[%c0_1, %c0_2] : memref<1x32xf32, #tpu.memory_space<vmem>>, vector<1x32xf32>
    %c0_3 = arith.constant 0 : index
    %c0_4 = arith.constant 0 : index
    %2 = vector.load %arg10[%c0_3, %c0_4] : memref<1x32xf32, #tpu.memory_space<vmem>>, vector<1x32xf32>
    %c0_5 = arith.constant 0 : index
    %c0_6 = arith.constant 0 : index
    %3 = vector.load %arg12[%c0_5, %c0_6] : memref<1x128xf32, #tpu.memory_space<vmem>>, vector<1x128xf32>
    %c0_7 = arith.constant 0 : index
    %c0_8 = arith.constant 0 : index
    %4 = vector.load %arg14[%c0_7, %c0_8] : memref<1x32xf32, #tpu.memory_space<vmem>>, vector<1x32xf32>
    %c0_9 = arith.constant 0 : index
    %c0_10 = arith.constant 0 : index
    %5 = vector.load %arg15[%c0_9, %c0_10] : memref<1x32xf32, #tpu.memory_space<vmem>>, vector<1x32xf32>
    %c0_11 = arith.constant 0 : index
    %c0_12 = arith.constant 0 : index
    %6 = vector.load %arg16[%c0_11, %c0_12] : memref<1x32xf32, #tpu.memory_space<vmem>>, vector<1x32xf32>
    %c0_13 = arith.constant 0 : index
    %c0_14 = arith.constant 0 : index
    %c0_15 = arith.constant 0 : index
    %7 = vector.load %arg1[%c0_13, %c0_14, %c0_15] : memref<8x8x32xf32, #tpu.memory_space<vmem>>, vector<8x8x32xf32>
    %8 = vector.shape_cast %7 : vector<8x8x32xf32> to vector<64x32xf32>
    %c0_16 = arith.constant 0 : index
    %c0_17 = arith.constant 0 : index
    %c0_18 = arith.constant 0 : index
    %9 = vector.load %arg2[%c0_16, %c0_17, %c0_18] : memref<8x8x32xf32, #tpu.memory_space<vmem>>, vector<8x8x32xf32>
    %10 = vector.shape_cast %9 : vector<8x8x32xf32> to vector<64x32xf32>
    %c0_19 = arith.constant 0 : index
    %c0_20 = arith.constant 0 : index
    %c0_21 = arith.constant 0 : index
    %11 = vector.load %arg3[%c0_19, %c0_20, %c0_21] : memref<8x8x32xf32, #tpu.memory_space<vmem>>, vector<8x8x32xf32>
    %12 = vector.shape_cast %11 : vector<8x8x32xf32> to vector<64x32xf32>
    %c0_22 = arith.constant 0 : index
    %c0_23 = arith.constant 0 : index
    %c0_24 = arith.constant 0 : index
    %13 = vector.load %arg5[%c0_22, %c0_23, %c0_24] : memref<3x32x32xf32, #tpu.memory_space<vmem>>, vector<1x32x32xf32>
    %14 = vector.shape_cast %13 : vector<1x32x32xf32> to vector<32x32xf32>
    %c0_25 = arith.constant 0 : index
    %c0_26 = arith.constant 0 : index
    %c0_27 = arith.constant 0 : index
    %15 = vector.load %arg6[%c0_25, %c0_26, %c0_27] : memref<3x32x1xf32, #tpu.memory_space<vmem>>, vector<1x32x1xf32>
    %16 = vector.shape_cast %15 : vector<1x32x1xf32> to vector<32x1xf32>
    %cst = arith.constant dense<0.000000e+00> : vector<32x64xf32>
    %17 = tpu.matmul %14, %8, %cst {dimension_numbers = #tpu.dot_dimension_numbers<[1], [1], [0], [0], [0, 0, 1, 0], [], []>} : vector<32x32xf32>, vector<64x32xf32>, vector<32x64xf32> -> vector<32x64xf32>
    %18 = vector.broadcast %16 : vector<32x1xf32> to vector<32x64xf32>
    %19 = arith.addf %17, %18 : vector<32x64xf32>
    %cst_28 = arith.constant 0.353553385 : f32
    %20 = vector.broadcast %cst_28 : f32 to vector<32x64xf32>
    %21 = arith.mulf %19, %20 : vector<32x64xf32>
    %c1 = arith.constant 1 : index
    %c0_29 = arith.constant 0 : index
    %c0_30 = arith.constant 0 : index
    %22 = vector.load %arg5[%c1, %c0_29, %c0_30] : memref<3x32x32xf32, #tpu.memory_space<vmem>>, vector<1x32x32xf32>
    %23 = vector.shape_cast %22 : vector<1x32x32xf32> to vector<32x32xf32>
    %c1_31 = arith.constant 1 : index
    %c0_32 = arith.constant 0 : index
    %c0_33 = arith.constant 0 : index
    %24 = vector.load %arg6[%c1_31, %c0_32, %c0_33] : memref<3x32x1xf32, #tpu.memory_space<vmem>>, vector<1x32x1xf32>
    %25 = vector.shape_cast %24 : vector<1x32x1xf32> to vector<32x1xf32>
    %cst_34 = arith.constant dense<0.000000e+00> : vector<32x64xf32>
    %26 = tpu.matmul %23, %10, %cst_34 {dimension_numbers = #tpu.dot_dimension_numbers<[1], [1], [0], [0], [0, 0, 1, 0], [], []>} : vector<32x32xf32>, vector<64x32xf32>, vector<32x64xf32> -> vector<32x64xf32>
    %27 = vector.broadcast %25 : vector<32x1xf32> to vector<32x64xf32>
    %28 = arith.addf %26, %27 : vector<32x64xf32>
    %c2 = arith.constant 2 : index
    %c0_35 = arith.constant 0 : index
    %c0_36 = arith.constant 0 : index
    %29 = vector.load %arg5[%c2, %c0_35, %c0_36] : memref<3x32x32xf32, #tpu.memory_space<vmem>>, vector<1x32x32xf32>
    %30 = vector.shape_cast %29 : vector<1x32x32xf32> to vector<32x32xf32>
    %c2_37 = arith.constant 2 : index
    %c0_38 = arith.constant 0 : index
    %c0_39 = arith.constant 0 : index
    %31 = vector.load %arg6[%c2_37, %c0_38, %c0_39] : memref<3x32x1xf32, #tpu.memory_space<vmem>>, vector<1x32x1xf32>
    %32 = vector.shape_cast %31 : vector<1x32x1xf32> to vector<32x1xf32>
    %cst_40 = arith.constant dense<0.000000e+00> : vector<32x64xf32>
    %33 = tpu.matmul %30, %12, %cst_40 {dimension_numbers = #tpu.dot_dimension_numbers<[1], [1], [0], [0], [0, 0, 1, 0], [], []>} : vector<32x32xf32>, vector<64x32xf32>, vector<32x64xf32> -> vector<32x64xf32>
    %34 = vector.broadcast %32 : vector<32x1xf32> to vector<32x64xf32>
    %35 = arith.addf %33, %34 : vector<32x64xf32>
    %36 = vector.shape_cast %21 : vector<32x64xf32> to vector<4x8x64xf32>
    %37 = vector.shape_cast %28 : vector<32x64xf32> to vector<4x8x64xf32>
    %38 = vector.shape_cast %35 : vector<32x64xf32> to vector<4x8x64xf32>
    %cst_41 = arith.constant dense<0.000000e+00> : vector<4x64x64xf32>
    %39 = tpu.matmul %36, %37, %cst_41 {dimension_numbers = #tpu.dot_dimension_numbers<[1], [1], [2], [2], [0, 0, 0, 2, 1, 2], [0], [0]>} : vector<4x8x64xf32>, vector<4x8x64xf32>, vector<4x64x64xf32> -> vector<4x64x64xf32>
    %c0_42 = arith.constant 0 : index
    %c0_43 = arith.constant 0 : index
    %40 = vector.load %arg4[%c0_42, %c0_43] : memref<64x64xf32, #tpu.memory_space<vmem>>, vector<64x64xf32>
    %41 = vector.shape_cast %40 : vector<64x64xf32> to vector<1x64x64xf32>
    %42 = vector.broadcast %41 : vector<1x64x64xf32> to vector<4x64x64xf32>
    %43 = arith.addf %39, %42 : vector<4x64x64xf32>
    %cst_44 = arith.constant dense<0xFF800000> : vector<4x64xf32>
    %44 = vector.multi_reduction <maximumf>, %43, %cst_44 [2] : vector<4x64x64xf32> to vector<4x64xf32>
    %45 = vector.shape_cast %44 : vector<4x64xf32> to vector<4x64x1xf32>
    %46 = vector.broadcast %45 : vector<4x64x1xf32> to vector<4x64x64xf32>
    %47 = arith.subf %43, %46 : vector<4x64x64xf32>
    %48 = math.exp %47 : vector<4x64x64xf32>
    %cst_45 = arith.constant dense<0.000000e+00> : vector<4x64xf32>
    %49 = vector.multi_reduction <add>, %48, %cst_45 [2] : vector<4x64x64xf32> to vector<4x64xf32>
    %50 = vector.shape_cast %49 : vector<4x64xf32> to vector<4x64x1xf32>
    %51 = tpu.reciprocal %50 {approx = true} : vector<4x64x1xf32> -> vector<4x64x1xf32>
    %52 = vector.broadcast %51 : vector<4x64x1xf32> to vector<4x64x64xf32>
    %53 = arith.mulf %48, %52 : vector<4x64x64xf32>
    %cst_46 = arith.constant dense<0.000000e+00> : vector<4x8x64xf32>
    %54 = tpu.matmul %38, %53, %cst_46 {dimension_numbers = #tpu.dot_dimension_numbers<[2], [2], [1], [1], [0, 0, 0, 1, 1, 1], [0], [0]>} : vector<4x8x64xf32>, vector<4x64x64xf32>, vector<4x8x64xf32> -> vector<4x8x64xf32>
    %55 = vector.shape_cast %54 : vector<4x8x64xf32> to vector<32x64xf32>
    %c0_47 = arith.constant 0 : index
    %c0_48 = arith.constant 0 : index
    %56 = vector.load %arg7[%c0_47, %c0_48] : memref<32x32xf32, #tpu.memory_space<vmem>>, vector<32x32xf32>
    %cst_49 = arith.constant dense<0.000000e+00> : vector<64x32xf32>
    %57 = tpu.matmul %55, %56, %cst_49 {dimension_numbers = #tpu.dot_dimension_numbers<[0], [0], [1], [1], [0, 1, 1, 1], [], []>} : vector<32x64xf32>, vector<32x32xf32>, vector<64x32xf32> -> vector<64x32xf32>
    %58 = vector.broadcast %0 : vector<1x32xf32> to vector<64x32xf32>
    %59 = arith.addf %57, %58 : vector<64x32xf32>
    %60 = arith.addf %59, %8 : vector<64x32xf32>
    %cst_50 = arith.constant dense<0.000000e+00> : vector<64xf32>
    %61 = vector.multi_reduction <add>, %60, %cst_50 [1] : vector<64x32xf32> to vector<64xf32>
    %62 = vector.shape_cast %61 : vector<64xf32> to vector<64x1xf32>
    %cst_51 = arith.constant 3.200000e+01 : f32
    %63 = vector.broadcast %cst_51 : f32 to vector<64x1xf32>
    %64 = arith.divf %62, %63 : vector<64x1xf32>
    %65 = vector.broadcast %64 : vector<64x1xf32> to vector<64x32xf32>
    %66 = arith.subf %60, %65 : vector<64x32xf32>
    %67 = arith.mulf %66, %66 : vector<64x32xf32>
    %cst_52 = arith.constant dense<0.000000e+00> : vector<64xf32>
    %68 = vector.multi_reduction <add>, %67, %cst_52 [1] : vector<64x32xf32> to vector<64xf32>
    %69 = vector.shape_cast %68 : vector<64xf32> to vector<64x1xf32>
    %cst_53 = arith.constant 3.200000e+01 : f32
    %70 = vector.broadcast %cst_53 : f32 to vector<64x1xf32>
    %71 = arith.divf %69, %70 : vector<64x1xf32>
    %72 = vector.broadcast %64 : vector<64x1xf32> to vector<64x32xf32>
    %73 = arith.subf %60, %72 : vector<64x32xf32>
    %cst_54 = arith.constant 9.99999974E-6 : f32
    %74 = vector.broadcast %cst_54 : f32 to vector<64x1xf32>
    %75 = arith.addf %71, %74 : vector<64x1xf32>
    %76 = math.rsqrt %75 : vector<64x1xf32>
    %77 = vector.broadcast %76 : vector<64x1xf32> to vector<64x32xf32>
    %78 = arith.mulf %73, %77 : vector<64x32xf32>
    %79 = vector.broadcast %1 : vector<1x32xf32> to vector<64x32xf32>
    %80 = arith.mulf %78, %79 : vector<64x32xf32>
    %81 = vector.broadcast %2 : vector<1x32xf32> to vector<64x32xf32>
    %82 = arith.addf %80, %81 : vector<64x32xf32>
    %c0_55 = arith.constant 0 : index
    %c0_56 = arith.constant 0 : index
    %83 = vector.load %arg11[%c0_55, %c0_56] : memref<32x128xf32, #tpu.memory_space<vmem>>, vector<32x128xf32>
    %cst_57 = arith.constant dense<0.000000e+00> : vector<64x128xf32>
    %84 = tpu.matmul %82, %83, %cst_57 {dimension_numbers = #tpu.dot_dimension_numbers<[1], [0], [0], [1], [0, 0, 1, 1], [], []>} : vector<64x32xf32>, vector<32x128xf32>, vector<64x128xf32> -> vector<64x128xf32>
    %85 = vector.broadcast %3 : vector<1x128xf32> to vector<64x128xf32>
    %86 = arith.addf %84, %85 : vector<64x128xf32>
    %cst_58 = arith.constant 0.000000e+00 : f32
    %87 = vector.broadcast %cst_58 : f32 to vector<64x128xf32>
    %88 = arith.maximumf %86, %87 : vector<64x128xf32>
    %c0_59 = arith.constant 0 : index
    %c0_60 = arith.constant 0 : index
    %89 = vector.load %arg13[%c0_59, %c0_60] : memref<128x32xf32, #tpu.memory_space<vmem>>, vector<128x32xf32>
    %cst_61 = arith.constant dense<0.000000e+00> : vector<64x32xf32>
    %90 = tpu.matmul %88, %89, %cst_61 {dimension_numbers = #tpu.dot_dimension_numbers<[1], [0], [0], [1], [0, 0, 1, 1], [], []>} : vector<64x128xf32>, vector<128x32xf32>, vector<64x32xf32> -> vector<64x32xf32>
    %91 = vector.broadcast %4 : vector<1x32xf32> to vector<64x32xf32>
    %92 = arith.addf %90, %91 : vector<64x32xf32>
    %93 = arith.addf %92, %82 : vector<64x32xf32>
    %cst_62 = arith.constant dense<0.000000e+00> : vector<64xf32>
    %94 = vector.multi_reduction <add>, %93, %cst_62 [1] : vector<64x32xf32> to vector<64xf32>
    %95 = vector.shape_cast %94 : vector<64xf32> to vector<64x1xf32>
    %cst_63 = arith.constant 3.200000e+01 : f32
    %96 = vector.broadcast %cst_63 : f32 to vector<64x1xf32>
    %97 = arith.divf %95, %96 : vector<64x1xf32>
    %98 = vector.broadcast %97 : vector<64x1xf32> to vector<64x32xf32>
    %99 = arith.subf %93, %98 : vector<64x32xf32>
    %100 = arith.mulf %99, %99 : vector<64x32xf32>
    %cst_64 = arith.constant dense<0.000000e+00> : vector<64xf32>
    %101 = vector.multi_reduction <add>, %100, %cst_64 [1] : vector<64x32xf32> to vector<64xf32>
    %102 = vector.shape_cast %101 : vector<64xf32> to vector<64x1xf32>
    %cst_65 = arith.constant 3.200000e+01 : f32
    %103 = vector.broadcast %cst_65 : f32 to vector<64x1xf32>
    %104 = arith.divf %102, %103 : vector<64x1xf32>
    %105 = vector.broadcast %97 : vector<64x1xf32> to vector<64x32xf32>
    %106 = arith.subf %93, %105 : vector<64x32xf32>
    %cst_66 = arith.constant 9.99999974E-6 : f32
    %107 = vector.broadcast %cst_66 : f32 to vector<64x1xf32>
    %108 = arith.addf %104, %107 : vector<64x1xf32>
    %109 = math.rsqrt %108 : vector<64x1xf32>
    %110 = vector.broadcast %109 : vector<64x1xf32> to vector<64x32xf32>
    %111 = arith.mulf %106, %110 : vector<64x32xf32>
    %112 = vector.broadcast %5 : vector<1x32xf32> to vector<64x32xf32>
    %113 = arith.mulf %111, %112 : vector<64x32xf32>
    %114 = vector.broadcast %6 : vector<1x32xf32> to vector<64x32xf32>
    %115 = arith.addf %113, %114 : vector<64x32xf32>
    %116 = vector.shape_cast %115 : vector<64x32xf32> to vector<8x8x32xf32>
    %c0_67 = arith.constant 0 : index
    %c0_68 = arith.constant 0 : index
    %c0_69 = arith.constant 0 : index
    %117 = vector.load %arg17[%c0_67, %c0_68, %c0_69] : memref<8x8x32xf32, #tpu.memory_space<vmem>>, vector<8x8x32xf32>
    tpu.vector_store %arg17[%c0_67, %c0_68, %c0_69], %116 {strides = array<i32>} : memref<8x8x32xf32, #tpu.memory_space<vmem>>, vector<8x8x32xf32>,
    return
  }
  func.func @transform_0(%arg0: i32) -> (i32, i32, i32) {
    %c0_i32 = arith.constant 0 : i32
    %c0_i32_0 = arith.constant 0 : i32
    %c0_i32_1 = arith.constant 0 : i32
    return %c0_i32, %arg0, %c0_i32_0 : i32, i32, i32
  }
  func.func @transform_1(%arg0: i32) -> (i32, i32, i32) {
    %c0_i32 = arith.constant 0 : i32
    %c0_i32_0 = arith.constant 0 : i32
    %c0_i32_1 = arith.constant 0 : i32
    return %c0_i32, %arg0, %c0_i32_0 : i32, i32, i32
  }
  func.func @transform_2(%arg0: i32) -> (i32, i32, i32) {
    %c0_i32 = arith.constant 0 : i32
    %c0_i32_0 = arith.constant 0 : i32
    %c0_i32_1 = arith.constant 0 : i32
    return %c0_i32, %arg0, %c0_i32_0 : i32, i32, i32
  }
  func.func @transform_3(%arg0: i32) -> (i32, i32) {
    %c0_i32 = arith.constant 0 : i32
    %c0_i32_0 = arith.constant 0 : i32
    %c0_i32_1 = arith.constant 0 : i32
    return %c0_i32, %c0_i32_0 : i32, i32
  }
  func.func @transform_4(%arg0: i32) -> (i32, i32, i32) {
    %c0_i32 = arith.constant 0 : i32
    %c0_i32_0 = arith.constant 0 : i32
    %c0_i32_1 = arith.constant 0 : i32
    %c0_i32_2 = arith.constant 0 : i32
    return %c0_i32, %c0_i32_0, %c0_i32_1 : i32, i32, i32
  }
  func.func @transform_5(%arg0: i32) -> (i32, i32, i32) {
    %c0_i32 = arith.constant 0 : i32
    %c0_i32_0 = arith.constant 0 : i32
    %c0_i32_1 = arith.constant 0 : i32
    %c0_i32_2 = arith.constant 0 : i32
    return %c0_i32, %c0_i32_0, %c0_i32_1 : i32, i32, i32
  }
  func.func @transform_6(%arg0: i32) -> (i32, i32) {
    %c0_i32 = arith.constant 0 : i32
    %c0_i32_0 = arith.constant 0 : i32
    %c0_i32_1 = arith.constant 0 : i32
    return %c0_i32, %c0_i32_0 : i32, i32
  }
  func.func @transform_7(%arg0: i32) -> (i32, i32) {
    %c0_i32 = arith.constant 0 : i32
    %c0_i32_0 = arith.constant 0 : i32
    %c0_i32_1 = arith.constant 0 : i32
    return %c0_i32, %c0_i32_0 : i32, i32
  }
  func.func @transform_8(%arg0: i32) -> (i32, i32) {
    %c0_i32 = arith.constant 0 : i32
    %c0_i32_0 = arith.constant 0 : i32
    %c0_i32_1 = arith.constant 0 : i32
    return %c0_i32, %c0_i32_0 : i32, i32
  }
  func.func @transform_9(%arg0: i32) -> (i32, i32) {
    %c0_i32 = arith.constant 0 : i32
    %c0_i32_0 = arith.constant 0 : i32
    %c0_i32_1 = arith.constant 0 : i32
    return %c0_i32, %c0_i32_0 : i32, i32
  }
  func.func @transform_10(%arg0: i32) -> (i32, i32) {
    %c0_i32 = arith.constant 0 : i32
    %c0_i32_0 = arith.constant 0 : i32
    %c0_i32_1 = arith.constant 0 : i32
    return %c0_i32, %c0_i32_0 : i32, i32
  }
  func.func @transform_11(%arg0: i32) -> (i32, i32) {
    %c0_i32 = arith.constant 0 : i32
    %c0_i32_0 = arith.constant 0 : i32
    %c0_i32_1 = arith.constant 0 : i32
    return %c0_i32, %c0_i32_0 : i32, i32
  }
  func.func @transform_12(%arg0: i32) -> (i32, i32) {
    %c0_i32 = arith.constant 0 : i32
    %c0_i32_0 = arith.constant 0 : i32
    %c0_i32_1 = arith.constant 0 : i32
    return %c0_i32, %c0_i32_0 : i32, i32
  }
  func.func @transform_13(%arg0: i32) -> (i32, i32) {
    %c0_i32 = arith.constant 0 : i32
    %c0_i32_0 = arith.constant 0 : i32
    %c0_i32_1 = arith.constant 0 : i32
    return %c0_i32, %c0_i32_0 : i32, i32
  }
  func.func @transform_14(%arg0: i32) -> (i32, i32) {
    %c0_i32 = arith.constant 0 : i32
    %c0_i32_0 = arith.constant 0 : i32
    %c0_i32_1 = arith.constant 0 : i32
    return %c0_i32, %c0_i32_0 : i32, i32
  }
  func.func @transform_15(%arg0: i32) -> (i32, i32) {
    %c0_i32 = arith.constant 0 : i32
    %c0_i32_0 = arith.constant 0 : i32
    %c0_i32_1 = arith.constant 0 : i32
    return %c0_i32, %c0_i32_0 : i32, i32
  }
  func.func @transform_16(%arg0: i32) -> (i32, i32, i32) {
    %c0_i32 = arith.constant 0 : i32
    %c0_i32_0 = arith.constant 0 : i32
    %c0_i32_1 = arith.constant 0 : i32
    return %c0_i32, %arg0, %c0_i32_0 : i32, i32, i32
  }
}

</mosaic_0001>

<llo_original>
// kernel: tpu_custom_call.1
$region0: #{tpu_custom_call.1}
  #allocation0 [shape = 'u32[]', space=smem, size = 0x4, offset = 0x4, fixed_abs, tag = 'smem constant byte address 0x4 - core index']
  #allocation1 [shape = 'u32[144,128]{1,0:T(1,128)}', space=vmem, size = 0x12000, scoped, tag = 'internal scratch']
  %s0 = inlined_call_operand.vmem [shape: f32[8,16,32], index: 0, kind: input, shape index: {}]
  %s1 = inlined_call_operand.vmem [shape: f32[8,16,32], index: 1, kind: input, shape index: {}]
  %s2 = inlined_call_operand.hbm [shape: f32[8,16,32], index: 2, kind: input, shape index: {}]
  %s3 = inlined_call_operand.hbm [shape: f32[64,64], index: 3, kind: input, shape index: {}]
  %s4 = inlined_call_operand.hbm [shape: f32[3,32,32], index: 4, kind: input, shape index: {}]
  %s5 = inlined_call_operand.vmem [shape: f32[3,32,1], index: 5, kind: input, shape index: {}]
  %s6 = inlined_call_operand.hbm [shape: f32[32,32], index: 6, kind: input, shape index: {}]
  %s7 = inlined_call_operand.vmem [shape: f32[1,32], index: 7, kind: input, shape index: {}]
  %s8 = inlined_call_operand.hbm [shape: f32[1,32], index: 8, kind: input, shape index: {}]
  %s9 = inlined_call_operand.vmem [shape: f32[1,32], index: 9, kind: input, shape index: {}]
  %s10 = inlined_call_operand.hbm [shape: f32[32,128], index: 10, kind: input, shape index: {}]
  %s11 = inlined_call_operand.vmem [shape: f32[1,128], index: 11, kind: input, shape index: {}]
  %s12 = inlined_call_operand.vmem [shape: f32[128,32], index: 12, kind: input, shape index: {}]
  %s13 = inlined_call_operand.vmem [shape: f32[1,32], index: 13, kind: input, shape index: {}]
  %s14 = inlined_call_operand.vmem [shape: f32[1,32], index: 14, kind: input, shape index: {}]
  %s15 = inlined_call_operand.vmem [shape: f32[1,32], index: 15, kind: input, shape index: {}]
  %s16 = inlined_call_operand.hbm [shape: f32[8,16,32], index: 16, kind: output, shape index: {}]
  %s17 = sld [smem:[#allocation0]]
  $region197: #{tpu_custom_call.1} parent=0
    _
  %s19 = ssub.s32 1, %s17
  %s20 = scalar_select 0, %s19, %s17
  $region1: #{tpu_custom_call.1} parent=0
    #allocation2 [shape = 'u8[65536]{0}', space=vmem, size = 0x10000, scoped, tag = 'input window, operand 0']
    #allocation3 [shape = 'u8[65536]{0}', space=vmem, size = 0x10000, scoped, tag = 'input window, operand 1']
    #allocation4 [shape = 'u8[65536]{0}', space=vmem, size = 0x10000, scoped, tag = 'input window, operand 2']
    #allocation5 [shape = 's32[2]{0}', space=sflag, size = 0x8, scoped, tag = 'scoped memory for tpu_custom_call.1']
    #allocation6 [shape = 's32[2]{0}', space=sflag, size = 0x8, scoped, tag = 'scoped memory for tpu_custom_call.1']
    #allocation7 [shape = 'u8[32768]{0}', space=vmem, size = 0x8000, scoped, tag = 'input window, operand 3, single buffered']
    #allocation8 [shape = 's32[1]{0}', space=sflag, size = 0x4, scoped, tag = 'scoped memory for tpu_custom_call.1']
    #allocation9 [shape = 'u8[49152]{0}', space=vmem, size = 0xc000, scoped, tag = 'input window, operand 4, single buffered']
    #allocation10 [shape = 'u8[16384]{0}', space=vmem, size = 0x4000, scoped, tag = 'input window, operand 6, single buffered']
    #allocation11 [shape = 's32[1]{0}', space=sflag, size = 0x4, scoped, tag = 'scoped memory for tpu_custom_call.1']
    #allocation12 [shape = 'u8[512]{0}', space=vmem, size = 0x400, scoped, tag = 'input window, operand 8, single buffered']
    #allocation13 [shape = 'u8[16384]{0}', space=vmem, size = 0x4000, scoped, tag = 'input window, operand 10, single buffered']
    #allocation14 [shape = 's32[1]{0}', space=sflag, size = 0x4, scoped, tag = 'scoped memory for tpu_custom_call.1']
    #allocation15 [shape = 'u8[65536]{0}', space=vmem, size = 0x10000, scoped, tag = 'output window, operand 0']
    %21 = vsyncpa [#allocation5], 0
    %s22 = scalar_lea.sflag [#allocation5], 1
    %23 = vsyncpa %s22, 0
    %24 = vsyncpa [#allocation8], 0
    %25 = vsyncpa [#allocation11], 0
    %26 = vsyncpa [#allocation14], 0
    %27 = vsyncpa [#allocation6], 0
    %s28 = scalar_lea.sflag [#allocation6], 1
    %29 = vsyncpa %s28, 0
    loop: start=0, step=1, limit=4
    $region2: #{tpu_custom_call.1} parent=1 // loop_pre_header
      _
    $region3: #{tpu_custom_call.1} parent=1 // loop_header
      %s31 = sphi 0, %s35
      %p32 = scmp.ge.s32.totalorder %s31, 4
      %s41 = sphi 0, %s43
      %s44 = sphi 0, %s41
      %s45 = sphi 0, %s44
      %s61 = sphi 0, %s45
      %s67 = sphi 0, %s69
      %s70 = sphi 0, %s67
      %s71 = sphi 0, %s70
      %s87 = sphi 0, %s71
      %s93 = sphi 0, %s95
      %s96 = sphi 0, %s93
      %s97 = sphi 0, %s96
      %s113 = sphi 0, %s97
      %s117 = sphi 0, %s117
      %s119 = sphi 0, %s117
      %s120 = sphi 0, %s119
      %s134 = sphi 0, %s120
      %s138 = sphi 0, %s138
      %s140 = sphi 0, %s138
      %s141 = sphi 0, %s140
      %s155 = sphi 0, %s141
      %s159 = sphi 0, %s159
      %s161 = sphi 0, %s159
      %s162 = sphi 0, %s161
      %s176 = sphi 0, %s162
      %s180 = sphi 0, %s180
      %s182 = sphi 0, %s180
      %s183 = sphi 0, %s182
      %s197 = sphi 0, %s183
      %s201 = sphi 0, %s201
      %s203 = sphi 0, %s201
      %s204 = sphi 0, %s203
      %s218 = sphi 0, %s204
      %s222 = sphi 0, %s222
      %s224 = sphi 0, %s222
      %s225 = sphi 0, %s224
      %s239 = sphi 0, %s225
      %s243 = sphi 0, %s243
      %s245 = sphi 0, %s243
      %s246 = sphi 0, %s245
      %s260 = sphi 0, %s246
      %s264 = sphi 0, %s264
      %s266 = sphi 0, %s264
      %s267 = sphi 0, %s266
      %s281 = sphi 0, %s267
      %s285 = sphi 0, %s285
      %s287 = sphi 0, %s285
      %s288 = sphi 0, %s287
      %s302 = sphi 0, %s288
      %s306 = sphi 0, %s306
      %s308 = sphi 0, %s306
      %s309 = sphi 0, %s308
      %s323 = sphi 0, %s309
      %s327 = sphi 0, %s327
      %s329 = sphi 0, %s327
      %s330 = sphi 0, %s329
      %s344 = sphi 0, %s330
      %s348 = sphi 0, %s348
      %s350 = sphi 0, %s348
      %s351 = sphi 0, %s350
      %s365 = sphi 0, %s351
      %s369 = sphi 0, %s369
      %s371 = sphi 0, %s369
      %s372 = sphi 0, %s371
      %s386 = sphi 0, %s372
      %s392 = sphi 0, %s394
      %s395 = sphi 0, %s392
      %s396 = sphi 0, %s395
      %s412 = sphi 0, %s396
    $region4: #{tpu_custom_call.1} parent=1 // loop_header_branch
      %34 = sbr.rel (%p32) target = $region8
    $region5: #{tpu_custom_call.1} parent=1 // loop_body
      %s36 = ssub.s32 %s31, 1
      %s37 = ssub.s32 %s31, 2
      %s38 = sadd.s32 %s31, 1
      %s39 = ssub.s32 %s31, %s38
      %p40 = scmp.eq.s32.totalorder %s39, 0
      %s42 = sadd.s32 %s41, 1
      %s43 = scalar_select %p40, %s41, %s42
      %p46 = pneg %p40
      %p47 = scmp.eq.s32.totalorder %s31, 1
      %p48 = por %p46, %p47
      %p49 = scmp.ne.s32.totalorder %s41, %s44
      %p50 = scmp.eq.s32.totalorder %s31, 0
      %p51 = por %p49, %p50
      %p52 = scmp.ne.s32.totalorder %s41, %s44
      %p53 = scmp.eq.s32.totalorder %s36, 1
      %p54 = por %p52, %p53
      %p55 = scmp.ne.s32.totalorder %s44, %s45
      %p56 = scmp.eq.s32.totalorder %s36, 0
      %p57 = por %p55, %p56
      %p58 = scmp.ne.s32.totalorder %s44, %s45
      %p59 = scmp.eq.s32.totalorder %s37, 1
      %p60 = por %p58, %p59
      %p62 = scmp.ne.s32.totalorder %s45, %s61
      %p63 = scmp.eq.s32.totalorder %s37, 0
      %p64 = por %p62, %p63
      %s65 = ssub.s32 %s31, %s38
      %p66 = scmp.eq.s32.totalorder %s65, 0
      %s68 = sadd.s32 %s67, 1
      %s69 = scalar_select %p66, %s67, %s68
      %p72 = pneg %p66
      %p73 = scmp.eq.s32.totalorder %s31, 1
      %p74 = por %p72, %p73
      %p75 = scmp.ne.s32.totalorder %s67, %s70
      %p76 = scmp.eq.s32.totalorder %s31, 0
      %p77 = por %p75, %p76
      %p78 = scmp.ne.s32.totalorder %s67, %s70
      %p79 = scmp.eq.s32.totalorder %s36, 1
      %p80 = por %p78, %p79
      %p81 = scmp.ne.s32.totalorder %s70, %s71
      %p82 = scmp.eq.s32.totalorder %s36, 0
      %p83 = por %p81, %p82
      %p84 = scmp.ne.s32.totalorder %s70, %s71
      %p85 = scmp.eq.s32.totalorder %s37, 1
      %p86 = por %p84, %p85
      %p88 = scmp.ne.s32.totalorder %s71, %s87
      %p89 = scmp.eq.s32.totalorder %s37, 0
      %p90 = por %p88, %p89
      %s91 = ssub.s32 %s31, %s38
      %p92 = scmp.eq.s32.totalorder %s91, 0
      %s94 = sadd.s32 %s93, 1
      %s95 = scalar_select %p92, %s93, %s94
      %p98 = pneg %p92
      %p99 = scmp.eq.s32.totalorder %s31, 1
      %p100 = por %p98, %p99
      %p101 = scmp.ne.s32.totalorder %s93, %s96
      %p102 = scmp.eq.s32.totalorder %s31, 0
      %p103 = por %p101, %p102
      %p104 = scmp.ne.s32.totalorder %s93, %s96
      %p105 = scmp.eq.s32.totalorder %s36, 1
      %p106 = por %p104, %p105
      %p107 = scmp.ne.s32.totalorder %s96, %s97
      %p108 = scmp.eq.s32.totalorder %s36, 0
      %p109 = por %p107, %p108
      %p110 = scmp.ne.s32.totalorder %s96, %s97
      %p111 = scmp.eq.s32.totalorder %s37, 1
      %p112 = por %p110, %p111
      %p114 = scmp.ne.s32.totalorder %s97, %s113
      %p115 = scmp.eq.s32.totalorder %s37, 0
      %p116 = por %p114, %p115
      %s118 = sadd.s32 %s117, 1
      %p121 = scmp.eq.s32.totalorder %s31, 1
      %p122 = scmp.ne.s32.totalorder %s117, %s119
      %p123 = scmp.eq.s32.totalorder %s31, 0
      %p124 = por %p122, %p123
      %p125 = scmp.ne.s32.totalorder %s117, %s119
      %p126 = scmp.eq.s32.totalorder %s36, 1
      %p127 = por %p125, %p126
      %p128 = scmp.ne.s32.totalorder %s119, %s120
      %p129 = scmp.eq.s32.totalorder %s36, 0
      %p130 = por %p128, %p129
      %p131 = scmp.ne.s32.totalorder %s119, %s120
      %p132 = scmp.eq.s32.totalorder %s37, 1
      %p133 = por %p131, %p132
      %p135 = scmp.ne.s32.totalorder %s120, %s134
      %p136 = scmp.eq.s32.totalorder %s37, 0
      %p137 = por %p135, %p136
      %s139 = sadd.s32 %s138, 1
      %p142 = scmp.eq.s32.totalorder %s31, 1
      %p143 = scmp.ne.s32.totalorder %s138, %s140
      %p144 = scmp.eq.s32.totalorder %s31, 0
      %p145 = por %p143, %p144
      %p146 = scmp.ne.s32.totalorder %s138, %s140
      %p147 = scmp.eq.s32.totalorder %s36, 1
      %p148 = por %p146, %p147
      %p149 = scmp.ne.s32.totalorder %s140, %s141
      %p150 = scmp.eq.s32.totalorder %s36, 0
      %p151 = por %p149, %p150
      %p152 = scmp.ne.s32.totalorder %s140, %s141
      %p153 = scmp.eq.s32.totalorder %s37, 1
      %p154 = por %p152, %p153
      %p156 = scmp.ne.s32.totalorder %s141, %s155
      %p157 = scmp.eq.s32.totalorder %s37, 0
      %p158 = por %p156, %p157
      %s160 = sadd.s32 %s159, 1
      %p163 = scmp.eq.s32.totalorder %s31, 1
      %p164 = scmp.ne.s32.totalorder %s159, %s161
      %p165 = scmp.eq.s32.totalorder %s31, 0
      %p166 = por %p164, %p165
      %p167 = scmp.ne.s32.totalorder %s159, %s161
      %p168 = scmp.eq.s32.totalorder %s36, 1
      %p169 = por %p167, %p168
      %p170 = scmp.ne.s32.totalorder %s161, %s162
      %p171 = scmp.eq.s32.totalorder %s36, 0
      %p172 = por %p170, %p171
      %p173 = scmp.ne.s32.totalorder %s161, %s162
      %p174 = scmp.eq.s32.totalorder %s37, 1
      %p175 = por %p173, %p174
      %p177 = scmp.ne.s32.totalorder %s162, %s176
      %p178 = scmp.eq.s32.totalorder %s37, 0
      %p179 = por %p177, %p178
      %s181 = sadd.s32 %s180, 1
      %p184 = scmp.eq.s32.totalorder %s31, 1
      %p185 = scmp.ne.s32.totalorder %s180, %s182
      %p186 = scmp.eq.s32.totalorder %s31, 0
      %p187 = por %p185, %p186
      %p188 = scmp.ne.s32.totalorder %s180, %s182
      %p189 = scmp.eq.s32.totalorder %s36, 1
      %p190 = por %p188, %p189
      %p191 = scmp.ne.s32.totalorder %s182, %s183
      %p192 = scmp.eq.s32.totalorder %s36, 0
      %p193 = por %p191, %p192
      %p194 = scmp.ne.s32.totalorder %s182, %s183
      %p195 = scmp.eq.s32.totalorder %s37, 1
      %p196 = por %p194, %p195
      %p198 = scmp.ne.s32.totalorder %s183, %s197
      %p199 = scmp.eq.s32.totalorder %s37, 0
      %p200 = por %p198, %p199
      %s202 = sadd.s32 %s201, 1
      %p205 = scmp.eq.s32.totalorder %s31, 1
      %p206 = scmp.ne.s32.totalorder %s201, %s203
      %p207 = scmp.eq.s32.totalorder %s31, 0
      %p208 = por %p206, %p207
      %p209 = scmp.ne.s32.totalorder %s201, %s203
      %p210 = scmp.eq.s32.totalorder %s36, 1
      %p211 = por %p209, %p210
      %p212 = scmp.ne.s32.totalorder %s203, %s204
      %p213 = scmp.eq.s32.totalorder %s36, 0
      %p214 = por %p212, %p213
      %p215 = scmp.ne.s32.totalorder %s203, %s204
      %p216 = scmp.eq.s32.totalorder %s37, 1
      %p217 = por %p215, %p216
      %p219 = scmp.ne.s32.totalorder %s204, %s218
      %p220 = scmp.eq.s32.totalorder %s37, 0
      %p221 = por %p219, %p220
      %s223 = sadd.s32 %s222, 1
      %p226 = scmp.eq.s32.totalorder %s31, 1
      %p227 = scmp.ne.s32.totalorder %s222, %s224
      %p228 = scmp.eq.s32.totalorder %s31, 0
      %p229 = por %p227, %p228
      %p230 = scmp.ne.s32.totalorder %s222, %s224
      %p231 = scmp.eq.s32.totalorder %s36, 1
      %p232 = por %p230, %p231
      %p233 = scmp.ne.s32.totalorder %s224, %s225
      %p234 = scmp.eq.s32.totalorder %s36, 0
      %p235 = por %p233, %p234
      %p236 = scmp.ne.s32.totalorder %s224, %s225
      %p237 = scmp.eq.s32.totalorder %s37, 1
      %p238 = por %p236, %p237
      %p240 = scmp.ne.s32.totalorder %s225, %s239
      %p241 = scmp.eq.s32.totalorder %s37, 0
      %p242 = por %p240, %p241
      %s244 = sadd.s32 %s243, 1
      %p247 = scmp.eq.s32.totalorder %s31, 1
      %p248 = scmp.ne.s32.totalorder %s243, %s245
      %p249 = scmp.eq.s32.totalorder %s31, 0
      %p250 = por %p248, %p249
      %p251 = scmp.ne.s32.totalorder %s243, %s245
      %p252 = scmp.eq.s32.totalorder %s36, 1
      %p253 = por %p251, %p252
      %p254 = scmp.ne.s32.totalorder %s245, %s246
      %p255 = scmp.eq.s32.totalorder %s36, 0
      %p256 = por %p254, %p255
      %p257 = scmp.ne.s32.totalorder %s245, %s246
      %p258 = scmp.eq.s32.totalorder %s37, 1
      %p259 = por %p257, %p258
      %p261 = scmp.ne.s32.totalorder %s246, %s260
      %p262 = scmp.eq.s32.totalorder %s37, 0
      %p263 = por %p261, %p262
      %s265 = sadd.s32 %s264, 1
      %p268 = scmp.eq.s32.totalorder %s31, 1
      %p269 = scmp.ne.s32.totalorder %s264, %s266
      %p270 = scmp.eq.s32.totalorder %s31, 0
      %p271 = por %p269, %p270
      %p272 = scmp.ne.s32.totalorder %s264, %s266
      %p273 = scmp.eq.s32.totalorder %s36, 1
      %p274 = por %p272, %p273
      %p275 = scmp.ne.s32.totalorder %s266, %s267
      %p276 = scmp.eq.s32.totalorder %s36, 0
      %p277 = por %p275, %p276
      %p278 = scmp.ne.s32.totalorder %s266, %s267
      %p279 = scmp.eq.s32.totalorder %s37, 1
      %p280 = por %p278, %p279
      %p282 = scmp.ne.s32.totalorder %s267, %s281
      %p283 = scmp.eq.s32.totalorder %s37, 0
      %p284 = por %p282, %p283
      %s286 = sadd.s32 %s285, 1
      %p289 = scmp.eq.s32.totalorder %s31, 1
      %p290 = scmp.ne.s32.totalorder %s285, %s287
      %p291 = scmp.eq.s32.totalorder %s31, 0
      %p292 = por %p290, %p291
      %p293 = scmp.ne.s32.totalorder %s285, %s287
      %p294 = scmp.eq.s32.totalorder %s36, 1
      %p295 = por %p293, %p294
      %p296 = scmp.ne.s32.totalorder %s287, %s288
      %p297 = scmp.eq.s32.totalorder %s36, 0
      %p298 = por %p296, %p297
      %p299 = scmp.ne.s32.totalorder %s287, %s288
      %p300 = scmp.eq.s32.totalorder %s37, 1
      %p301 = por %p299, %p300
      %p303 = scmp.ne.s32.totalorder %s288, %s302
      %p304 = scmp.eq.s32.totalorder %s37, 0
      %p305 = por %p303, %p304
      %s307 = sadd.s32 %s306, 1
      %p310 = scmp.eq.s32.totalorder %s31, 1
      %p311 = scmp.ne.s32.totalorder %s306, %s308
      %p312 = scmp.eq.s32.totalorder %s31, 0
      %p313 = por %p311, %p312
      %p314 = scmp.ne.s32.totalorder %s306, %s308
      %p315 = scmp.eq.s32.totalorder %s36, 1
      %p316 = por %p314, %p315
      %p317 = scmp.ne.s32.totalorder %s308, %s309
      %p318 = scmp.eq.s32.totalorder %s36, 0
      %p319 = por %p317, %p318
      %p320 = scmp.ne.s32.totalorder %s308, %s309
      %p321 = scmp.eq.s32.totalorder %s37, 1
      %p322 = por %p320, %p321
      %p324 = scmp.ne.s32.totalorder %s309, %s323
      %p325 = scmp.eq.s32.totalorder %s37, 0
      %p326 = por %p324, %p325
      %s328 = sadd.s32 %s327, 1
      %p331 = scmp.eq.s32.totalorder %s31, 1
      %p332 = scmp.ne.s32.totalorder %s327, %s329
      %p333 = scmp.eq.s32.totalorder %s31, 0
      %p334 = por %p332, %p333
      %p335 = scmp.ne.s32.totalorder %s327, %s329
      %p336 = scmp.eq.s32.totalorder %s36, 1
      %p337 = por %p335, %p336
      %p338 = scmp.ne.s32.totalorder %s329, %s330
      %p339 = scmp.eq.s32.totalorder %s36, 0
      %p340 = por %p338, %p339
      %p341 = scmp.ne.s32.totalorder %s329, %s330
      %p342 = scmp.eq.s32.totalorder %s37, 1
      %p343 = por %p341, %p342
      %p345 = scmp.ne.s32.totalorder %s330, %s344
      %p346 = scmp.eq.s32.totalorder %s37, 0
      %p347 = por %p345, %p346
      %s349 = sadd.s32 %s348, 1
      %p352 = scmp.eq.s32.totalorder %s31, 1
      %p353 = scmp.ne.s32.totalorder %s348, %s350
      %p354 = scmp.eq.s32.totalorder %s31, 0
      %p355 = por %p353, %p354
      %p356 = scmp.ne.s32.totalorder %s348, %s350
      %p357 = scmp.eq.s32.totalorder %s36, 1
      %p358 = por %p356, %p357
      %p359 = scmp.ne.s32.totalorder %s350, %s351
      %p360 = scmp.eq.s32.totalorder %s36, 0
      %p361 = por %p359, %p360
      %p362 = scmp.ne.s32.totalorder %s350, %s351
      %p363 = scmp.eq.s32.totalorder %s37, 1
      %p364 = por %p362, %p363
      %p366 = scmp.ne.s32.totalorder %s351, %s365
      %p367 = scmp.eq.s32.totalorder %s37, 0
      %p368 = por %p366, %p367
      %s370 = sadd.s32 %s369, 1
      %p373 = scmp.eq.s32.totalorder %s31, 1
      %p374 = scmp.ne.s32.totalorder %s369, %s371
      %p375 = scmp.eq.s32.totalorder %s31, 0
      %p376 = por %p374, %p375
      %p377 = scmp.ne.s32.totalorder %s369, %s371
      %p378 = scmp.eq.s32.totalorder %s36, 1
      %p379 = por %p377, %p378
      %p380 = scmp.ne.s32.totalorder %s371, %s372
      %p381 = scmp.eq.s32.totalorder %s36, 0
      %p382 = por %p380, %p381
      %p383 = scmp.ne.s32.totalorder %s371, %s372
      %p384 = scmp.eq.s32.totalorder %s37, 1
      %p385 = por %p383, %p384
      %p387 = scmp.ne.s32.totalorder %s372, %s386
      %p388 = scmp.eq.s32.totalorder %s37, 0
      %p389 = por %p387, %p388
      %s390 = ssub.s32 %s31, %s38
      %p391 = scmp.eq.s32.totalorder %s390, 0
      %s393 = sadd.s32 %s392, 1
      %s394 = scalar_select %p391, %s392, %s393
      %p397 = pneg %p391
      %p398 = scmp.eq.s32.totalorder %s31, 1
      %p399 = por %p397, %p398
      %p400 = scmp.ne.s32.totalorder %s392, %s395
      %p401 = scmp.eq.s32.totalorder %s31, 0
      %p402 = por %p400, %p401
      %p403 = scmp.ne.s32.totalorder %s392, %s395
      %p404 = scmp.eq.s32.totalorder %s36, 1
      %p405 = por %p403, %p404
      %p406 = scmp.ne.s32.totalorder %s395, %s396
      %p407 = scmp.eq.s32.totalorder %s36, 0
      %p408 = por %p406, %p407
      %p409 = scmp.ne.s32.totalorder %s395, %s396
      %p410 = scmp.eq.s32.totalorder %s37, 1
      %p411 = por %p409, %p410
      %p413 = scmp.ne.s32.totalorder %s396, %s412
      %p414 = scmp.eq.s32.totalorder %s37, 0
      %p415 = por %p413, %p414
      %p416 = scmp.le.s32.totalorder 1, %s31
      %p417 = scmp.lt.s32.totalorder %s31, 3
      %p418 = pnand %p416, %p417
      %p419 = pneg %p418
      // Predicated region
      $region9: #{tpu_custom_call.1} parent=5 // pred_check
        _
      $region10: #{tpu_custom_call.1} parent=5 // pred_check_branch
        %421 = sbr.rel (%p418) target = $region12
      $region11: #{tpu_custom_call.1} parent=5 // pred_region
        %s422 = ssub.s32 %s31, 1
        // Predicated region
        $region13: #{tpu_custom_call.1} parent=11 // pred_check
          %p423 = pneg %p130
        $region14: #{tpu_custom_call.1} parent=11 // pred_check_branch
          %425 = sbr.rel (%p423) target = $region16
        $region15: #{tpu_custom_call.1} parent=11 // pred_region
          %s427 = ssub.s32 1024, 1024
          %428 = vsyncadd [#allocation8], %s427
          %s429 = sshll.u32 [#allocation7], 4
          %s430 = int_to_ptr.vmem [resolvable:$true] %s429
          %435 = dma.hbm_to_vmem [thread:$0]  %s3, 1024, %s430, [#allocation8], 128, 128, 8
        $region16: #{tpu_custom_call.1} parent=11 // pred_fallthru
          _
        // Predicated region
        $region17: #{tpu_custom_call.1} parent=11 // pred_check
          %p436 = pneg %p151
        $region18: #{tpu_custom_call.1} parent=11 // pred_check_branch
          %438 = sbr.rel (%p436) target = $region20
        $region19: #{tpu_custom_call.1} parent=11 // pred_region
          %s440 = ssub.s32 1536, 1536
          %441 = vsyncadd [#allocation8], %s440
          %s442 = sshll.u32 [#allocation9], 4
          %s443 = int_to_ptr.vmem [resolvable:$true] %s442
          %448 = dma.hbm_to_vmem [thread:$0]  %s4, 1536, %s443, [#allocation8], 128, 128, 8
        $region20: #{tpu_custom_call.1} parent=11 // pred_fallthru
          _
        // Predicated region
        $region21: #{tpu_custom_call.1} parent=11 // pred_check
          %p449 = pneg %p172
        $region22: #{tpu_custom_call.1} parent=11 // pred_check_branch
          %451 = sbr.rel (%p449) target = $region24
        $region23: #{tpu_custom_call.1} parent=11 // pred_region
          _
        $region24: #{tpu_custom_call.1} parent=11 // pred_fallthru
          _
        // Predicated region
        $region25: #{tpu_custom_call.1} parent=11 // pred_check
          %p452 = pneg %p193
        $region26: #{tpu_custom_call.1} parent=11 // pred_check_branch
          %454 = sbr.rel (%p452) target = $region28
        $region27: #{tpu_custom_call.1} parent=11 // pred_region
          %s456 = ssub.s32 512, 512
          %457 = vsyncadd [#allocation11], %s456
          %s458 = sshll.u32 [#allocation10], 4
          %s459 = int_to_ptr.vmem [resolvable:$true] %s458
          %464 = dma.hbm_to_vmem [thread:$0]  %s6, 512, %s459, [#allocation11], 128, 128, 8
        $region28: #{tpu_custom_call.1} parent=11 // pred_fallthru
          _
        // Predicated region
        $region29: #{tpu_custom_call.1} parent=11 // pred_check
          %p465 = pneg %p214
        $region30: #{tpu_custom_call.1} parent=11 // pred_check_branch
          %467 = sbr.rel (%p465) target = $region32
        $region31: #{tpu_custom_call.1} parent=11 // pred_region
          _
        $region32: #{tpu_custom_call.1} parent=11 // pred_fallthru
          _
        // Predicated region
        $region33: #{tpu_custom_call.1} parent=11 // pred_check
          %p468 = pneg %p235
        $region34: #{tpu_custom_call.1} parent=11 // pred_check_branch
          %470 = sbr.rel (%p468) target = $region36
        $region35: #{tpu_custom_call.1} parent=11 // pred_region
          %s472 = ssub.s32 16, 16
          %473 = vsyncadd [#allocation11], %s472
          %s475 = sshll.u32 [#allocation12], 4
          %s476 = int_to_ptr.vmem [resolvable:$true] %s475
          %478 = dma.hbm_to_vmem [thread:$0]  %s8, 16, %s476, [#allocation11]
        $region36: #{tpu_custom_call.1} parent=11 // pred_fallthru
          _
        // Predicated region
        $region37: #{tpu_custom_call.1} parent=11 // pred_check
          %p479 = pneg %p256
        $region38: #{tpu_custom_call.1} parent=11 // pred_check_branch
          %481 = sbr.rel (%p479) target = $region40
        $region39: #{tpu_custom_call.1} parent=11 // pred_region
          _
        $region40: #{tpu_custom_call.1} parent=11 // pred_fallthru
          _
        // Predicated region
        $region41: #{tpu_custom_call.1} parent=11 // pred_check
          %p482 = pneg %p277
        $region42: #{tpu_custom_call.1} parent=11 // pred_check_branch
          %484 = sbr.rel (%p482) target = $region44
        $region43: #{tpu_custom_call.1} parent=11 // pred_region
          %s486 = ssub.s32 512, 512
          %487 = vsyncadd [#allocation14], %s486
          %s488 = sshll.u32 [#allocation13], 4
          %s489 = int_to_ptr.vmem [resolvable:$true] %s488
          %494 = dma.hbm_to_vmem [thread:$0]  %s10, 512, %s489, [#allocation14], 128, 128, 8
        $region44: #{tpu_custom_call.1} parent=11 // pred_fallthru
          _
        // Predicated region
        $region45: #{tpu_custom_call.1} parent=11 // pred_check
          %p495 = pneg %p298
        $region46: #{tpu_custom_call.1} parent=11 // pred_check_branch
          %497 = sbr.rel (%p495) target = $region48
        $region47: #{tpu_custom_call.1} parent=11 // pred_region
          _
        $region48: #{tpu_custom_call.1} parent=11 // pred_fallthru
          _
        // Predicated region
        $region49: #{tpu_custom_call.1} parent=11 // pred_check
          %p498 = pneg %p319
        $region50: #{tpu_custom_call.1} parent=11 // pred_check_branch
          %500 = sbr.rel (%p498) target = $region52
        $region51: #{tpu_custom_call.1} parent=11 // pred_region
          _
        $region52: #{tpu_custom_call.1} parent=11 // pred_fallthru
          _
        // Predicated region
        $region53: #{tpu_custom_call.1} parent=11 // pred_check
          %p501 = pneg %p340
        $region54: #{tpu_custom_call.1} parent=11 // pred_check_branch
          %503 = sbr.rel (%p501) target = $region56
        $region55: #{tpu_custom_call.1} parent=11 // pred_region
          _
        $region56: #{tpu_custom_call.1} parent=11 // pred_fallthru
          _
        // Predicated region
        $region57: #{tpu_custom_call.1} parent=11 // pred_check
          %p504 = pneg %p361
        $region58: #{tpu_custom_call.1} parent=11 // pred_check_branch
          %506 = sbr.rel (%p504) target = $region60
        $region59: #{tpu_custom_call.1} parent=11 // pred_region
          _
        $region60: #{tpu_custom_call.1} parent=11 // pred_fallthru
          _
        // Predicated region
        $region61: #{tpu_custom_call.1} parent=11 // pred_check
          %p507 = pneg %p382
        $region62: #{tpu_custom_call.1} parent=11 // pred_check_branch
          %509 = sbr.rel (%p507) target = $region64
        $region63: #{tpu_custom_call.1} parent=11 // pred_region
          _
        $region64: #{tpu_custom_call.1} parent=11 // pred_fallthru
          _
      $region12: #{tpu_custom_call.1} parent=5 // pred_fallthru
        _
      %p510 = scmp.lt.s32.totalorder %s31, 2
      // Predicated region
      $region65: #{tpu_custom_call.1} parent=5 // pred_check
        %p511 = pneg %p510
      $region66: #{tpu_custom_call.1} parent=5 // pred_check_branch
        %513 = sbr.rel (%p511) target = $region68
      $region67: #{tpu_custom_call.1} parent=5 // pred_region
        // Predicated region
        $region69: #{tpu_custom_call.1} parent=67 // pred_check
          %p514 = pneg %p51
        $region70: #{tpu_custom_call.1} parent=67 // pred_check_branch
          %516 = sbr.rel (%p514) target = $region72
        $region71: #{tpu_custom_call.1} parent=67 // pred_region
          %s517 = sand.u32 %s41, 1
          %s518 = sand.u32 %s41, 1
          %s519 = smul.addr %s518, 64
          %s520 = scalar_lea.vmem [#allocation2], %s519
          %s521 = smul.addr %s31, 8
          %s522 = scalar_lea.vmem %s0, %s521
          // Predicated region
          $region73: #{tpu_custom_call.1} parent=71 // pred_check
            _
          $region74: #{tpu_custom_call.1} parent=71 // pred_check_branch
            %524 = sbr.rel (0) target = $region76
          $region75: #{tpu_custom_call.1} parent=71 // pred_region
            // Predicated region
            $region77: #{tpu_custom_call.1} parent=75 // pred_check
              _
            $region78: #{tpu_custom_call.1} parent=75 // pred_check_branch
              %526 = sbr.rel (0) target = $region80
            $region79: #{tpu_custom_call.1} parent=75 // pred_region
              // Predicated region
              $region92: #{tpu_custom_call.1} parent=79 // pred_check
                _
              $region93: #{tpu_custom_call.1} parent=79 // pred_check_branch
                %555 = sbr.rel (0) target = $region95
              $region94: #{tpu_custom_call.1} parent=79 // pred_region
                loop: start=0, step=1, limit=1
                $region96: #{tpu_custom_call.1} parent=94 // loop_pre_header
                  _
                $region97: #{tpu_custom_call.1} parent=94 // loop_header
                  %s557 = sphi 0, %s561
                  %p558 = scmp.ge.s32.totalorder %s557, 1
                  %s562 = sphi %s522, %s522
                  %s563 = sphi %s520, %s520
                $region98: #{tpu_custom_call.1} parent=94 // loop_header_branch
                  %560 = sbr.rel (%p558) target = $region102
                $region99: #{tpu_custom_call.1} parent=94 // loop_body
                  %v564 = vld [vmem:[%s562] sm:$0xff]
                  %565 = vst [vmem:[%s563] sm:$0xff] %v564
                  %v566 = vld [vmem:[%s562 + $0x10] sm:$0xff]
                  %567 = vst [vmem:[%s563 + $0x8] sm:$0xff] %v566
                  %v568 = vld [vmem:[%s562 + $0x20] sm:$0xff]
                  %569 = vst [vmem:[%s563 + $0x10] sm:$0xff] %v568
                  %v570 = vld [vmem:[%s562 + $0x30] sm:$0xff]
                  %571 = vst [vmem:[%s563 + $0x18] sm:$0xff] %v570
                  %v572 = vld [vmem:[%s562 + $0x40] sm:$0xff]
                  %573 = vst [vmem:[%s563 + $0x20] sm:$0xff] %v572
                  %v574 = vld [vmem:[%s562 + $0x50] sm:$0xff]
                  %575 = vst [vmem:[%s563 + $0x28] sm:$0xff] %v574
                  %v576 = vld [vmem:[%s562 + $0x60] sm:$0xff]
                  %577 = vst [vmem:[%s563 + $0x30] sm:$0xff] %v576
                  %v578 = vld [vmem:[%s562 + $0x70] sm:$0xff]
                  %579 = vst [vmem:[%s563 + $0x38] sm:$0xff] %v578
                $region100: #{tpu_custom_call.1} parent=94 // loop_footer
                  %s561 = sadd.s32 1, %s557
                $region101: #{tpu_custom_call.1} parent=94 // loop_footer_branch
                  %556 = sbr.rel target = $region97
                $region102: #{tpu_custom_call.1} parent=94 // loop_exit
                  _
              $region95: #{tpu_custom_call.1} parent=79 // pred_fallthru
                _
              // Predicated region
              $region103: #{tpu_custom_call.1} parent=79 // pred_check
                _
              $region104: #{tpu_custom_call.1} parent=79 // pred_check_branch
                %581 = sbr.rel target = $region106
              $region105: #{tpu_custom_call.1} parent=79 // pred_region
                _
              $region106: #{tpu_custom_call.1} parent=79 // pred_fallthru
                _
            $region80: #{tpu_custom_call.1} parent=75 // pred_fallthru
              _
            // Predicated region
            $region81: #{tpu_custom_call.1} parent=75 // pred_check
              _
            $region82: #{tpu_custom_call.1} parent=75 // pred_check_branch
              %528 = sbr.rel target = $region84
            $region83: #{tpu_custom_call.1} parent=75 // pred_region
              loop: start=0, step=1, limit=1
              $region85: #{tpu_custom_call.1} parent=83 // loop_pre_header
                _
              $region86: #{tpu_custom_call.1} parent=83 // loop_header
                %s531 = sphi 0, %s535
                %p532 = scmp.ge.s32.totalorder %s531, 1
                %s536 = sphi %s522, %s522
                %s537 = sphi %s520, %s520
              $region87: #{tpu_custom_call.1} parent=83 // loop_header_branch
                %534 = sbr.rel (%p532) target = $region91
              $region88: #{tpu_custom_call.1} parent=83 // loop_body
                %v538 = vld [vmem:[%s536] sm:$0xff]
                %539 = vst [vmem:[%s537] sm:$0xff] %v538
                %v540 = vld [vmem:[%s536 + $0x10] sm:$0xff]
                %541 = vst [vmem:[%s537 + $0x8] sm:$0xff] %v540
                %v542 = vld [vmem:[%s536 + $0x20] sm:$0xff]
                %543 = vst [vmem:[%s537 + $0x10] sm:$0xff] %v542
                %v544 = vld [vmem:[%s536 + $0x30] sm:$0xff]
                %545 = vst [vmem:[%s537 + $0x18] sm:$0xff] %v544
                %v546 = vld [vmem:[%s536 + $0x40] sm:$0xff]
                %547 = vst [vmem:[%s537 + $0x20] sm:$0xff] %v546
                %v548 = vld [vmem:[%s536 + $0x50] sm:$0xff]
                %549 = vst [vmem:[%s537 + $0x28] sm:$0xff] %v548
                %v550 = vld [vmem:[%s536 + $0x60] sm:$0xff]
                %551 = vst [vmem:[%s537 + $0x30] sm:$0xff] %v550
                %v552 = vld [vmem:[%s536 + $0x70] sm:$0xff]
                %553 = vst [vmem:[%s537 + $0x38] sm:$0xff] %v552
              $region89: #{tpu_custom_call.1} parent=83 // loop_footer
                %s535 = sadd.s32 1, %s531
              $region90: #{tpu_custom_call.1} parent=83 // loop_footer_branch
                %530 = sbr.rel target = $region86
              $region91: #{tpu_custom_call.1} parent=83 // loop_exit
                _
            $region84: #{tpu_custom_call.1} parent=75 // pred_fallthru
              _
          $region76: #{tpu_custom_call.1} parent=71 // pred_fallthru
            _
          %582 = vnop
        $region72: #{tpu_custom_call.1} parent=67 // pred_fallthru
          _
        // Predicated region
        $region107: #{tpu_custom_call.1} parent=67 // pred_check
          %p583 = pneg %p77
        $region108: #{tpu_custom_call.1} parent=67 // pred_check_branch
          %585 = sbr.rel (%p583) target = $region110
        $region109: #{tpu_custom_call.1} parent=67 // pred_region
          %s586 = sand.u32 %s67, 1
          %s587 = sand.u32 %s67, 1
          %s588 = smul.addr %s587, 64
          %s589 = scalar_lea.vmem [#allocation3], %s588
          %s590 = smul.addr %s31, 8
          %s591 = scalar_lea.vmem %s1, %s590
          // Predicated region
          $region111: #{tpu_custom_call.1} parent=109 // pred_check
            _
          $region112: #{tpu_custom_call.1} parent=109 // pred_check_branch
            %593 = sbr.rel (0) target = $region114
          $region113: #{tpu_custom_call.1} parent=109 // pred_region
            // Predicated region
            $region115: #{tpu_custom_call.1} parent=113 // pred_check
              _
            $region116: #{tpu_custom_call.1} parent=113 // pred_check_branch
              %595 = sbr.rel (0) target = $region118
            $region117: #{tpu_custom_call.1} parent=113 // pred_region
              // Predicated region
              $region130: #{tpu_custom_call.1} parent=117 // pred_check
                _
              $region131: #{tpu_custom_call.1} parent=117 // pred_check_branch
                %624 = sbr.rel (0) target = $region133
              $region132: #{tpu_custom_call.1} parent=117 // pred_region
                loop: start=0, step=1, limit=1
                $region134: #{tpu_custom_call.1} parent=132 // loop_pre_header
                  _
                $region135: #{tpu_custom_call.1} parent=132 // loop_header
                  %s626 = sphi 0, %s630
                  %p627 = scmp.ge.s32.totalorder %s626, 1
                  %s631 = sphi %s591, %s591
                  %s632 = sphi %s589, %s589
                $region136: #{tpu_custom_call.1} parent=132 // loop_header_branch
                  %629 = sbr.rel (%p627) target = $region140
                $region137: #{tpu_custom_call.1} parent=132 // loop_body
                  %v633 = vld [vmem:[%s631] sm:$0xff]
                  %634 = vst [vmem:[%s632] sm:$0xff] %v633
                  %v635 = vld [vmem:[%s631 + $0x10] sm:$0xff]
                  %636 = vst [vmem:[%s632 + $0x8] sm:$0xff] %v635
                  %v637 = vld [vmem:[%s631 + $0x20] sm:$0xff]
                  %638 = vst [vmem:[%s632 + $0x10] sm:$0xff] %v637
                  %v639 = vld [vmem:[%s631 + $0x30] sm:$0xff]
                  %640 = vst [vmem:[%s632 + $0x18] sm:$0xff] %v639
                  %v641 = vld [vmem:[%s631 + $0x40] sm:$0xff]
                  %642 = vst [vmem:[%s632 + $0x20] sm:$0xff] %v641
                  %v643 = vld [vmem:[%s631 + $0x50] sm:$0xff]
                  %644 = vst [vmem:[%s632 + $0x28] sm:$0xff] %v643
                  %v645 = vld [vmem:[%s631 + $0x60] sm:$0xff]
                  %646 = vst [vmem:[%s632 + $0x30] sm:$0xff] %v645
                  %v647 = vld [vmem:[%s631 + $0x70] sm:$0xff]
                  %648 = vst [vmem:[%s632 + $0x38] sm:$0xff] %v647
                $region138: #{tpu_custom_call.1} parent=132 // loop_footer
                  %s630 = sadd.s32 1, %s626
                $region139: #{tpu_custom_call.1} parent=132 // loop_footer_branch
                  %625 = sbr.rel target = $region135
                $region140: #{tpu_custom_call.1} parent=132 // loop_exit
                  _
              $region133: #{tpu_custom_call.1} parent=117 // pred_fallthru
                _
              // Predicated region
              $region141: #{tpu_custom_call.1} parent=117 // pred_check
                _
              $region142: #{tpu_custom_call.1} parent=117 // pred_check_branch
                %650 = sbr.rel target = $region144
              $region143: #{tpu_custom_call.1} parent=117 // pred_region
                _
              $region144: #{tpu_custom_call.1} parent=117 // pred_fallthru
                _
            $region118: #{tpu_custom_call.1} parent=113 // pred_fallthru
              _
            // Predicated region
            $region119: #{tpu_custom_call.1} parent=113 // pred_check
              _
            $region120: #{tpu_custom_call.1} parent=113 // pred_check_branch
              %597 = sbr.rel target = $region122
            $region121: #{tpu_custom_call.1} parent=113 // pred_region
              loop: start=0, step=1, limit=1
              $region123: #{tpu_custom_call.1} parent=121 // loop_pre_header
                _
              $region124: #{tpu_custom_call.1} parent=121 // loop_header
                %s600 = sphi 0, %s604
                %p601 = scmp.ge.s32.totalorder %s600, 1
                %s605 = sphi %s591, %s591
                %s606 = sphi %s589, %s589
              $region125: #{tpu_custom_call.1} parent=121 // loop_header_branch
                %603 = sbr.rel (%p601) target = $region129
              $region126: #{tpu_custom_call.1} parent=121 // loop_body
                %v607 = vld [vmem:[%s605] sm:$0xff]
                %608 = vst [vmem:[%s606] sm:$0xff] %v607
                %v609 = vld [vmem:[%s605 + $0x10] sm:$0xff]
                %610 = vst [vmem:[%s606 + $0x8] sm:$0xff] %v609
                %v611 = vld [vmem:[%s605 + $0x20] sm:$0xff]
                %612 = vst [vmem:[%s606 + $0x10] sm:$0xff] %v611
                %v613 = vld [vmem:[%s605 + $0x30] sm:$0xff]
                %614 = vst [vmem:[%s606 + $0x18] sm:$0xff] %v613
                %v615 = vld [vmem:[%s605 + $0x40] sm:$0xff]
                %616 = vst [vmem:[%s606 + $0x20] sm:$0xff] %v615
                %v617 = vld [vmem:[%s605 + $0x50] sm:$0xff]
                %618 = vst [vmem:[%s606 + $0x28] sm:$0xff] %v617
                %v619 = vld [vmem:[%s605 + $0x60] sm:$0xff]
                %620 = vst [vmem:[%s606 + $0x30] sm:$0xff] %v619
                %v621 = vld [vmem:[%s605 + $0x70] sm:$0xff]
                %622 = vst [vmem:[%s606 + $0x38] sm:$0xff] %v621
              $region127: #{tpu_custom_call.1} parent=121 // loop_footer
                %s604 = sadd.s32 1, %s600
              $region128: #{tpu_custom_call.1} parent=121 // loop_footer_branch
                %599 = sbr.rel target = $region124
              $region129: #{tpu_custom_call.1} parent=121 // loop_exit
                _
            $region122: #{tpu_custom_call.1} parent=113 // pred_fallthru
              _
          $region114: #{tpu_custom_call.1} parent=109 // pred_fallthru
            _
          %651 = vnop
        $region110: #{tpu_custom_call.1} parent=67 // pred_fallthru
          _
        // Predicated region
        $region145: #{tpu_custom_call.1} parent=67 // pred_check
          %p652 = pneg %p103
        $region146: #{tpu_custom_call.1} parent=67 // pred_check_branch
          %654 = sbr.rel (%p652) target = $region148
        $region147: #{tpu_custom_call.1} parent=67 // pred_region
          %s655 = sand.u32 %s93, 1
          %s656 = scalar_lea.sflag [#allocation5], %s655
          %s657 = sand.u32 %s93, 1
          %s658 = smul.addr %s657, 64
          %s659 = scalar_lea.vmem [#allocation4], %s658
          %s661 = ssub.s32 1024, 1024
          %662 = vsyncadd %s656, %s661
          %s663 = smul.addr %s31, 128
          %s664 = scalar_lea.hbm %s2, %s663
          %s665 = sshll.u32 %s659, 4
          %s666 = int_to_ptr.vmem [resolvable:$true] %s665
          %671 = dma.hbm_to_vmem [thread:$0]  %s664, 1024, %s666, %s656, 256, 128, 8
        $region148: #{tpu_custom_call.1} parent=67 // pred_fallthru
          _
      $region68: #{tpu_custom_call.1} parent=5 // pred_fallthru
        _
      %p672 = scmp.le.s32.totalorder 1, %s31
      %p673 = scmp.lt.s32.totalorder %s31, 3
      %p674 = pnand %p672, %p673
      %p675 = pneg %p674
      // Predicated region
      $region149: #{tpu_custom_call.1} parent=5 // pred_check
        _
      $region150: #{tpu_custom_call.1} parent=5 // pred_check_branch
        %677 = sbr.rel (%p674) target = $region152
      $region151: #{tpu_custom_call.1} parent=5 // pred_region
        %s678 = ssub.s32 %s31, 1
        %s679 = sand.u32 %s44, 1
        %s680 = sand.u32 %s44, 1
        %s681 = smul.addr %s680, 64
        %s682 = scalar_lea.vmem [#allocation2], %s681
        // Predicated region
        $region153: #{tpu_custom_call.1} parent=151 // pred_check
          %p683 = pneg %p57
        $region154: #{tpu_custom_call.1} parent=151 // pred_check_branch
          %685 = sbr.rel (%p683) target = $region156
        $region155: #{tpu_custom_call.1} parent=151 // pred_region
          _
        $region156: #{tpu_custom_call.1} parent=151 // pred_fallthru
          _
        %s686 = sand.u32 %s70, 1
        %s687 = sand.u32 %s70, 1
        %s688 = smul.addr %s687, 64
        %s689 = scalar_lea.vmem [#allocation3], %s688
        // Predicated region
        $region157: #{tpu_custom_call.1} parent=151 // pred_check
          %p690 = pneg %p83
        $region158: #{tpu_custom_call.1} parent=151 // pred_check_branch
          %692 = sbr.rel (%p690) target = $region160
        $region159: #{tpu_custom_call.1} parent=151 // pred_region
          _
        $region160: #{tpu_custom_call.1} parent=151 // pred_fallthru
          _
        %s693 = sand.u32 %s96, 1
        %s694 = scalar_lea.sflag [#allocation5], %s693
        %s695 = sand.u32 %s96, 1
        %s696 = smul.addr %s695, 64
        %s697 = scalar_lea.vmem [#allocation4], %s696
        // Predicated region
        $region161: #{tpu_custom_call.1} parent=151 // pred_check
          %p698 = pneg %p109
        $region162: #{tpu_custom_call.1} parent=151 // pred_check_branch
          %700 = sbr.rel (%p698) target = $region164
        $region163: #{tpu_custom_call.1} parent=151 // pred_region
          %701 = dma.done %s694, 1024
        $region164: #{tpu_custom_call.1} parent=151 // pred_fallthru
          _
        // Predicated region
        $region165: #{tpu_custom_call.1} parent=151 // pred_check
          %p702 = pneg %p130
        $region166: #{tpu_custom_call.1} parent=151 // pred_check_branch
          %704 = sbr.rel (%p702) target = $region168
        $region167: #{tpu_custom_call.1} parent=151 // pred_region
          %705 = dma.done [#allocation8], 1024
        $region168: #{tpu_custom_call.1} parent=151 // pred_fallthru
          _
        // Predicated region
        $region169: #{tpu_custom_call.1} parent=151 // pred_check
          %p706 = pneg %p151
        $region170: #{tpu_custom_call.1} parent=151 // pred_check_branch
          %708 = sbr.rel (%p706) target = $region172
        $region171: #{tpu_custom_call.1} parent=151 // pred_region
          %709 = dma.done [#allocation8], 1536
        $region172: #{tpu_custom_call.1} parent=151 // pred_fallthru
          _
        // Predicated region
        $region173: #{tpu_custom_call.1} parent=151 // pred_check
          %p710 = pneg %p193
        $region174: #{tpu_custom_call.1} parent=151 // pred_check_branch
          %712 = sbr.rel (%p710) target = $region176
        $region175: #{tpu_custom_call.1} parent=151 // pred_region
          %713 = dma.done [#allocation11], 512
        $region176: #{tpu_custom_call.1} parent=151 // pred_fallthru
          _
        // Predicated region
        $region177: #{tpu_custom_call.1} parent=151 // pred_check
          %p714 = pneg %p235
        $region178: #{tpu_custom_call.1} parent=151 // pred_check_branch
          %716 = sbr.rel (%p714) target = $region180
        $region179: #{tpu_custom_call.1} parent=151 // pred_region
          %717 = dma.done [#allocation11], 16
        $region180: #{tpu_custom_call.1} parent=151 // pred_fallthru
          _
        // Predicated region
        $region181: #{tpu_custom_call.1} parent=151 // pred_check
          %p718 = pneg %p277
        $region182: #{tpu_custom_call.1} parent=151 // pred_check_branch
          %720 = sbr.rel (%p718) target = $region184
        $region183: #{tpu_custom_call.1} parent=151 // pred_region
          %721 = dma.done [#allocation14], 512
        $region184: #{tpu_custom_call.1} parent=151 // pred_fallthru
          _
        %s722 = sand.u32 %s44, 1
        %s723 = sand.u32 %s44, 1
        %s724 = smul.addr %s723, 64
        %s725 = scalar_lea.vmem [#allocation2], %s724
        %p726 = pneg %p57
        %p727 = pneg %p54
        %s728 = sand.u32 %s70, 1
        %s729 = sand.u32 %s70, 1
        %s730 = smul.addr %s729, 64
        %s731 = scalar_lea.vmem [#allocation3], %s730
        %p732 = pneg %p83
        %p733 = pneg %p80
        %s734 = sand.u32 %s96, 1
        %s735 = scalar_lea.sflag [#allocation5], %s734
        %s736 = sand.u32 %s96, 1
        %s737 = smul.addr %s736, 64
        %s738 = scalar_lea.vmem [#allocation4], %s737
        %p739 = pneg %p109
        %p740 = pneg %p106
        %p741 = pneg %p130
        %p742 = pneg %p127
        %p743 = pneg %p151
        %p744 = pneg %p148
        %p745 = pneg %p172
        %p746 = pneg %p169
        %p747 = pneg %p193
        %p748 = pneg %p190
        %p749 = pneg %p214
        %p750 = pneg %p211
        %p751 = pneg %p235
        %p752 = pneg %p232
        %p753 = pneg %p256
        %p754 = pneg %p253
        %p755 = pneg %p277
        %p756 = pneg %p274
        %p757 = pneg %p298
        %p758 = pneg %p295
        %p759 = pneg %p319
        %p760 = pneg %p316
        %p761 = pneg %p340
        %p762 = pneg %p337
        %p763 = pneg %p361
        %p764 = pneg %p358
        %p765 = pneg %p382
        %p766 = pneg %p379
        %p767 = pneg %p408
        %p768 = pneg %p405
        %s769 = sand.u32 %s395, 1
        %s770 = scalar_lea.sflag [#allocation6], %s769
        %s771 = sand.u32 %s395, 1
        %s772 = smul.addr %s771, 64
        %s773 = scalar_lea.vmem [#allocation15], %s772
        %v774 = vld [vmem:[%s7] sm:$0x1]
        %v775 = vld [vmem:[#allocation12] sm:$0x1]
        %v776 = vld [vmem:[%s9] sm:$0x1]
        %v777 = vld [vmem:[%s11] sm:$0x1]
        %v778 = vld [vmem:[%s13] sm:$0x1]
        %v779 = vld [vmem:[%s14] sm:$0x1]
        %v780 = vld [vmem:[%s15] sm:$0x1]
        %v781 = vld [vmem:[%s682] sm:$0xff]
        %v782 = vld [vmem:[%s682 + $0x8] sm:$0xff]
        %v783 = vld [vmem:[%s682 + $0x10] sm:$0xff]
        %v784 = vld [vmem:[%s682 + $0x18] sm:$0xff]
        %v785 = vld [vmem:[%s682 + $0x20] sm:$0xff]
        %v786 = vld [vmem:[%s682 + $0x28] sm:$0xff]
        %v787 = vld [vmem:[%s682 + $0x30] sm:$0xff]
        %v788 = vld [vmem:[%s682 + $0x38] sm:$0xff]
        %v789 = vld [vmem:[%s689] sm:$0xff]
        %v790 = vld [vmem:[%s689 + $0x8] sm:$0xff]
        %v791 = vld [vmem:[%s689 + $0x10] sm:$0xff]
        %v792 = vld [vmem:[%s689 + $0x18] sm:$0xff]
        %v793 = vld [vmem:[%s689 + $0x20] sm:$0xff]
        %v794 = vld [vmem:[%s689 + $0x28] sm:$0xff]
        %v795 = vld [vmem:[%s689 + $0x30] sm:$0xff]
        %v796 = vld [vmem:[%s689 + $0x38] sm:$0xff]
        %v797 = vld [vmem:[%s697] sm:$0xff]
        %v798 = vld [vmem:[%s697 + $0x8] sm:$0xff]
        %v799 = vld [vmem:[%s697 + $0x10] sm:$0xff]
        %v800 = vld [vmem:[%s697 + $0x18] sm:$0xff]
        %v801 = vld [vmem:[%s697 + $0x20] sm:$0xff]
        %v802 = vld [vmem:[%s697 + $0x28] sm:$0xff]
        %v803 = vld [vmem:[%s697 + $0x30] sm:$0xff]
        %v804 = vld [vmem:[%s697 + $0x38] sm:$0xff]
        %v805 = vld [vmem:[#allocation9] sm:$0xff]
        %v806 = vld [vmem:[#allocation9 + $0x8] sm:$0xff]
        %v807 = vld [vmem:[#allocation9 + $0x10] sm:$0xff]
        %v808 = vld [vmem:[#allocation9 + $0x18] sm:$0xff]
        %v809 = vld [vmem:[%s5] sm:$0xff]
        %v810 = vld [vmem:[%s5 + $0x8] sm:$0xff]
        %v811 = vld [vmem:[%s5 + $0x10] sm:$0xff]
        %v812 = vld [vmem:[%s5 + $0x18] sm:$0xff]
        %814 = vset.pattern.permute.xlu0 0
        %815 = vperm.xlu0 %814, %v809
        %v816 = vpop.permute.xlu0 %815
        %819 = vset.pattern.permute.xlu0 0
        %820 = vperm.xlu0 %819, %v810
        %v821 = vpop.permute.xlu0 %820
        %824 = vset.pattern.permute.xlu0 0
        %825 = vperm.xlu0 %824, %v811
        %v826 = vpop.permute.xlu0 %825
        %829 = vset.pattern.permute.xlu0 0
        %830 = vperm.xlu0 %829, %v812
        %v831 = vpop.permute.xlu0 %830
        %vm833 = vcmask 261120
        %v835 = vsel %vm833, %v805, 0
        %v838 = vsel %vm833, %v806, 0
        %v841 = vsel %vm833, %v807, 0
        %v844 = vsel %vm833, %v808, 0
        %v847 = vsel %vm833, %v781, 0
        %v850 = vsel %vm833, %v782, 0
        %v853 = vsel %vm833, %v783, 0
        %v856 = vsel %vm833, %v784, 0
        %v859 = vsel %vm833, %v785, 0
        %v862 = vsel %vm833, %v786, 0
        %v865 = vsel %vm833, %v787, 0
        %v868 = vsel %vm833, %v788, 0
        %870 = vmatprep.subr.mxu0 0.0
        %871 = vmatpush1.xpose.msra.mxu0 %v847
        %872 = vmatprep.subr.mxu0 0.0
        %873 = vmatpush1.xpose.msra.mxu0 %v850
        %874 = vmatprep.subr.mxu0 0.0
        %875 = vmatpush1.xpose.msra.mxu0 %v853
        %876 = vmatprep.subr.mxu0 0.0
        %877 = vmatpush1.xpose.msra.mxu0 %v856
        %878 = vmatprep.subr.mxu0 0.0
        %879 = vmatpush1.xpose.msra.mxu0 %v859
        %880 = vmatprep.subr.mxu0 0.0
        %881 = vmatpush1.xpose.msra.mxu0 %v862
        %882 = vmatprep.subr.mxu0 0.0
        %883 = vmatpush1.xpose.msra.mxu0 %v865
        %884 = vmatprep.subr.mxu0 0.0
        %885 = vmatpush1.xpose.msra.mxu0 %v868
        %886 = vmatprep.subr.mxu0 0.0
        %887 = vmatpush1.xpose.msra.mxu0 0.0
        %888 = vmatprep.subr.mxu0 0.0
        %889 = vmatpush1.xpose.msra.mxu0 0.0
        %890 = vmatprep.subr.mxu0 0.0
        %891 = vmatpush1.xpose.msra.mxu0 0.0
        %892 = vmatprep.subr.mxu0 0.0
        %893 = vmatpush1.xpose.msra.mxu0 0.0
        %894 = vmatprep.subr.mxu0 0.0
        %895 = vmatpush1.xpose.msra.mxu0 0.0
        %896 = vmatprep.subr.mxu0 0.0
        %897 = vmatpush1.xpose.msra.mxu0 0.0
        %898 = vmatprep.subr.mxu0 0.0
        %899 = vmatpush1.xpose.msra.mxu0 0.0
        %900 = vmatprep.subr.mxu0 0.0
        %901 = vmatpush1.xpose.msra.mxu0 0.0
        %902 = vmatprep.subr.mxu0 0.0
        %903 = vmatpush1.xpose.msra.mxu0 0.0
        %904 = vmatprep.subr.mxu0 0.0
        %905 = vmatpush1.xpose.msra.mxu0 0.0
        %906 = vmatprep.subr.mxu0 0.0
        %907 = vmatpush1.xpose.msra.mxu0 0.0
        %908 = vmatprep.subr.mxu0 0.0
        %909 = vmatpush1.xpose.msra.mxu0 0.0
        %910 = vmatprep.subr.mxu0 0.0
        %911 = vmatpush1.xpose.msra.mxu0 0.0
        %912 = vmatprep.subr.mxu0 0.0
        %913 = vmatpush1.xpose.msra.mxu0 0.0
        %914 = vmatprep.subr.mxu0 0.0
        %915 = vmatpush1.xpose.msra.mxu0 0.0
        %916 = vmatprep.subr.mxu0 0.0
        %917 = vmatpush1.xpose.msra.mxu0 0.0
        %918 = vmatprep.subr.mxu0 0.0
        %919 = vmatpush1.xpose.msra.mxu0 0.0
        %920 = vmatprep.subr.mxu0 0.0
        %921 = vmatpush1.xpose.msra.mxu0 0.0
        %922 = vmatprep.subr.mxu0 0.0
        %923 = vmatpush1.xpose.msra.mxu0 0.0
        %924 = vmatprep.subr.mxu0 0.0
        %925 = vmatpush1.xpose.msra.mxu0 0.0
        %926 = vmatprep.subr.mxu0 0.0
        %927 = vmatpush1.xpose.msra.mxu0 0.0
        %928 = vmatprep.subr.mxu0 0.0
        %929 = vmatpush1.xpose.msra.mxu0 0.0
        %930 = vmatprep.subr.mxu0 0.0
        %931 = vmatpush1.xpose.msra.mxu0 0.0
        %932 = vmatprep.subr.mxu0 0.0
        %933 = vmatpush1.xpose.msra.mxu0 0.0
        %934 = vmatprep.mubr.f32.mxu0 0.0
        %935 = vmatmul.mubr.f32.gmra.mrb[0].mxu0 %v835
        %v936 = vpop.f32.mrb[0].mxu0
        %v937 = vadd.f32 %v816, %v936
        %v938 = vpop.f32.mrb[0].mxu0
        %939 = vmatprep.mubr.f32.mxu0 0.0
        %940 = vmatmul.mubr.f32.gmra.mrb[0].mxu0 %v838
        %v941 = vpop.f32.mrb[0].mxu0
        %v942 = vadd.f32 %v821, %v941
        %v943 = vpop.f32.mrb[0].mxu0
        %944 = vmatprep.mubr.f32.mxu0 0.0
        %945 = vmatmul.mubr.f32.gmra.mrb[0].mxu0 %v841
        %v946 = vpop.f32.mrb[0].mxu0
        %v947 = vadd.f32 %v826, %v946
        %v948 = vpop.f32.mrb[0].mxu0
        %949 = vmatprep.mubr.f32.mxu0 0.0
        %950 = vmatmul.mubr.f32.gmra.mrb[0].mxu0 %v844
        %v951 = vpop.f32.mrb[0].mxu0
        %v952 = vadd.f32 %v831, %v951
        %v953 = vpop.f32.mrb[0].mxu0
        %954 = vdwg.mxu0
        %v955 = vmul.f32 %v937, 0.35355338
        %v956 = vmul.f32 %v942, 0.35355338
        %v957 = vmul.f32 %v947, 0.35355338
        %v958 = vmul.f32 %v952, 0.35355338
        %s959 = scalar_lea.vmem [#allocation9], 32
        %v960 = vld [vmem:[%s959] sm:$0xff]
        %v961 = vld [vmem:[%s959 + $0x8] sm:$0xff]
        %v962 = vld [vmem:[%s959 + $0x10] sm:$0xff]
        %v963 = vld [vmem:[%s959 + $0x18] sm:$0xff]
        %s964 = scalar_lea.vmem %s5, 32
        %v965 = vld [vmem:[%s964] sm:$0xff]
        %v966 = vld [vmem:[%s964 + $0x8] sm:$0xff]
        %v967 = vld [vmem:[%s964 + $0x10] sm:$0xff]
        %v968 = vld [vmem:[%s964 + $0x18] sm:$0xff]
        %970 = vset.pattern.permute.xlu0 0
        %971 = vperm.xlu0 %970, %v965
        %v972 = vpop.permute.xlu0 %971
        %975 = vset.pattern.permute.xlu0 0
        %976 = vperm.xlu0 %975, %v966
        %v977 = vpop.permute.xlu0 %976
        %980 = vset.pattern.permute.xlu0 0
        %981 = vperm.xlu0 %980, %v967
        %v982 = vpop.permute.xlu0 %981
        %985 = vset.pattern.permute.xlu0 0
        %986 = vperm.xlu0 %985, %v968
        %v987 = vpop.permute.xlu0 %986
        %v990 = vsel %vm833, %v960, 0
        %v993 = vsel %vm833, %v961, 0
        %v996 = vsel %vm833, %v962, 0
        %v999 = vsel %vm833, %v963, 0
        %v1002 = vsel %vm833, %v789, 0
        %v1005 = vsel %vm833, %v790, 0
        %v1008 = vsel %vm833, %v791, 0
        %v1011 = vsel %vm833, %v792, 0
        %v1014 = vsel %vm833, %v793, 0
        %v1017 = vsel %vm833, %v794, 0
        %v1020 = vsel %vm833, %v795, 0
        %v1023 = vsel %vm833, %v796, 0
        %1025 = vmatprep.subr.mxu0 0.0
        %1026 = vmatpush1.xpose.msra.mxu0 %v1002
        %1027 = vmatprep.subr.mxu0 0.0
        %1028 = vmatpush1.xpose.msra.mxu0 %v1005
        %1029 = vmatprep.subr.mxu0 0.0
        %1030 = vmatpush1.xpose.msra.mxu0 %v1008
        %1031 = vmatprep.subr.mxu0 0.0
        %1032 = vmatpush1.xpose.msra.mxu0 %v1011
        %1033 = vmatprep.subr.mxu0 0.0
        %1034 = vmatpush1.xpose.msra.mxu0 %v1014
        %1035 = vmatprep.subr.mxu0 0.0
        %1036 = vmatpush1.xpose.msra.mxu0 %v1017
        %1037 = vmatprep.subr.mxu0 0.0
        %1038 = vmatpush1.xpose.msra.mxu0 %v1020
        %1039 = vmatprep.subr.mxu0 0.0
        %1040 = vmatpush1.xpose.msra.mxu0 %v1023
        %1041 = vmatprep.subr.mxu0 0.0
        %1042 = vmatpush1.xpose.msra.mxu0 0.0
        %1043 = vmatprep.subr.mxu0 0.0
        %1044 = vmatpush1.xpose.msra.mxu0 0.0
        %1045 = vmatprep.subr.mxu0 0.0
        %1046 = vmatpush1.xpose.msra.mxu0 0.0
        %1047 = vmatprep.subr.mxu0 0.0
        %1048 = vmatpush1.xpose.msra.mxu0 0.0
        %1049 = vmatprep.subr.mxu0 0.0
        %1050 = vmatpush1.xpose.msra.mxu0 0.0
        %1051 = vmatprep.subr.mxu0 0.0
        %1052 = vmatpush1.xpose.msra.mxu0 0.0
        %1053 = vmatprep.subr.mxu0 0.0
        %1054 = vmatpush1.xpose.msra.mxu0 0.0
        %1055 = vmatprep.subr.mxu0 0.0
        %1056 = vmatpush1.xpose.msra.mxu0 0.0
        %1057 = vmatprep.subr.mxu0 0.0
        %1058 = vmatpush1.xpose.msra.mxu0 0.0
        %1059 = vmatprep.subr.mxu0 0.0
        %1060 = vmatpush1.xpose.msra.mxu0 0.0
        %1061 = vmatprep.subr.mxu0 0.0
        %1062 = vmatpush1.xpose.msra.mxu0 0.0
        %1063 = vmatprep.subr.mxu0 0.0
        %1064 = vmatpush1.xpose.msra.mxu0 0.0
        %1065 = vmatprep.subr.mxu0 0.0
        %1066 = vmatpush1.xpose.msra.mxu0 0.0
        %1067 = vmatprep.subr.mxu0 0.0
        %1068 = vmatpush1.xpose.msra.mxu0 0.0
        %1069 = vmatprep.subr.mxu0 0.0
        %1070 = vmatpush1.xpose.msra.mxu0 0.0
        %1071 = vmatprep.subr.mxu0 0.0
        %1072 = vmatpush1.xpose.msra.mxu0 0.0
        %1073 = vmatprep.subr.mxu0 0.0
        %1074 = vmatpush1.xpose.msra.mxu0 0.0
        %1075 = vmatprep.subr.mxu0 0.0
        %1076 = vmatpush1.xpose.msra.mxu0 0.0
        %1077 = vmatprep.subr.mxu0 0.0
        %1078 = vmatpush1.xpose.msra.mxu0 0.0
        %1079 = vmatprep.subr.mxu0 0.0
        %1080 = vmatpush1.xpose.msra.mxu0 0.0
        %1081 = vmatprep.subr.mxu0 0.0
        %1082 = vmatpush1.xpose.msra.mxu0 0.0
        %1083 = vmatprep.subr.mxu0 0.0
        %1084 = vmatpush1.xpose.msra.mxu0 0.0
        %1085 = vmatprep.subr.mxu0 0.0
        %1086 = vmatpush1.xpose.msra.mxu0 0.0
        %1087 = vmatprep.subr.mxu0 0.0
        %1088 = vmatpush1.xpose.msra.mxu0 0.0
        %1089 = vmatprep.mubr.f32.mxu0 0.0
        %1090 = vmatmul.mubr.f32.gmra.mrb[0].mxu0 %v990
        %v1091 = vpop.f32.mrb[0].mxu0
        %v1092 = vadd.f32 %v972, %v1091
        %v1093 = vpop.f32.mrb[0].mxu0
        %1094 = vmatprep.mubr.f32.mxu0 0.0
        %1095 = vmatmul.mubr.f32.gmra.mrb[0].mxu0 %v993
        %v1096 = vpop.f32.mrb[0].mxu0
        %v1097 = vadd.f32 %v977, %v1096
        %v1098 = vpop.f32.mrb[0].mxu0
        %1099 = vmatprep.mubr.f32.mxu0 0.0
        %1100 = vmatmul.mubr.f32.gmra.mrb[0].mxu0 %v996
        %v1101 = vpop.f32.mrb[0].mxu0
        %v1102 = vadd.f32 %v982, %v1101
        %v1103 = vpop.f32.mrb[0].mxu0
        %1104 = vmatprep.mubr.f32.mxu0 0.0
        %1105 = vmatmul.mubr.f32.gmra.mrb[0].mxu0 %v999
        %v1106 = vpop.f32.mrb[0].mxu0
        %v1107 = vadd.f32 %v987, %v1106
        %v1108 = vpop.f32.mrb[0].mxu0
        %1109 = vdwg.mxu0
        %s1110 = scalar_lea.vmem [#allocation9], 64
        %v1111 = vld [vmem:[%s1110] sm:$0xff]
        %v1112 = vld [vmem:[%s1110 + $0x8] sm:$0xff]
        %v1113 = vld [vmem:[%s1110 + $0x10] sm:$0xff]
        %v1114 = vld [vmem:[%s1110 + $0x18] sm:$0xff]
        %s1115 = scalar_lea.vmem %s5, 64
        %v1116 = vld [vmem:[%s1115] sm:$0xff]
        %v1117 = vld [vmem:[%s1115 + $0x8] sm:$0xff]
        %v1118 = vld [vmem:[%s1115 + $0x10] sm:$0xff]
        %v1119 = vld [vmem:[%s1115 + $0x18] sm:$0xff]
        %1121 = vset.pattern.permute.xlu0 0
        %1122 = vperm.xlu0 %1121, %v1116
        %v1123 = vpop.permute.xlu0 %1122
        %1126 = vset.pattern.permute.xlu0 0
        %1127 = vperm.xlu0 %1126, %v1117
        %v1128 = vpop.permute.xlu0 %1127
        %1131 = vset.pattern.permute.xlu0 0
        %1132 = vperm.xlu0 %1131, %v1118
        %v1133 = vpop.permute.xlu0 %1132
        %1136 = vset.pattern.permute.xlu0 0
        %1137 = vperm.xlu0 %1136, %v1119
        %v1138 = vpop.permute.xlu0 %1137
        %v1141 = vsel %vm833, %v1111, 0
        %v1144 = vsel %vm833, %v1112, 0
        %v1147 = vsel %vm833, %v1113, 0
        %v1150 = vsel %vm833, %v1114, 0
        %v1153 = vsel %vm833, %v797, 0
        %v1156 = vsel %vm833, %v798, 0
        %v1159 = vsel %vm833, %v799, 0
        %v1162 = vsel %vm833, %v800, 0
        %v1165 = vsel %vm833, %v801, 0
        %v1168 = vsel %vm833, %v802, 0
        %v1171 = vsel %vm833, %v803, 0
        %v1174 = vsel %vm833, %v804, 0
        %1176 = vmatprep.subr.mxu0 0.0
        %1177 = vmatpush1.xpose.msra.mxu0 %v1153
        %1178 = vmatprep.subr.mxu0 0.0
        %1179 = vmatpush1.xpose.msra.mxu0 %v1156
        %1180 = vmatprep.subr.mxu0 0.0
        %1181 = vmatpush1.xpose.msra.mxu0 %v1159
        %1182 = vmatprep.subr.mxu0 0.0
        %1183 = vmatpush1.xpose.msra.mxu0 %v1162
        %1184 = vmatprep.subr.mxu0 0.0
        %1185 = vmatpush1.xpose.msra.mxu0 %v1165
        %1186 = vmatprep.subr.mxu0 0.0
        %1187 = vmatpush1.xpose.msra.mxu0 %v1168
        %1188 = vmatprep.subr.mxu0 0.0
        %1189 = vmatpush1.xpose.msra.mxu0 %v1171
        %1190 = vmatprep.subr.mxu0 0.0
        %1191 = vmatpush1.xpose.msra.mxu0 %v1174
        %1192 = vmatprep.subr.mxu0 0.0
        %1193 = vmatpush1.xpose.msra.mxu0 0.0
        %1194 = vmatprep.subr.mxu0 0.0
        %1195 = vmatpush1.xpose.msra.mxu0 0.0
        %1196 = vmatprep.subr.mxu0 0.0
        %1197 = vmatpush1.xpose.msra.mxu0 0.0
        %1198 = vmatprep.subr.mxu0 0.0
        %1199 = vmatpush1.xpose.msra.mxu0 0.0
        %1200 = vmatprep.subr.mxu0 0.0
        %1201 = vmatpush1.xpose.msra.mxu0 0.0
        %1202 = vmatprep.subr.mxu0 0.0
        %1203 = vmatpush1.xpose.msra.mxu0 0.0
        %1204 = vmatprep.subr.mxu0 0.0
        %1205 = vmatpush1.xpose.msra.mxu0 0.0
        %1206 = vmatprep.subr.mxu0 0.0
        %1207 = vmatpush1.xpose.msra.mxu0 0.0
        %1208 = vmatprep.subr.mxu0 0.0
        %1209 = vmatpush1.xpose.msra.mxu0 0.0
        %1210 = vmatprep.subr.mxu0 0.0
        %1211 = vmatpush1.xpose.msra.mxu0 0.0
        %1212 = vmatprep.subr.mxu0 0.0
        %1213 = vmatpush1.xpose.msra.mxu0 0.0
        %1214 = vmatprep.subr.mxu0 0.0
        %1215 = vmatpush1.xpose.msra.mxu0 0.0
        %1216 = vmatprep.subr.mxu0 0.0
        %1217 = vmatpush1.xpose.msra.mxu0 0.0
        %1218 = vmatprep.subr.mxu0 0.0
        %1219 = vmatpush1.xpose.msra.mxu0 0.0
        %1220 = vmatprep.subr.mxu0 0.0
        %1221 = vmatpush1.xpose.msra.mxu0 0.0
        %1222 = vmatprep.subr.mxu0 0.0
        %1223 = vmatpush1.xpose.msra.mxu0 0.0
        %1224 = vmatprep.subr.mxu0 0.0
        %1225 = vmatpush1.xpose.msra.mxu0 0.0
        %1226 = vmatprep.subr.mxu0 0.0
        %1227 = vmatpush1.xpose.msra.mxu0 0.0
        %1228 = vmatprep.subr.mxu0 0.0
        %1229 = vmatpush1.xpose.msra.mxu0 0.0
        %1230 = vmatprep.subr.mxu0 0.0
        %1231 = vmatpush1.xpose.msra.mxu0 0.0
        %1232 = vmatprep.subr.mxu0 0.0
        %1233 = vmatpush1.xpose.msra.mxu0 0.0
        %1234 = vmatprep.subr.mxu0 0.0
        %1235 = vmatpush1.xpose.msra.mxu0 0.0
        %1236 = vmatprep.subr.mxu0 0.0
        %1237 = vmatpush1.xpose.msra.mxu0 0.0
        %1238 = vmatprep.subr.mxu0 0.0
        %1239 = vmatpush1.xpose.msra.mxu0 0.0
        %1240 = vmatprep.mubr.f32.mxu0 0.0
        %1241 = vmatmul.mubr.f32.gmra.mrb[0].mxu0 %v1141
        %v1242 = vpop.f32.mrb[0].mxu0
        %v1243 = vadd.f32 %v1123, %v1242
        %v1244 = vpop.f32.mrb[0].mxu0
        %1245 = vmatprep.mubr.f32.mxu0 0.0
        %1246 = vmatmul.mubr.f32.gmra.mrb[0].mxu0 %v1144
        %v1247 = vpop.f32.mrb[0].mxu0
        %v1248 = vadd.f32 %v1128, %v1247
        %v1249 = vpop.f32.mrb[0].mxu0
        %1250 = vmatprep.mubr.f32.mxu0 0.0
        %1251 = vmatmul.mubr.f32.gmra.mrb[0].mxu0 %v1147
        %v1252 = vpop.f32.mrb[0].mxu0
        %v1253 = vadd.f32 %v1133, %v1252
        %v1254 = vpop.f32.mrb[0].mxu0
        %1255 = vmatprep.mubr.f32.mxu0 0.0
        %1256 = vmatmul.mubr.f32.gmra.mrb[0].mxu0 %v1150
        %v1257 = vpop.f32.mrb[0].mxu0
        %v1258 = vadd.f32 %v1138, %v1257
        %v1259 = vpop.f32.mrb[0].mxu0
        %1260 = vdwg.mxu0
        %v1261 = vld [vmem:[#allocation7] sm:$0xff]
        %v1262 = vld [vmem:[#allocation7 + $0x8] sm:$0xff]
        %v1263 = vld [vmem:[#allocation7 + $0x10] sm:$0xff]
        %v1264 = vld [vmem:[#allocation7 + $0x18] sm:$0xff]
        %v1265 = vld [vmem:[#allocation7 + $0x20] sm:$0xff]
        %v1266 = vld [vmem:[#allocation7 + $0x28] sm:$0xff]
        %v1267 = vld [vmem:[#allocation7 + $0x30] sm:$0xff]
        %v1268 = vld [vmem:[#allocation7 + $0x38] sm:$0xff]
        %1269 = vxpose.xlu0.b32.start [1/16] %v955, 128
        %1270 = vxpose.xlu0.b32.cont [2/16] 0.0, 128
        %1271 = vxpose.xlu0.b32.cont [3/16] 0.0, 128
        %1272 = vxpose.xlu0.b32.cont [4/16] 0.0, 128
        %1273 = vxpose.xlu0.b32.cont [5/16] 0.0, 128
        %1274 = vxpose.xlu0.b32.cont [6/16] 0.0, 128
        %1275 = vxpose.xlu0.b32.cont [7/16] 0.0, 128
        %1276 = vxpose.xlu0.b32.cont [8/16] 0.0, 128
        %1277 = vxpose.xlu0.b32.cont [9/16] 0.0, 128
        %1278 = vxpose.xlu0.b32.cont [10/16] 0.0, 128
        %1279 = vxpose.xlu0.b32.cont [11/16] 0.0, 128
        %1280 = vxpose.xlu0.b32.cont [12/16] 0.0, 128
        %1281 = vxpose.xlu0.b32.cont [13/16] 0.0, 128
        %1282 = vxpose.xlu0.b32.cont [14/16] 0.0, 128
        %1283 = vxpose.xlu0.b32.cont [15/16] 0.0, 128
        %1284 = vxpose.xlu0.b32.end [16/16] 0.0, 128
        %v1285 = vpop.trf.xlu0
        %v1286 = vpop.trf.xlu0
        %v1287 = vpop.trf.xlu0
        %v1288 = vpop.trf.xlu0
        %v1289 = vpop.trf.xlu0
        %v1290 = vpop.trf.xlu0
        %v1291 = vpop.trf.xlu0
        %v1292 = vpop.trf.xlu0
        %v1293 = vpop.trf.xlu0
        %v1294 = vpop.trf.xlu0
        %v1295 = vpop.trf.xlu0
        %v1296 = vpop.trf.xlu0
        %v1297 = vpop.trf.xlu0
        %v1298 = vpop.trf.xlu0
        %v1299 = vpop.trf.xlu0
        %v1300 = vpop.trf.xlu0
        %vm1301 = vcmask 64512
        %v1303 = vsel %vm1301, %v1285, 0
        %v1306 = vsel %vm1301, %v1286, 0
        %v1309 = vsel %vm1301, %v1287, 0
        %v1312 = vsel %vm1301, %v1288, 0
        %v1315 = vsel %vm1301, %v1289, 0
        %v1318 = vsel %vm1301, %v1290, 0
        %v1321 = vsel %vm1301, %v1291, 0
        %v1324 = vsel %vm1301, %v1292, 0
        %1326 = vmatprep.subr.mxu0 0.0
        %1327 = vmatpush1.msra.mxu0 %v1092
        %1328 = vmatprep.subr.mxu0 0.0
        %1329 = vmatpush1.msra.mxu0 0.0
        %1330 = vmatprep.subr.mxu0 0.0
        %1331 = vmatpush1.msra.mxu0 0.0
        %1332 = vmatprep.subr.mxu0 0.0
        %1333 = vmatpush1.msra.mxu0 0.0
        %1334 = vmatprep.subr.mxu0 0.0
        %1335 = vmatpush1.msra.mxu0 0.0
        %1336 = vmatprep.subr.mxu0 0.0
        %1337 = vmatpush1.msra.mxu0 0.0
        %1338 = vmatprep.subr.mxu0 0.0
        %1339 = vmatpush1.msra.mxu0 0.0
        %1340 = vmatprep.subr.mxu0 0.0
        %1341 = vmatpush1.msra.mxu0 0.0
        %1342 = vmatprep.subr.mxu0 0.0
        %1343 = vmatpush1.msra.mxu0 0.0
        %1344 = vmatprep.subr.mxu0 0.0
        %1345 = vmatpush1.msra.mxu0 0.0
        %1346 = vmatprep.subr.mxu0 0.0
        %1347 = vmatpush1.msra.mxu0 0.0
        %1348 = vmatprep.subr.mxu0 0.0
        %1349 = vmatpush1.msra.mxu0 0.0
        %1350 = vmatprep.subr.mxu0 0.0
        %1351 = vmatpush1.msra.mxu0 0.0
        %1352 = vmatprep.subr.mxu0 0.0
        %1353 = vmatpush1.msra.mxu0 0.0
        %1354 = vmatprep.subr.mxu0 0.0
        %1355 = vmatpush1.msra.mxu0 0.0
        %1356 = vmatprep.subr.mxu0 0.0
        %1357 = vmatpush1.msra.mxu0 0.0
        %1358 = vmatprep.subr.mxu0 0.0
        %1359 = vmatpush1.msra.mxu0 0.0
        %1360 = vmatprep.subr.mxu0 0.0
        %1361 = vmatpush1.msra.mxu0 0.0
        %1362 = vmatprep.subr.mxu0 0.0
        %1363 = vmatpush1.msra.mxu0 0.0
        %1364 = vmatprep.subr.mxu0 0.0
        %1365 = vmatpush1.msra.mxu0 0.0
        %1366 = vmatprep.subr.mxu0 0.0
        %1367 = vmatpush1.msra.mxu0 0.0
        %1368 = vmatprep.subr.mxu0 0.0
        %1369 = vmatpush1.msra.mxu0 0.0
        %1370 = vmatprep.subr.mxu0 0.0
        %1371 = vmatpush1.msra.mxu0 0.0
        %1372 = vmatprep.subr.mxu0 0.0
        %1373 = vmatpush1.msra.mxu0 0.0
        %1374 = vmatprep.subr.mxu0 0.0
        %1375 = vmatpush1.msra.mxu0 0.0
        %1376 = vmatprep.subr.mxu0 0.0
        %1377 = vmatpush1.msra.mxu0 0.0
        %1378 = vmatprep.subr.mxu0 0.0
        %1379 = vmatpush1.msra.mxu0 0.0
        %1380 = vmatprep.subr.mxu0 0.0
        %1381 = vmatpush1.msra.mxu0 0.0
        %1382 = vmatprep.subr.mxu0 0.0
        %1383 = vmatpush1.msra.mxu0 0.0
        %1384 = vmatprep.subr.mxu0 0.0
        %1385 = vmatpush1.msra.mxu0 0.0
        %1386 = vmatprep.subr.mxu0 0.0
        %1387 = vmatpush1.msra.mxu0 0.0
        %1388 = vmatprep.subr.mxu0 0.0
        %1389 = vmatpush1.msra.mxu0 0.0
        %1390 = vmatprep.mubr.f32.mxu0 0.0
        %1391 = vmatmul.mubr.f32.gmra.mrb[0].mxu0 %v1303
        %v1392 = vpop.f32.mrb[0].mxu0
        %v1393 = vadd.f32 %v1261, %v1392
        %v1394 = vpop.f32.mrb[0].mxu0
        %1395 = vmatprep.mubr.f32.mxu0 0.0
        %1396 = vmatmul.mubr.f32.gmra.mrb[0].mxu0 %v1306
        %v1397 = vpop.f32.mrb[0].mxu0
        %v1398 = vadd.f32 %v1262, %v1397
        %v1399 = vpop.f32.mrb[0].mxu0
        %1400 = vmatprep.mubr.f32.mxu0 0.0
        %1401 = vmatmul.mubr.f32.gmra.mrb[0].mxu0 %v1309
        %v1402 = vpop.f32.mrb[0].mxu0
        %v1403 = vadd.f32 %v1263, %v1402
        %v1404 = vpop.f32.mrb[0].mxu0
        %1405 = vmatprep.mubr.f32.mxu0 0.0
        %1406 = vmatmul.mubr.f32.gmra.mrb[0].mxu0 %v1312
        %v1407 = vpop.f32.mrb[0].mxu0
        %v1408 = vadd.f32 %v1264, %v1407
        %v1409 = vpop.f32.mrb[0].mxu0
        %1410 = vmatprep.mubr.f32.mxu0 0.0
        %1411 = vmatmul.mubr.f32.gmra.mrb[0].mxu0 %v1315
        %v1412 = vpop.f32.mrb[0].mxu0
        %v1413 = vadd.f32 %v1265, %v1412
        %v1414 = vpop.f32.mrb[0].mxu0
        %1415 = vmatprep.mubr.f32.mxu0 0.0
        %1416 = vmatmul.mubr.f32.gmra.mrb[0].mxu0 %v1318
        %v1417 = vpop.f32.mrb[0].mxu0
        %v1418 = vadd.f32 %v1266, %v1417
        %v1419 = vpop.f32.mrb[0].mxu0
        %1420 = vmatprep.mubr.f32.mxu0 0.0
        %1421 = vmatmul.mubr.f32.gmra.mrb[0].mxu0 %v1321
        %v1422 = vpop.f32.mrb[0].mxu0
        %v1423 = vadd.f32 %v1267, %v1422
        %v1424 = vpop.f32.mrb[0].mxu0
        %1425 = vmatprep.mubr.f32.mxu0 0.0
        %1426 = vmatmul.mubr.f32.gmra.mrb[0].mxu0 %v1324
        %v1427 = vpop.f32.mrb[0].mxu0
        %v1428 = vadd.f32 %v1268, %v1427
        %v1429 = vpop.f32.mrb[0].mxu0
        %1430 = vdwg.mxu0
        %1431 = vxpose.xlu0.b32.start [1/16] %v956, 128
        %1432 = vxpose.xlu0.b32.cont [2/16] 0.0, 128
        %1433 = vxpose.xlu0.b32.cont [3/16] 0.0, 128
        %1434 = vxpose.xlu0.b32.cont [4/16] 0.0, 128
        %1435 = vxpose.xlu0.b32.cont [5/16] 0.0, 128
        %1436 = vxpose.xlu0.b32.cont [6/16] 0.0, 128
        %1437 = vxpose.xlu0.b32.cont [7/16] 0.0, 128
        %1438 = vxpose.xlu0.b32.cont [8/16] 0.0, 128
        %1439 = vxpose.xlu0.b32.cont [9/16] 0.0, 128
        %1440 = vxpose.xlu0.b32.cont [10/16] 0.0, 128
        %1441 = vxpose.xlu0.b32.cont [11/16] 0.0, 128
        %1442 = vxpose.xlu0.b32.cont [12/16] 0.0, 128
        %1443 = vxpose.xlu0.b32.cont [13/16] 0.0, 128
        %1444 = vxpose.xlu0.b32.cont [14/16] 0.0, 128
        %1445 = vxpose.xlu0.b32.cont [15/16] 0.0, 128
        %1446 = vxpose.xlu0.b32.end [16/16] 0.0, 128
        %v1447 = vpop.trf.xlu0
        %v1448 = vpop.trf.xlu0
        %v1449 = vpop.trf.xlu0
        %v1450 = vpop.trf.xlu0
        %v1451 = vpop.trf.xlu0
        %v1452 = vpop.trf.xlu0
        %v1453 = vpop.trf.xlu0
        %v1454 = vpop.trf.xlu0
        %v1455 = vpop.trf.xlu0
        %v1456 = vpop.trf.xlu0
        %v1457 = vpop.trf.xlu0
        %v1458 = vpop.trf.xlu0
        %v1459 = vpop.trf.xlu0
        %v1460 = vpop.trf.xlu0
        %v1461 = vpop.trf.xlu0
        %v1462 = vpop.trf.xlu0
        %v1464 = vsel %vm1301, %v1447, 0
        %v1467 = vsel %vm1301, %v1448, 0
        %v1470 = vsel %vm1301, %v1449, 0
        %v1473 = vsel %vm1301, %v1450, 0
        %v1476 = vsel %vm1301, %v1451, 0
        %v1479 = vsel %vm1301, %v1452, 0
        %v1482 = vsel %vm1301, %v1453, 0
        %v1485 = vsel %vm1301, %v1454, 0
        %1487 = vmatprep.subr.mxu0 0.0
        %1488 = vmatpush1.msra.mxu0 %v1097
        %1489 = vmatprep.subr.mxu0 0.0
        %1490 = vmatpush1.msra.mxu0 0.0
        %1491 = vmatprep.subr.mxu0 0.0
        %1492 = vmatpush1.msra.mxu0 0.0
        %1493 = vmatprep.subr.mxu0 0.0
        %1494 = vmatpush1.msra.mxu0 0.0
        %1495 = vmatprep.subr.mxu0 0.0
        %1496 = vmatpush1.msra.mxu0 0.0
        %1497 = vmatprep.subr.mxu0 0.0
        %1498 = vmatpush1.msra.mxu0 0.0
        %1499 = vmatprep.subr.mxu0 0.0
        %1500 = vmatpush1.msra.mxu0 0.0
        %1501 = vmatprep.subr.mxu0 0.0
        %1502 = vmatpush1.msra.mxu0 0.0
        %1503 = vmatprep.subr.mxu0 0.0
        %1504 = vmatpush1.msra.mxu0 0.0
        %1505 = vmatprep.subr.mxu0 0.0
        %1506 = vmatpush1.msra.mxu0 0.0
        %1507 = vmatprep.subr.mxu0 0.0
        %1508 = vmatpush1.msra.mxu0 0.0
        %1509 = vmatprep.subr.mxu0 0.0
        %1510 = vmatpush1.msra.mxu0 0.0
        %1511 = vmatprep.subr.mxu0 0.0
        %1512 = vmatpush1.msra.mxu0 0.0
        %1513 = vmatprep.subr.mxu0 0.0
        %1514 = vmatpush1.msra.mxu0 0.0
        %1515 = vmatprep.subr.mxu0 0.0
        %1516 = vmatpush1.msra.mxu0 0.0
        %1517 = vmatprep.subr.mxu0 0.0
        %1518 = vmatpush1.msra.mxu0 0.0
        %1519 = vmatprep.subr.mxu0 0.0
        %1520 = vmatpush1.msra.mxu0 0.0
        %1521 = vmatprep.subr.mxu0 0.0
        %1522 = vmatpush1.msra.mxu0 0.0
        %1523 = vmatprep.subr.mxu0 0.0
        %1524 = vmatpush1.msra.mxu0 0.0
        %1525 = vmatprep.subr.mxu0 0.0
        %1526 = vmatpush1.msra.mxu0 0.0
        %1527 = vmatprep.subr.mxu0 0.0
        %1528 = vmatpush1.msra.mxu0 0.0
        %1529 = vmatprep.subr.mxu0 0.0
        %1530 = vmatpush1.msra.mxu0 0.0
        %1531 = vmatprep.subr.mxu0 0.0
        %1532 = vmatpush1.msra.mxu0 0.0
        %1533 = vmatprep.subr.mxu0 0.0
        %1534 = vmatpush1.msra.mxu0 0.0
        %1535 = vmatprep.subr.mxu0 0.0
        %1536 = vmatpush1.msra.mxu0 0.0
        %1537 = vmatprep.subr.mxu0 0.0
        %1538 = vmatpush1.msra.mxu0 0.0
        %1539 = vmatprep.subr.mxu0 0.0
        %1540 = vmatpush1.msra.mxu0 0.0
        %1541 = vmatprep.subr.mxu0 0.0
        %1542 = vmatpush1.msra.mxu0 0.0
        %1543 = vmatprep.subr.mxu0 0.0
        %1544 = vmatpush1.msra.mxu0 0.0
        %1545 = vmatprep.subr.mxu0 0.0
        %1546 = vmatpush1.msra.mxu0 0.0
        %1547 = vmatprep.subr.mxu0 0.0
        %1548 = vmatpush1.msra.mxu0 0.0
        %1549 = vmatprep.subr.mxu0 0.0
        %1550 = vmatpush1.msra.mxu0 0.0
        %1551 = vmatprep.mubr.f32.mxu0 0.0
        %1552 = vmatmul.mubr.f32.gmra.mrb[0].mxu0 %v1464
        %v1553 = vpop.f32.mrb[0].mxu0
        %v1554 = vadd.f32 %v1261, %v1553
        %v1555 = vpop.f32.mrb[0].mxu0
        %1556 = vmatprep.mubr.f32.mxu0 0.0
        %1557 = vmatmul.mubr.f32.gmra.mrb[0].mxu0 %v1467
        %v1558 = vpop.f32.mrb[0].mxu0
        %v1559 = vadd.f32 %v1262, %v1558
        %v1560 = vpop.f32.mrb[0].mxu0
        %1561 = vmatprep.mubr.f32.mxu0 0.0
        %1562 = vmatmul.mubr.f32.gmra.mrb[0].mxu0 %v1470
        %v1563 = vpop.f32.mrb[0].mxu0
        %v1564 = vadd.f32 %v1263, %v1563
        %v1565 = vpop.f32.mrb[0].mxu0
        %1566 = vmatprep.mubr.f32.mxu0 0.0
        %1567 = vmatmul.mubr.f32.gmra.mrb[0].mxu0 %v1473
        %v1568 = vpop.f32.mrb[0].mxu0
        %v1569 = vadd.f32 %v1264, %v1568
        %v1570 = vpop.f32.mrb[0].mxu0
        %1571 = vmatprep.mubr.f32.mxu0 0.0
        %1572 = vmatmul.mubr.f32.gmra.mrb[0].mxu0 %v1476
        %v1573 = vpop.f32.mrb[0].mxu0
        %v1574 = vadd.f32 %v1265, %v1573
        %v1575 = vpop.f32.mrb[0].mxu0
        %1576 = vmatprep.mubr.f32.mxu0 0.0
        %1577 = vmatmul.mubr.f32.gmra.mrb[0].mxu0 %v1479
        %v1578 = vpop.f32.mrb[0].mxu0
        %v1579 = vadd.f32 %v1266, %v1578
        %v1580 = vpop.f32.mrb[0].mxu0
        %1581 = vmatprep.mubr.f32.mxu0 0.0
        %1582 = vmatmul.mubr.f32.gmra.mrb[0].mxu0 %v1482
        %v1583 = vpop.f32.mrb[0].mxu0
        %v1584 = vadd.f32 %v1267, %v1583
        %v1585 = vpop.f32.mrb[0].mxu0
        %1586 = vmatprep.mubr.f32.mxu0 0.0
        %1587 = vmatmul.mubr.f32.gmra.mrb[0].mxu0 %v1485
        %v1588 = vpop.f32.mrb[0].mxu0
        %v1589 = vadd.f32 %v1268, %v1588
        %v1590 = vpop.f32.mrb[0].mxu0
        %1591 = vdwg.mxu0
        %1592 = vxpose.xlu0.b32.start [1/16] %v957, 128
        %1593 = vxpose.xlu0.b32.cont [2/16] 0.0, 128
        %1594 = vxpose.xlu0.b32.cont [3/16] 0.0, 128
        %1595 = vxpose.xlu0.b32.cont [4/16] 0.0, 128
        %1596 = vxpose.xlu0.b32.cont [5/16] 0.0, 128
        %1597 = vxpose.xlu0.b32.cont [6/16] 0.0, 128
        %1598 = vxpose.xlu0.b32.cont [7/16] 0.0, 128
        %1599 = vxpose.xlu0.b32.cont [8/16] 0.0, 128
        %1600 = vxpose.xlu0.b32.cont [9/16] 0.0, 128
        %1601 = vxpose.xlu0.b32.cont [10/16] 0.0, 128
        %1602 = vxpose.xlu0.b32.cont [11/16] 0.0, 128
        %1603 = vxpose.xlu0.b32.cont [12/16] 0.0, 128
        %1604 = vxpose.xlu0.b32.cont [13/16] 0.0, 128
        %1605 = vxpose.xlu0.b32.cont [14/16] 0.0, 128
        %1606 = vxpose.xlu0.b32.cont [15/16] 0.0, 128
        %1607 = vxpose.xlu0.b32.end [16/16] 0.0, 128
        %v1608 = vpop.trf.xlu0
        %v1609 = vpop.trf.xlu0
        %v1610 = vpop.trf.xlu0
        %v1611 = vpop.trf.xlu0
        %v1612 = vpop.trf.xlu0
        %v1613 = vpop.trf.xlu0
        %v1614 = vpop.trf.xlu0
        %v1615 = vpop.trf.xlu0
        %v1616 = vpop.trf.xlu0
        %v1617 = vpop.trf.xlu0
        %v1618 = vpop.trf.xlu0
        %v1619 = vpop.trf.xlu0
        %v1620 = vpop.trf.xlu0
        %v1621 = vpop.trf.xlu0
        %v1622 = vpop.trf.xlu0
        %v1623 = vpop.trf.xlu0
        %v1625 = vsel %vm1301, %v1608, 0
        %v1628 = vsel %vm1301, %v1609, 0
        %v1631 = vsel %vm1301, %v1610, 0
        %v1634 = vsel %vm1301, %v1611, 0
        %v1637 = vsel %vm1301, %v1612, 0
        %v1640 = vsel %vm1301, %v1613, 0
        %v1643 = vsel %vm1301, %v1614, 0
        %v1646 = vsel %vm1301, %v1615, 0
        %1648 = vmatprep.subr.mxu0 0.0
        %1649 = vmatpush1.msra.mxu0 %v1102
        %1650 = vmatprep.subr.mxu0 0.0
        %1651 = vmatpush1.msra.mxu0 0.0
        %1652 = vmatprep.subr.mxu0 0.0
        %1653 = vmatpush1.msra.mxu0 0.0
        %1654 = vmatprep.subr.mxu0 0.0
        %1655 = vmatpush1.msra.mxu0 0.0
        %1656 = vmatprep.subr.mxu0 0.0
        %1657 = vmatpush1.msra.mxu0 0.0
        %1658 = vmatprep.subr.mxu0 0.0
        %1659 = vmatpush1.msra.mxu0 0.0
        %1660 = vmatprep.subr.mxu0 0.0
        %1661 = vmatpush1.msra.mxu0 0.0
        %1662 = vmatprep.subr.mxu0 0.0
        %1663 = vmatpush1.msra.mxu0 0.0
        %1664 = vmatprep.subr.mxu0 0.0
        %1665 = vmatpush1.msra.mxu0 0.0
        %1666 = vmatprep.subr.mxu0 0.0
        %1667 = vmatpush1.msra.mxu0 0.0
        %1668 = vmatprep.subr.mxu0 0.0
        %1669 = vmatpush1.msra.mxu0 0.0
        %1670 = vmatprep.subr.mxu0 0.0
        %1671 = vmatpush1.msra.mxu0 0.0
        %1672 = vmatprep.subr.mxu0 0.0
        %1673 = vmatpush1.msra.mxu0 0.0
        %1674 = vmatprep.subr.mxu0 0.0
        %1675 = vmatpush1.msra.mxu0 0.0
        %1676 = vmatprep.subr.mxu0 0.0
        %1677 = vmatpush1.msra.mxu0 0.0
        %1678 = vmatprep.subr.mxu0 0.0
        %1679 = vmatpush1.msra.mxu0 0.0
        %1680 = vmatprep.subr.mxu0 0.0
        %1681 = vmatpush1.msra.mxu0 0.0
        %1682 = vmatprep.subr.mxu0 0.0
        %1683 = vmatpush1.msra.mxu0 0.0
        %1684 = vmatprep.subr.mxu0 0.0
        %1685 = vmatpush1.msra.mxu0 0.0
        %1686 = vmatprep.subr.mxu0 0.0
        %1687 = vmatpush1.msra.mxu0 0.0
        %1688 = vmatprep.subr.mxu0 0.0
        %1689 = vmatpush1.msra.mxu0 0.0
        %1690 = vmatprep.subr.mxu0 0.0
        %1691 = vmatpush1.msra.mxu0 0.0
        %1692 = vmatprep.subr.mxu0 0.0
        %1693 = vmatpush1.msra.mxu0 0.0
        %1694 = vmatprep.subr.mxu0 0.0
        %1695 = vmatpush1.msra.mxu0 0.0
        %1696 = vmatprep.subr.mxu0 0.0
        %1697 = vmatpush1.msra.mxu0 0.0
        %1698 = vmatprep.subr.mxu0 0.0
        %1699 = vmatpush1.msra.mxu0 0.0
        %1700 = vmatprep.subr.mxu0 0.0
        %1701 = vmatpush1.msra.mxu0 0.0
        %1702 = vmatprep.subr.mxu0 0.0
        %1703 = vmatpush1.msra.mxu0 0.0
        %1704 = vmatprep.subr.mxu0 0.0
        %1705 = vmatpush1.msra.mxu0 0.0
        %1706 = vmatprep.subr.mxu0 0.0
        %1707 = vmatpush1.msra.mxu0 0.0
        %1708 = vmatprep.subr.mxu0 0.0
        %1709 = vmatpush1.msra.mxu0 0.0
        %1710 = vmatprep.subr.mxu0 0.0
        %1711 = vmatpush1.msra.mxu0 0.0
        %1712 = vmatprep.mubr.f32.mxu0 0.0
        %1713 = vmatmul.mubr.f32.gmra.mrb[0].mxu0 %v1625
        %v1714 = vpop.f32.mrb[0].mxu0
        %v1715 = vadd.f32 %v1261, %v1714
        %v1716 = vpop.f32.mrb[0].mxu0
        %1717 = vmatprep.mubr.f32.mxu0 0.0
        %1718 = vmatmul.mubr.f32.gmra.mrb[0].mxu0 %v1628
        %v1719 = vpop.f32.mrb[0].mxu0
        %v1720 = vadd.f32 %v1262, %v1719
        %v1721 = vpop.f32.mrb[0].mxu0
        %1722 = vmatprep.mubr.f32.mxu0 0.0
        %1723 = vmatmul.mubr.f32.gmra.mrb[0].mxu0 %v1631
        %v1724 = vpop.f32.mrb[0].mxu0
        %v1725 = vadd.f32 %v1263, %v1724
        %v1726 = vpop.f32.mrb[0].mxu0
        %1727 = vmatprep.mubr.f32.mxu0 0.0
        %1728 = vmatmul.mubr.f32.gmra.mrb[0].mxu0 %v1634
        %v1729 = vpop.f32.mrb[0].mxu0
        %v1730 = vadd.f32 %v1264, %v1729
        %v1731 = vpop.f32.mrb[0].mxu0
        %1732 = vmatprep.mubr.f32.mxu0 0.0
        %1733 = vmatmul.mubr.f32.gmra.mrb[0].mxu0 %v1637
        %v1734 = vpop.f32.mrb[0].mxu0
        %v1735 = vadd.f32 %v1265, %v1734
        %v1736 = vpop.f32.mrb[0].mxu0
        %1737 = vmatprep.mubr.f32.mxu0 0.0
        %1738 = vmatmul.mubr.f32.gmra.mrb[0].mxu0 %v1640
        %v1739 = vpop.f32.mrb[0].mxu0
        %v1740 = vadd.f32 %v1266, %v1739
        %v1741 = vpop.f32.mrb[0].mxu0
        %1742 = vmatprep.mubr.f32.mxu0 0.0
        %1743 = vmatmul.mubr.f32.gmra.mrb[0].mxu0 %v1643
        %v1744 = vpop.f32.mrb[0].mxu0
        %v1745 = vadd.f32 %v1267, %v1744
        %v1746 = vpop.f32.mrb[0].mxu0
        %1747 = vmatprep.mubr.f32.mxu0 0.0
        %1748 = vmatmul.mubr.f32.gmra.mrb[0].mxu0 %v1646
        %v1749 = vpop.f32.mrb[0].mxu0
        %v1750 = vadd.f32 %v1268, %v1749
        %v1751 = vpop.f32.mrb[0].mxu0
        %1752 = vdwg.mxu0
        %1753 = vxpose.xlu0.b32.start [1/16] %v958, 128
        %1754 = vxpose.xlu0.b32.cont [2/16] 0.0, 128
        %1755 = vxpose.xlu0.b32.cont [3/16] 0.0, 128
        %1756 = vxpose.xlu0.b32.cont [4/16] 0.0, 128
        %1757 = vxpose.xlu0.b32.cont [5/16] 0.0, 128
        %1758 = vxpose.xlu0.b32.cont [6/16] 0.0, 128
        %1759 = vxpose.xlu0.b32.cont [7/16] 0.0, 128
        %1760 = vxpose.xlu0.b32.cont [8/16] 0.0, 128
        %1761 = vxpose.xlu0.b32.cont [9/16] 0.0, 128
        %1762 = vxpose.xlu0.b32.cont [10/16] 0.0, 128
        %1763 = vxpose.xlu0.b32.cont [11/16] 0.0, 128
        %1764 = vxpose.xlu0.b32.cont [12/16] 0.0, 128
        %1765 = vxpose.xlu0.b32.cont [13/16] 0.0, 128
        %1766 = vxpose.xlu0.b32.cont [14/16] 0.0, 128
        %1767 = vxpose.xlu0.b32.cont [15/16] 0.0, 128
        %1768 = vxpose.xlu0.b32.end [16/16] 0.0, 128
        %v1769 = vpop.trf.xlu0
        %v1770 = vpop.trf.xlu0
        %v1771 = vpop.trf.xlu0
        %v1772 = vpop.trf.xlu0
        %v1773 = vpop.trf.xlu0
        %v1774 = vpop.trf.xlu0
        %v1775 = vpop.trf.xlu0
        %v1776 = vpop.trf.xlu0
        %v1777 = vpop.trf.xlu0
        %v1778 = vpop.trf.xlu0
        %v1779 = vpop.trf.xlu0
        %v1780 = vpop.trf.xlu0
        %v1781 = vpop.trf.xlu0
        %v1782 = vpop.trf.xlu0
        %v1783 = vpop.trf.xlu0
        %v1784 = vpop.trf.xlu0
        %v1786 = vsel %vm1301, %v1769, 0
        %v1789 = vsel %vm1301, %v1770, 0
        %v1792 = vsel %vm1301, %v1771, 0
        %v1795 = vsel %vm1301, %v1772, 0
        %v1798 = vsel %vm1301, %v1773, 0
        %v1801 = vsel %vm1301, %v1774, 0
        %v1804 = vsel %vm1301, %v1775, 0
        %v1807 = vsel %vm1301, %v1776, 0
        %1809 = vmatprep.subr.mxu0 0.0
        %1810 = vmatpush1.msra.mxu0 %v1107
        %1811 = vmatprep.subr.mxu0 0.0
        %1812 = vmatpush1.msra.mxu0 0.0
        %1813 = vmatprep.subr.mxu0 0.0
        %1814 = vmatpush1.msra.mxu0 0.0
        %1815 = vmatprep.subr.mxu0 0.0
        %1816 = vmatpush1.msra.mxu0 0.0
        %1817 = vmatprep.subr.mxu0 0.0
        %1818 = vmatpush1.msra.mxu0 0.0
        %1819 = vmatprep.subr.mxu0 0.0
        %1820 = vmatpush1.msra.mxu0 0.0
        %1821 = vmatprep.subr.mxu0 0.0
        %1822 = vmatpush1.msra.mxu0 0.0
        %1823 = vmatprep.subr.mxu0 0.0
        %1824 = vmatpush1.msra.mxu0 0.0
        %1825 = vmatprep.subr.mxu0 0.0
        %1826 = vmatpush1.msra.mxu0 0.0
        %1827 = vmatprep.subr.mxu0 0.0
        %1828 = vmatpush1.msra.mxu0 0.0
        %1829 = vmatprep.subr.mxu0 0.0
        %1830 = vmatpush1.msra.mxu0 0.0
        %1831 = vmatprep.subr.mxu0 0.0
        %1832 = vmatpush1.msra.mxu0 0.0
        %1833 = vmatprep.subr.mxu0 0.0
        %1834 = vmatpush1.msra.mxu0 0.0
        %1835 = vmatprep.subr.mxu0 0.0
        %1836 = vmatpush1.msra.mxu0 0.0
        %1837 = vmatprep.subr.mxu0 0.0
        %1838 = vmatpush1.msra.mxu0 0.0
        %1839 = vmatprep.subr.mxu0 0.0
        %1840 = vmatpush1.msra.mxu0 0.0
        %1841 = vmatprep.subr.mxu0 0.0
        %1842 = vmatpush1.msra.mxu0 0.0
        %1843 = vmatprep.subr.mxu0 0.0
        %1844 = vmatpush1.msra.mxu0 0.0
        %1845 = vmatprep.subr.mxu0 0.0
        %1846 = vmatpush1.msra.mxu0 0.0
        %1847 = vmatprep.subr.mxu0 0.0
        %1848 = vmatpush1.msra.mxu0 0.0
        %1849 = vmatprep.subr.mxu0 0.0
        %1850 = vmatpush1.msra.mxu0 0.0
        %1851 = vmatprep.subr.mxu0 0.0
        %1852 = vmatpush1.msra.mxu0 0.0
        %1853 = vmatprep.subr.mxu0 0.0
        %1854 = vmatpush1.msra.mxu0 0.0
        %1855 = vmatprep.subr.mxu0 0.0
        %1856 = vmatpush1.msra.mxu0 0.0
        %1857 = vmatprep.subr.mxu0 0.0
        %1858 = vmatpush1.msra.mxu0 0.0
        %1859 = vmatprep.subr.mxu0 0.0
        %1860 = vmatpush1.msra.mxu0 0.0
        %1861 = vmatprep.subr.mxu0 0.0
        %1862 = vmatpush1.msra.mxu0 0.0
        %1863 = vmatprep.subr.mxu0 0.0
        %1864 = vmatpush1.msra.mxu0 0.0
        %1865 = vmatprep.subr.mxu0 0.0
        %1866 = vmatpush1.msra.mxu0 0.0
        %1867 = vmatprep.subr.mxu0 0.0
        %1868 = vmatpush1.msra.mxu0 0.0
        %1869 = vmatprep.subr.mxu0 0.0
        %1870 = vmatpush1.msra.mxu0 0.0
        %1871 = vmatprep.subr.mxu0 0.0
        %1872 = vmatpush1.msra.mxu0 0.0
        %1873 = vmatprep.mubr.f32.mxu0 0.0
        %1874 = vmatmul.mubr.f32.gmra.mrb[0].mxu0 %v1786
        %v1875 = vpop.f32.mrb[0].mxu0
        %v1876 = vadd.f32 %v1261, %v1875
        %v1877 = vpop.f32.mrb[0].mxu0
        %1878 = vmatprep.mubr.f32.mxu0 0.0
        %1879 = vmatmul.mubr.f32.gmra.mrb[0].mxu0 %v1789
        %v1880 = vpop.f32.mrb[0].mxu0
        %v1881 = vadd.f32 %v1262, %v1880
        %v1882 = vpop.f32.mrb[0].mxu0
        %1883 = vmatprep.mubr.f32.mxu0 0.0
        %1884 = vmatmul.mubr.f32.gmra.mrb[0].mxu0 %v1792
        %v1885 = vpop.f32.mrb[0].mxu0
        %v1886 = vadd.f32 %v1263, %v1885
        %v1887 = vpop.f32.mrb[0].mxu0
        %1888 = vmatprep.mubr.f32.mxu0 0.0
        %1889 = vmatmul.mubr.f32.gmra.mrb[0].mxu0 %v1795
        %v1890 = vpop.f32.mrb[0].mxu0
        %v1891 = vadd.f32 %v1264, %v1890
        %v1892 = vpop.f32.mrb[0].mxu0
        %1893 = vmatprep.mubr.f32.mxu0 0.0
        %1894 = vmatmul.mubr.f32.gmra.mrb[0].mxu0 %v1798
        %v1895 = vpop.f32.mrb[0].mxu0
        %v1896 = vadd.f32 %v1265, %v1895
        %v1897 = vpop.f32.mrb[0].mxu0
        %1898 = vmatprep.mubr.f32.mxu0 0.0
        %1899 = vmatmul.mubr.f32.gmra.mrb[0].mxu0 %v1801
        %v1900 = vpop.f32.mrb[0].mxu0
        %v1901 = vadd.f32 %v1266, %v1900
        %v1902 = vpop.f32.mrb[0].mxu0
        %1903 = vmatprep.mubr.f32.mxu0 0.0
        %1904 = vmatmul.mubr.f32.gmra.mrb[0].mxu0 %v1804
        %v1905 = vpop.f32.mrb[0].mxu0
        %v1906 = vadd.f32 %v1267, %v1905
        %v1907 = vpop.f32.mrb[0].mxu0
        %1908 = vmatprep.mubr.f32.mxu0 0.0
        %1909 = vmatmul.mubr.f32.gmra.mrb[0].mxu0 %v1807
        %v1910 = vpop.f32.mrb[0].mxu0
        %v1911 = vadd.f32 %v1268, %v1910
        %v1912 = vpop.f32.mrb[0].mxu0
        %1913 = vdwg.mxu0
        %vm1914 = vcmask 523264
        %v1915 = vsel %vm1914, %v1393, -inf
        %1916 = vmax.xlane.f32.xlu0 %v1915
        %v1917 = vpop.xlane.xlu0 %1916
        %v1918 = vsel %vm1914, %v1398, -inf
        %1919 = vmax.xlane.f32.xlu0 %v1918
        %v1920 = vpop.xlane.xlu0 %1919
        %v1921 = vsel %vm1914, %v1403, -inf
        %1922 = vmax.xlane.f32.xlu0 %v1921
        %v1923 = vpop.xlane.xlu0 %1922
        %v1924 = vsel %vm1914, %v1408, -inf
        %1925 = vmax.xlane.f32.xlu0 %v1924
        %v1926 = vpop.xlane.xlu0 %1925
        %v1927 = vsel %vm1914, %v1413, -inf
        %1928 = vmax.xlane.f32.xlu0 %v1927
        %v1929 = vpop.xlane.xlu0 %1928
        %v1930 = vsel %vm1914, %v1418, -inf
        %1931 = vmax.xlane.f32.xlu0 %v1930
        %v1932 = vpop.xlane.xlu0 %1931
        %v1933 = vsel %vm1914, %v1423, -inf
        %1934 = vmax.xlane.f32.xlu0 %v1933
        %v1935 = vpop.xlane.xlu0 %1934
        %v1936 = vsel %vm1914, %v1428, -inf
        %1937 = vmax.xlane.f32.xlu0 %v1936
        %v1938 = vpop.xlane.xlu0 %1937
        %v1939 = vsel %vm1914, %v1554, -inf
        %1940 = vmax.xlane.f32.xlu0 %v1939
        %v1941 = vpop.xlane.xlu0 %1940
        %v1942 = vsel %vm1914, %v1559, -inf
        %1943 = vmax.xlane.f32.xlu0 %v1942
        %v1944 = vpop.xlane.xlu0 %1943
        %v1945 = vsel %vm1914, %v1564, -inf
        %1946 = vmax.xlane.f32.xlu0 %v1945
        %v1947 = vpop.xlane.xlu0 %1946
        %v1948 = vsel %vm1914, %v1569, -inf
        %1949 = vmax.xlane.f32.xlu0 %v1948
        %v1950 = vpop.xlane.xlu0 %1949
        %v1951 = vsel %vm1914, %v1574, -inf
        %1952 = vmax.xlane.f32.xlu0 %v1951
        %v1953 = vpop.xlane.xlu0 %1952
        %v1954 = vsel %vm1914, %v1579, -inf
        %1955 = vmax.xlane.f32.xlu0 %v1954
        %v1956 = vpop.xlane.xlu0 %1955
        %v1957 = vsel %vm1914, %v1584, -inf
        %1958 = vmax.xlane.f32.xlu0 %v1957
        %v1959 = vpop.xlane.xlu0 %1958
        %v1960 = vsel %vm1914, %v1589, -inf
        %1961 = vmax.xlane.f32.xlu0 %v1960
        %v1962 = vpop.xlane.xlu0 %1961
        %v1963 = vsel %vm1914, %v1715, -inf
        %1964 = vmax.xlane.f32.xlu0 %v1963
        %v1965 = vpop.xlane.xlu0 %1964
        %v1966 = vsel %vm1914, %v1720, -inf
        %1967 = vmax.xlane.f32.xlu0 %v1966
        %v1968 = vpop.xlane.xlu0 %1967
        %v1969 = vsel %vm1914, %v1725, -inf
        %1970 = vmax.xlane.f32.xlu0 %v1969
        %v1971 = vpop.xlane.xlu0 %1970
        %v1972 = vsel %vm1914, %v1730, -inf
        %1973 = vmax.xlane.f32.xlu0 %v1972
        %v1974 = vpop.xlane.xlu0 %1973
        %v1975 = vsel %vm1914, %v1735, -inf
        %1976 = vmax.xlane.f32.xlu0 %v1975
        %v1977 = vpop.xlane.xlu0 %1976
        %v1978 = vsel %vm1914, %v1740, -inf
        %1979 = vmax.xlane.f32.xlu0 %v1978
        %v1980 = vpop.xlane.xlu0 %1979
        %v1981 = vsel %vm1914, %v1745, -inf
        %1982 = vmax.xlane.f32.xlu0 %v1981
        %v1983 = vpop.xlane.xlu0 %1982
        %v1984 = vsel %vm1914, %v1750, -inf
        %1985 = vmax.xlane.f32.xlu0 %v1984
        %v1986 = vpop.xlane.xlu0 %1985
        %v1987 = vsel %vm1914, %v1876, -inf
        %1988 = vmax.xlane.f32.xlu0 %v1987
        %v1989 = vpop.xlane.xlu0 %1988
        %v1990 = vsel %vm1914, %v1881, -inf
        %1991 = vmax.xlane.f32.xlu0 %v1990
        %v1992 = vpop.xlane.xlu0 %1991
        %v1993 = vsel %vm1914, %v1886, -inf
        %1994 = vmax.xlane.f32.xlu0 %v1993
        %v1995 = vpop.xlane.xlu0 %1994
        %v1996 = vsel %vm1914, %v1891, -inf
        %1997 = vmax.xlane.f32.xlu0 %v1996
        %v1998 = vpop.xlane.xlu0 %1997
        %v1999 = vsel %vm1914, %v1896, -inf
        %2000 = vmax.xlane.f32.xlu0 %v1999
        %v2001 = vpop.xlane.xlu0 %2000
        %v2002 = vsel %vm1914, %v1901, -inf
        %2003 = vmax.xlane.f32.xlu0 %v2002
        %v2004 = vpop.xlane.xlu0 %2003
        %v2005 = vsel %vm1914, %v1906, -inf
        %2006 = vmax.xlane.f32.xlu0 %v2005
        %v2007 = vpop.xlane.xlu0 %2006
        %v2008 = vsel %vm1914, %v1911, -inf
        %2009 = vmax.xlane.f32.xlu0 %v2008
        %v2010 = vpop.xlane.xlu0 %2009
        %v2011 = vsub.f32 %v1393, %v1917
        %v2012 = vsub.f32 %v1398, %v1920
        %v2013 = vsub.f32 %v1403, %v1923
        %v2014 = vsub.f32 %v1408, %v1926
        %v2015 = vsub.f32 %v1413, %v1929
        %v2016 = vsub.f32 %v1418, %v1932
        %v2017 = vsub.f32 %v1423, %v1935
        %v2018 = vsub.f32 %v1428, %v1938
        %v2019 = vsub.f32 %v1554, %v1941
        %v2020 = vsub.f32 %v1559, %v1944
        %v2021 = vsub.f32 %v1564, %v1947
        %v2022 = vsub.f32 %v1569, %v1950
        %v2023 = vsub.f32 %v1574, %v1953
        %v2024 = vsub.f32 %v1579, %v1956
        %v2025 = vsub.f32 %v1584, %v1959
        %v2026 = vsub.f32 %v1589, %v1962
        %v2027 = vsub.f32 %v1715, %v1965
        %v2028 = vsub.f32 %v1720, %v1968
        %v2029 = vsub.f32 %v1725, %v1971
        %v2030 = vsub.f32 %v1730, %v1974
        %v2031 = vsub.f32 %v1735, %v1977
        %v2032 = vsub.f32 %v1740, %v1980
        %v2033 = vsub.f32 %v1745, %v1983
        %v2034 = vsub.f32 %v1750, %v1986
        %v2035 = vsub.f32 %v1876, %v1989
        %v2036 = vsub.f32 %v1881, %v1992
        %v2037 = vsub.f32 %v1886, %v1995
        %v2038 = vsub.f32 %v1891, %v1998
        %v2039 = vsub.f32 %v1896, %v2001
        %v2040 = vsub.f32 %v1901, %v2004
        %v2041 = vsub.f32 %v1906, %v2007
        %v2042 = vsub.f32 %v1911, %v2010
        %v2043 = vmul.f32 %v2011, 1.442695
        %v2044 = vpow.pop %v2043
        %v2045 = vmul.f32 %v2012, 1.442695
        %v2046 = vpow.pop %v2045
        %v2047 = vmul.f32 %v2013, 1.442695
        %v2048 = vpow.pop %v2047
        %v2049 = vmul.f32 %v2014, 1.442695
        %v2050 = vpow.pop %v2049
        %v2051 = vmul.f32 %v2015, 1.442695
        %v2052 = vpow.pop %v2051
        %v2053 = vmul.f32 %v2016, 1.442695
        %v2054 = vpow.pop %v2053
        %v2055 = vmul.f32 %v2017, 1.442695
        %v2056 = vpow.pop %v2055
        %v2057 = vmul.f32 %v2018, 1.442695
        %v2058 = vpow.pop %v2057
        %v2059 = vmul.f32 %v2019, 1.442695
        %v2060 = vpow.pop %v2059
        %v2061 = vmul.f32 %v2020, 1.442695
        %v2062 = vpow.pop %v2061
        %v2063 = vmul.f32 %v2021, 1.442695
        %v2064 = vpow.pop %v2063
        %v2065 = vmul.f32 %v2022, 1.442695
        %v2066 = vpow.pop %v2065
        %v2067 = vmul.f32 %v2023, 1.442695
        %v2068 = vpow.pop %v2067
        %v2069 = vmul.f32 %v2024, 1.442695
        %v2070 = vpow.pop %v2069
        %v2071 = vmul.f32 %v2025, 1.442695
        %v2072 = vpow.pop %v2071
        %v2073 = vmul.f32 %v2026, 1.442695
        %v2074 = vpow.pop %v2073
        %v2075 = vmul.f32 %v2027, 1.442695
        %v2076 = vpow.pop %v2075
        %v2077 = vmul.f32 %v2028, 1.442695
        %v2078 = vpow.pop %v2077
        %v2079 = vmul.f32 %v2029, 1.442695
        %v2080 = vpow.pop %v2079
        %v2081 = vmul.f32 %v2030, 1.442695
        %v2082 = vpow.pop %v2081
        %v2083 = vmul.f32 %v2031, 1.442695
        %v2084 = vpow.pop %v2083
        %v2085 = vmul.f32 %v2032, 1.442695
        %v2086 = vpow.pop %v2085
        %v2087 = vmul.f32 %v2033, 1.442695
        %v2088 = vpow.pop %v2087
        %v2089 = vmul.f32 %v2034, 1.442695
        %v2090 = vpow.pop %v2089
        %v2091 = vmul.f32 %v2035, 1.442695
        %v2092 = vpow.pop %v2091
        %v2093 = vmul.f32 %v2036, 1.442695
        %v2094 = vpow.pop %v2093
        %v2095 = vmul.f32 %v2037, 1.442695
        %v2096 = vpow.pop %v2095
        %v2097 = vmul.f32 %v2038, 1.442695
        %v2098 = vpow.pop %v2097
        %v2099 = vmul.f32 %v2039, 1.442695
        %v2100 = vpow.pop %v2099
        %v2101 = vmul.f32 %v2040, 1.442695
        %v2102 = vpow.pop %v2101
        %v2103 = vmul.f32 %v2041, 1.442695
        %v2104 = vpow.pop %v2103
        %v2105 = vmul.f32 %v2042, 1.442695
        %v2106 = vpow.pop %v2105
        %v2107 = vsel %vm1914, %v2044, 0.0
        %2108 = vadd.xlane.f32.xlu0 %v2107
        %v2109 = vpop.xlane.xlu0 %2108
        %v2110 = vsel %vm1914, %v2046, 0.0
        %2111 = vadd.xlane.f32.xlu0 %v2110
        %v2112 = vpop.xlane.xlu0 %2111
        %v2113 = vsel %vm1914, %v2048, 0.0
        %2114 = vadd.xlane.f32.xlu0 %v2113
        %v2115 = vpop.xlane.xlu0 %2114
        %v2116 = vsel %vm1914, %v2050, 0.0
        %2117 = vadd.xlane.f32.xlu0 %v2116
        %v2118 = vpop.xlane.xlu0 %2117
        %v2119 = vsel %vm1914, %v2052, 0.0
        %2120 = vadd.xlane.f32.xlu0 %v2119
        %v2121 = vpop.xlane.xlu0 %2120
        %v2122 = vsel %vm1914, %v2054, 0.0
        %2123 = vadd.xlane.f32.xlu0 %v2122
        %v2124 = vpop.xlane.xlu0 %2123
        %v2125 = vsel %vm1914, %v2056, 0.0
        %2126 = vadd.xlane.f32.xlu0 %v2125
        %v2127 = vpop.xlane.xlu0 %2126
        %v2128 = vsel %vm1914, %v2058, 0.0
        %2129 = vadd.xlane.f32.xlu0 %v2128
        %v2130 = vpop.xlane.xlu0 %2129
        %v2131 = vsel %vm1914, %v2060, 0.0
        %2132 = vadd.xlane.f32.xlu0 %v2131
        %v2133 = vpop.xlane.xlu0 %2132
        %v2134 = vsel %vm1914, %v2062, 0.0
        %2135 = vadd.xlane.f32.xlu0 %v2134
        %v2136 = vpop.xlane.xlu0 %2135
        %v2137 = vsel %vm1914, %v2064, 0.0
        %2138 = vadd.xlane.f32.xlu0 %v2137
        %v2139 = vpop.xlane.xlu0 %2138
        %v2140 = vsel %vm1914, %v2066, 0.0
        %2141 = vadd.xlane.f32.xlu0 %v2140
        %v2142 = vpop.xlane.xlu0 %2141
        %v2143 = vsel %vm1914, %v2068, 0.0
        %2144 = vadd.xlane.f32.xlu0 %v2143
        %v2145 = vpop.xlane.xlu0 %2144
        %v2146 = vsel %vm1914, %v2070, 0.0
        %2147 = vadd.xlane.f32.xlu0 %v2146
        %v2148 = vpop.xlane.xlu0 %2147
        %v2149 = vsel %vm1914, %v2072, 0.0
        %2150 = vadd.xlane.f32.xlu0 %v2149
        %v2151 = vpop.xlane.xlu0 %2150
        %v2152 = vsel %vm1914, %v2074, 0.0
        %2153 = vadd.xlane.f32.xlu0 %v2152
        %v2154 = vpop.xlane.xlu0 %2153
        %v2155 = vsel %vm1914, %v2076, 0.0
        %2156 = vadd.xlane.f32.xlu0 %v2155
        %v2157 = vpop.xlane.xlu0 %2156
        %v2158 = vsel %vm1914, %v2078, 0.0
        %2159 = vadd.xlane.f32.xlu0 %v2158
        %v2160 = vpop.xlane.xlu0 %2159
        %v2161 = vsel %vm1914, %v2080, 0.0
        %2162 = vadd.xlane.f32.xlu0 %v2161
        %v2163 = vpop.xlane.xlu0 %2162
        %v2164 = vsel %vm1914, %v2082, 0.0
        %2165 = vadd.xlane.f32.xlu0 %v2164
        %v2166 = vpop.xlane.xlu0 %2165
        %v2167 = vsel %vm1914, %v2084, 0.0
        %2168 = vadd.xlane.f32.xlu0 %v2167
        %v2169 = vpop.xlane.xlu0 %2168
        %v2170 = vsel %vm1914, %v2086, 0.0
        %2171 = vadd.xlane.f32.xlu0 %v2170
        %v2172 = vpop.xlane.xlu0 %2171
        %v2173 = vsel %vm1914, %v2088, 0.0
        %2174 = vadd.xlane.f32.xlu0 %v2173
        %v2175 = vpop.xlane.xlu0 %2174
        %v2176 = vsel %vm1914, %v2090, 0.0
        %2177 = vadd.xlane.f32.xlu0 %v2176
        %v2178 = vpop.xlane.xlu0 %2177
        %v2179 = vsel %vm1914, %v2092, 0.0
        %2180 = vadd.xlane.f32.xlu0 %v2179
        %v2181 = vpop.xlane.xlu0 %2180
        %v2182 = vsel %vm1914, %v2094, 0.0
        %2183 = vadd.xlane.f32.xlu0 %v2182
        %v2184 = vpop.xlane.xlu0 %2183
        %v2185 = vsel %vm1914, %v2096, 0.0
        %2186 = vadd.xlane.f32.xlu0 %v2185
        %v2187 = vpop.xlane.xlu0 %2186
        %v2188 = vsel %vm1914, %v2098, 0.0
        %2189 = vadd.xlane.f32.xlu0 %v2188
        %v2190 = vpop.xlane.xlu0 %2189
        %v2191 = vsel %vm1914, %v2100, 0.0
        %2192 = vadd.xlane.f32.xlu0 %v2191
        %v2193 = vpop.xlane.xlu0 %2192
        %v2194 = vsel %vm1914, %v2102, 0.0
        %2195 = vadd.xlane.f32.xlu0 %v2194
        %v2196 = vpop.xlane.xlu0 %2195
        %v2197 = vsel %vm1914, %v2104, 0.0
        %2198 = vadd.xlane.f32.xlu0 %v2197
        %v2199 = vpop.xlane.xlu0 %2198
        %v2200 = vsel %vm1914, %v2106, 0.0
        %2201 = vadd.xlane.f32.xlu0 %v2200
        %v2202 = vpop.xlane.xlu0 %2201
        %v2203 = vrcp.pop %v2109
        %v2204 = vrcp.pop %v2112
        %v2205 = vrcp.pop %v2115
        %v2206 = vrcp.pop %v2118
        %v2207 = vrcp.pop %v2121
        %v2208 = vrcp.pop %v2124
        %v2209 = vrcp.pop %v2127
        %v2210 = vrcp.pop %v2130
        %v2211 = vrcp.pop %v2133
        %v2212 = vrcp.pop %v2136
        %v2213 = vrcp.pop %v2139
        %v2214 = vrcp.pop %v2142
        %v2215 = vrcp.pop %v2145
        %v2216 = vrcp.pop %v2148
        %v2217 = vrcp.pop %v2151
        %v2218 = vrcp.pop %v2154
        %v2219 = vrcp.pop %v2157
        %v2220 = vrcp.pop %v2160
        %v2221 = vrcp.pop %v2163
        %v2222 = vrcp.pop %v2166
        %v2223 = vrcp.pop %v2169
        %v2224 = vrcp.pop %v2172
        %v2225 = vrcp.pop %v2175
        %v2226 = vrcp.pop %v2178
        %v2227 = vrcp.pop %v2181
        %v2228 = vrcp.pop %v2184
        %v2229 = vrcp.pop %v2187
        %v2230 = vrcp.pop %v2190
        %v2231 = vrcp.pop %v2193
        %v2232 = vrcp.pop %v2196
        %v2233 = vrcp.pop %v2199
        %v2234 = vrcp.pop %v2202
        %v2235 = vmul.f32 %v2044, %v2203
        %v2236 = vmul.f32 %v2046, %v2204
        %v2237 = vmul.f32 %v2048, %v2205
        %v2238 = vmul.f32 %v2050, %v2206
        %v2239 = vmul.f32 %v2052, %v2207
        %v2240 = vmul.f32 %v2054, %v2208
        %v2241 = vmul.f32 %v2056, %v2209
        %v2242 = vmul.f32 %v2058, %v2210
        %v2243 = vmul.f32 %v2060, %v2211
        %v2244 = vmul.f32 %v2062, %v2212
        %v2245 = vmul.f32 %v2064, %v2213
        %v2246 = vmul.f32 %v2066, %v2214
        %v2247 = vmul.f32 %v2068, %v2215
        %v2248 = vmul.f32 %v2070, %v2216
        %v2249 = vmul.f32 %v2072, %v2217
        %v2250 = vmul.f32 %v2074, %v2218
        %v2251 = vmul.f32 %v2076, %v2219
        %v2252 = vmul.f32 %v2078, %v2220
        %v2253 = vmul.f32 %v2080, %v2221
        %v2254 = vmul.f32 %v2082, %v2222
        %v2255 = vmul.f32 %v2084, %v2223
        %v2256 = vmul.f32 %v2086, %v2224
        %v2257 = vmul.f32 %v2088, %v2225
        %v2258 = vmul.f32 %v2090, %v2226
        %v2259 = vmul.f32 %v2092, %v2227
        %v2260 = vmul.f32 %v2094, %v2228
        %v2261 = vmul.f32 %v2096, %v2229
        %v2262 = vmul.f32 %v2098, %v2230
        %v2263 = vmul.f32 %v2100, %v2231
        %v2264 = vmul.f32 %v2102, %v2232
        %v2265 = vmul.f32 %v2104, %v2233
        %v2266 = vmul.f32 %v2106, %v2234
        %v2268 = vsel %vm1914, %v1243, 0
        %v2271 = vsel %vm1914, %v2235, 0
        %v2274 = vsel %vm1914, %v2236, 0
        %v2277 = vsel %vm1914, %v2237, 0
        %v2280 = vsel %vm1914, %v2238, 0
        %v2283 = vsel %vm1914, %v2239, 0
        %v2286 = vsel %vm1914, %v2240, 0
        %v2289 = vsel %vm1914, %v2241, 0
        %v2292 = vsel %vm1914, %v2242, 0
        %2294 = vmatprep.subr.mxu0 0.0
        %2295 = vmatpush1.xpose.msra.mxu0 %v2271
        %2296 = vmatprep.subr.mxu0 0.0
        %2297 = vmatpush1.xpose.msra.mxu0 %v2274
        %2298 = vmatprep.subr.mxu0 0.0
        %2299 = vmatpush1.xpose.msra.mxu0 %v2277
        %2300 = vmatprep.subr.mxu0 0.0
        %2301 = vmatpush1.xpose.msra.mxu0 %v2280
        %2302 = vmatprep.subr.mxu0 0.0
        %2303 = vmatpush1.xpose.msra.mxu0 %v2283
        %2304 = vmatprep.subr.mxu0 0.0
        %2305 = vmatpush1.xpose.msra.mxu0 %v2286
        %2306 = vmatprep.subr.mxu0 0.0
        %2307 = vmatpush1.xpose.msra.mxu0 %v2289
        %2308 = vmatprep.subr.mxu0 0.0
        %2309 = vmatpush1.xpose.msra.mxu0 %v2292
        %2310 = vmatprep.subr.mxu0 0.0
        %2311 = vmatpush1.xpose.msra.mxu0 0.0
        %2312 = vmatprep.subr.mxu0 0.0
        %2313 = vmatpush1.xpose.msra.mxu0 0.0
        %2314 = vmatprep.subr.mxu0 0.0
        %2315 = vmatpush1.xpose.msra.mxu0 0.0
        %2316 = vmatprep.subr.mxu0 0.0
        %2317 = vmatpush1.xpose.msra.mxu0 0.0
        %2318 = vmatprep.subr.mxu0 0.0
        %2319 = vmatpush1.xpose.msra.mxu0 0.0
        %2320 = vmatprep.subr.mxu0 0.0
        %2321 = vmatpush1.xpose.msra.mxu0 0.0
        %2322 = vmatprep.subr.mxu0 0.0
        %2323 = vmatpush1.xpose.msra.mxu0 0.0
        %2324 = vmatprep.subr.mxu0 0.0
        %2325 = vmatpush1.xpose.msra.mxu0 0.0
        %2326 = vmatprep.subr.mxu0 0.0
        %2327 = vmatpush1.xpose.msra.mxu0 0.0
        %2328 = vmatprep.subr.mxu0 0.0
        %2329 = vmatpush1.xpose.msra.mxu0 0.0
        %2330 = vmatprep.subr.mxu0 0.0
        %2331 = vmatpush1.xpose.msra.mxu0 0.0
        %2332 = vmatprep.subr.mxu0 0.0
        %2333 = vmatpush1.xpose.msra.mxu0 0.0
        %2334 = vmatprep.subr.mxu0 0.0
        %2335 = vmatpush1.xpose.msra.mxu0 0.0
        %2336 = vmatprep.subr.mxu0 0.0
        %2337 = vmatpush1.xpose.msra.mxu0 0.0
        %2338 = vmatprep.subr.mxu0 0.0
        %2339 = vmatpush1.xpose.msra.mxu0 0.0
        %2340 = vmatprep.subr.mxu0 0.0
        %2341 = vmatpush1.xpose.msra.mxu0 0.0
        %2342 = vmatprep.subr.mxu0 0.0
        %2343 = vmatpush1.xpose.msra.mxu0 0.0
        %2344 = vmatprep.subr.mxu0 0.0
        %2345 = vmatpush1.xpose.msra.mxu0 0.0
        %2346 = vmatprep.subr.mxu0 0.0
        %2347 = vmatpush1.xpose.msra.mxu0 0.0
        %2348 = vmatprep.subr.mxu0 0.0
        %2349 = vmatpush1.xpose.msra.mxu0 0.0
        %2350 = vmatprep.subr.mxu0 0.0
        %2351 = vmatpush1.xpose.msra.mxu0 0.0
        %2352 = vmatprep.subr.mxu0 0.0
        %2353 = vmatpush1.xpose.msra.mxu0 0.0
        %2354 = vmatprep.subr.mxu0 0.0
        %2355 = vmatpush1.xpose.msra.mxu0 0.0
        %2356 = vmatprep.subr.mxu0 0.0
        %2357 = vmatpush1.xpose.msra.mxu0 0.0
        %2358 = vmatprep.mubr.f32.mxu0 0.0
        %2359 = vmatmul.mubr.f32.gmra.mrb[0].mxu0 %v2268
        %v2360 = vpop.f32.mrb[0].mxu0
        %v2361 = vadd.f32 0.0, %v2360
        %v2362 = vpop.f32.mrb[0].mxu0
        %2363 = vdwg.mxu0
        %v2365 = vsel %vm1914, %v1248, 0
        %v2368 = vsel %vm1914, %v2243, 0
        %v2371 = vsel %vm1914, %v2244, 0
        %v2374 = vsel %vm1914, %v2245, 0
        %v2377 = vsel %vm1914, %v2246, 0
        %v2380 = vsel %vm1914, %v2247, 0
        %v2383 = vsel %vm1914, %v2248, 0
        %v2386 = vsel %vm1914, %v2249, 0
        %v2389 = vsel %vm1914, %v2250, 0
        %2391 = vmatprep.subr.mxu0 0.0
        %2392 = vmatpush1.xpose.msra.mxu0 %v2368
        %2393 = vmatprep.subr.mxu0 0.0
        %2394 = vmatpush1.xpose.msra.mxu0 %v2371
        %2395 = vmatprep.subr.mxu0 0.0
        %2396 = vmatpush1.xpose.msra.mxu0 %v2374
        %2397 = vmatprep.subr.mxu0 0.0
        %2398 = vmatpush1.xpose.msra.mxu0 %v2377
        %2399 = vmatprep.subr.mxu0 0.0
        %2400 = vmatpush1.xpose.msra.mxu0 %v2380
        %2401 = vmatprep.subr.mxu0 0.0
        %2402 = vmatpush1.xpose.msra.mxu0 %v2383
        %2403 = vmatprep.subr.mxu0 0.0
        %2404 = vmatpush1.xpose.msra.mxu0 %v2386
        %2405 = vmatprep.subr.mxu0 0.0
        %2406 = vmatpush1.xpose.msra.mxu0 %v2389
        %2407 = vmatprep.subr.mxu0 0.0
        %2408 = vmatpush1.xpose.msra.mxu0 0.0
        %2409 = vmatprep.subr.mxu0 0.0
        %2410 = vmatpush1.xpose.msra.mxu0 0.0
        %2411 = vmatprep.subr.mxu0 0.0
        %2412 = vmatpush1.xpose.msra.mxu0 0.0
        %2413 = vmatprep.subr.mxu0 0.0
        %2414 = vmatpush1.xpose.msra.mxu0 0.0
        %2415 = vmatprep.subr.mxu0 0.0
        %2416 = vmatpush1.xpose.msra.mxu0 0.0
        %2417 = vmatprep.subr.mxu0 0.0
        %2418 = vmatpush1.xpose.msra.mxu0 0.0
        %2419 = vmatprep.subr.mxu0 0.0
        %2420 = vmatpush1.xpose.msra.mxu0 0.0
        %2421 = vmatprep.subr.mxu0 0.0
        %2422 = vmatpush1.xpose.msra.mxu0 0.0
        %2423 = vmatprep.subr.mxu0 0.0
        %2424 = vmatpush1.xpose.msra.mxu0 0.0
        %2425 = vmatprep.subr.mxu0 0.0
        %2426 = vmatpush1.xpose.msra.mxu0 0.0
        %2427 = vmatprep.subr.mxu0 0.0
        %2428 = vmatpush1.xpose.msra.mxu0 0.0
        %2429 = vmatprep.subr.mxu0 0.0
        %2430 = vmatpush1.xpose.msra.mxu0 0.0
        %2431 = vmatprep.subr.mxu0 0.0
        %2432 = vmatpush1.xpose.msra.mxu0 0.0
        %2433 = vmatprep.subr.mxu0 0.0
        %2434 = vmatpush1.xpose.msra.mxu0 0.0
        %2435 = vmatprep.subr.mxu0 0.0
        %2436 = vmatpush1.xpose.msra.mxu0 0.0
        %2437 = vmatprep.subr.mxu0 0.0
        %2438 = vmatpush1.xpose.msra.mxu0 0.0
        %2439 = vmatprep.subr.mxu0 0.0
        %2440 = vmatpush1.xpose.msra.mxu0 0.0
        %2441 = vmatprep.subr.mxu0 0.0
        %2442 = vmatpush1.xpose.msra.mxu0 0.0
        %2443 = vmatprep.subr.mxu0 0.0
        %2444 = vmatpush1.xpose.msra.mxu0 0.0
        %2445 = vmatprep.subr.mxu0 0.0
        %2446 = vmatpush1.xpose.msra.mxu0 0.0
        %2447 = vmatprep.subr.mxu0 0.0
        %2448 = vmatpush1.xpose.msra.mxu0 0.0
        %2449 = vmatprep.subr.mxu0 0.0
        %2450 = vmatpush1.xpose.msra.mxu0 0.0
        %2451 = vmatprep.subr.mxu0 0.0
        %2452 = vmatpush1.xpose.msra.mxu0 0.0
        %2453 = vmatprep.subr.mxu0 0.0
        %2454 = vmatpush1.xpose.msra.mxu0 0.0
        %2455 = vmatprep.mubr.f32.mxu0 0.0
        %2456 = vmatmul.mubr.f32.gmra.mrb[0].mxu0 %v2365
        %v2457 = vpop.f32.mrb[0].mxu0
        %v2458 = vadd.f32 0.0, %v2457
        %v2459 = vpop.f32.mrb[0].mxu0
        %2460 = vdwg.mxu0
        %v2462 = vsel %vm1914, %v1253, 0
        %v2465 = vsel %vm1914, %v2251, 0
        %v2468 = vsel %vm1914, %v2252, 0
        %v2471 = vsel %vm1914, %v2253, 0
        %v2474 = vsel %vm1914, %v2254, 0
        %v2477 = vsel %vm1914, %v2255, 0
        %v2480 = vsel %vm1914, %v2256, 0
        %v2483 = vsel %vm1914, %v2257, 0
        %v2486 = vsel %vm1914, %v2258, 0
        %2488 = vmatprep.subr.mxu0 0.0
        %2489 = vmatpush1.xpose.msra.mxu0 %v2465
        %2490 = vmatprep.subr.mxu0 0.0
        %2491 = vmatpush1.xpose.msra.mxu0 %v2468
        %2492 = vmatprep.subr.mxu0 0.0
        %2493 = vmatpush1.xpose.msra.mxu0 %v2471
        %2494 = vmatprep.subr.mxu0 0.0
        %2495 = vmatpush1.xpose.msra.mxu0 %v2474
        %2496 = vmatprep.subr.mxu0 0.0
        %2497 = vmatpush1.xpose.msra.mxu0 %v2477
        %2498 = vmatprep.subr.mxu0 0.0
        %2499 = vmatpush1.xpose.msra.mxu0 %v2480
        %2500 = vmatprep.subr.mxu0 0.0
        %2501 = vmatpush1.xpose.msra.mxu0 %v2483
        %2502 = vmatprep.subr.mxu0 0.0
        %2503 = vmatpush1.xpose.msra.mxu0 %v2486
        %2504 = vmatprep.subr.mxu0 0.0
        %2505 = vmatpush1.xpose.msra.mxu0 0.0
        %2506 = vmatprep.subr.mxu0 0.0
        %2507 = vmatpush1.xpose.msra.mxu0 0.0
        %2508 = vmatprep.subr.mxu0 0.0
        %2509 = vmatpush1.xpose.msra.mxu0 0.0
        %2510 = vmatprep.subr.mxu0 0.0
        %2511 = vmatpush1.xpose.msra.mxu0 0.0
        %2512 = vmatprep.subr.mxu0 0.0
        %2513 = vmatpush1.xpose.msra.mxu0 0.0
        %2514 = vmatprep.subr.mxu0 0.0
        %2515 = vmatpush1.xpose.msra.mxu0 0.0
        %2516 = vmatprep.subr.mxu0 0.0
        %2517 = vmatpush1.xpose.msra.mxu0 0.0
        %2518 = vmatprep.subr.mxu0 0.0
        %2519 = vmatpush1.xpose.msra.mxu0 0.0
        %2520 = vmatprep.subr.mxu0 0.0
        %2521 = vmatpush1.xpose.msra.mxu0 0.0
        %2522 = vmatprep.subr.mxu0 0.0
        %2523 = vmatpush1.xpose.msra.mxu0 0.0
        %2524 = vmatprep.subr.mxu0 0.0
        %2525 = vmatpush1.xpose.msra.mxu0 0.0
        %2526 = vmatprep.subr.mxu0 0.0
        %2527 = vmatpush1.xpose.msra.mxu0 0.0
        %2528 = vmatprep.subr.mxu0 0.0
        %2529 = vmatpush1.xpose.msra.mxu0 0.0
        %2530 = vmatprep.subr.mxu0 0.0
        %2531 = vmatpush1.xpose.msra.mxu0 0.0
        %2532 = vmatprep.subr.mxu0 0.0
        %2533 = vmatpush1.xpose.msra.mxu0 0.0
        %2534 = vmatprep.subr.mxu0 0.0
        %2535 = vmatpush1.xpose.msra.mxu0 0.0
        %2536 = vmatprep.subr.mxu0 0.0
        %2537 = vmatpush1.xpose.msra.mxu0 0.0
        %2538 = vmatprep.subr.mxu0 0.0
        %2539 = vmatpush1.xpose.msra.mxu0 0.0
        %2540 = vmatprep.subr.mxu0 0.0
        %2541 = vmatpush1.xpose.msra.mxu0 0.0
        %2542 = vmatprep.subr.mxu0 0.0
        %2543 = vmatpush1.xpose.msra.mxu0 0.0
        %2544 = vmatprep.subr.mxu0 0.0
        %2545 = vmatpush1.xpose.msra.mxu0 0.0
        %2546 = vmatprep.subr.mxu0 0.0
        %2547 = vmatpush1.xpose.msra.mxu0 0.0
        %2548 = vmatprep.subr.mxu0 0.0
        %2549 = vmatpush1.xpose.msra.mxu0 0.0
        %2550 = vmatprep.subr.mxu0 0.0
        %2551 = vmatpush1.xpose.msra.mxu0 0.0
        %2552 = vmatprep.mubr.f32.mxu0 0.0
        %2553 = vmatmul.mubr.f32.gmra.mrb[0].mxu0 %v2462
        %v2554 = vpop.f32.mrb[0].mxu0
        %v2555 = vadd.f32 0.0, %v2554
        %v2556 = vpop.f32.mrb[0].mxu0
        %2557 = vdwg.mxu0
        %v2559 = vsel %vm1914, %v1258, 0
        %v2562 = vsel %vm1914, %v2259, 0
        %v2565 = vsel %vm1914, %v2260, 0
        %v2568 = vsel %vm1914, %v2261, 0
        %v2571 = vsel %vm1914, %v2262, 0
        %v2574 = vsel %vm1914, %v2263, 0
        %v2577 = vsel %vm1914, %v2264, 0
        %v2580 = vsel %vm1914, %v2265, 0
        %v2583 = vsel %vm1914, %v2266, 0
        %2585 = vmatprep.subr.mxu0 0.0
        %2586 = vmatpush1.xpose.msra.mxu0 %v2562
        %2587 = vmatprep.subr.mxu0 0.0
        %2588 = vmatpush1.xpose.msra.mxu0 %v2565
        %2589 = vmatprep.subr.mxu0 0.0
        %2590 = vmatpush1.xpose.msra.mxu0 %v2568
        %2591 = vmatprep.subr.mxu0 0.0
        %2592 = vmatpush1.xpose.msra.mxu0 %v2571
        %2593 = vmatprep.subr.mxu0 0.0
        %2594 = vmatpush1.xpose.msra.mxu0 %v2574
        %2595 = vmatprep.subr.mxu0 0.0
        %2596 = vmatpush1.xpose.msra.mxu0 %v2577
        %2597 = vmatprep.subr.mxu0 0.0
        %2598 = vmatpush1.xpose.msra.mxu0 %v2580
        %2599 = vmatprep.subr.mxu0 0.0
        %2600 = vmatpush1.xpose.msra.mxu0 %v2583
        %2601 = vmatprep.subr.mxu0 0.0
        %2602 = vmatpush1.xpose.msra.mxu0 0.0
        %2603 = vmatprep.subr.mxu0 0.0
        %2604 = vmatpush1.xpose.msra.mxu0 0.0
        %2605 = vmatprep.subr.mxu0 0.0
        %2606 = vmatpush1.xpose.msra.mxu0 0.0
        %2607 = vmatprep.subr.mxu0 0.0
        %2608 = vmatpush1.xpose.msra.mxu0 0.0
        %2609 = vmatprep.subr.mxu0 0.0
        %2610 = vmatpush1.xpose.msra.mxu0 0.0
        %2611 = vmatprep.subr.mxu0 0.0
        %2612 = vmatpush1.xpose.msra.mxu0 0.0
        %2613 = vmatprep.subr.mxu0 0.0
        %2614 = vmatpush1.xpose.msra.mxu0 0.0
        %2615 = vmatprep.subr.mxu0 0.0
        %2616 = vmatpush1.xpose.msra.mxu0 0.0
        %2617 = vmatprep.subr.mxu0 0.0
        %2618 = vmatpush1.xpose.msra.mxu0 0.0
        %2619 = vmatprep.subr.mxu0 0.0
        %2620 = vmatpush1.xpose.msra.mxu0 0.0
        %2621 = vmatprep.subr.mxu0 0.0
        %2622 = vmatpush1.xpose.msra.mxu0 0.0
        %2623 = vmatprep.subr.mxu0 0.0
        %2624 = vmatpush1.xpose.msra.mxu0 0.0
        %2625 = vmatprep.subr.mxu0 0.0
        %2626 = vmatpush1.xpose.msra.mxu0 0.0
        %2627 = vmatprep.subr.mxu0 0.0
        %2628 = vmatpush1.xpose.msra.mxu0 0.0
        %2629 = vmatprep.subr.mxu0 0.0
        %2630 = vmatpush1.xpose.msra.mxu0 0.0
        %2631 = vmatprep.subr.mxu0 0.0
        %2632 = vmatpush1.xpose.msra.mxu0 0.0
        %2633 = vmatprep.subr.mxu0 0.0
        %2634 = vmatpush1.xpose.msra.mxu0 0.0
        %2635 = vmatprep.subr.mxu0 0.0
        %2636 = vmatpush1.xpose.msra.mxu0 0.0
        %2637 = vmatprep.subr.mxu0 0.0
        %2638 = vmatpush1.xpose.msra.mxu0 0.0
        %2639 = vmatprep.subr.mxu0 0.0
        %2640 = vmatpush1.xpose.msra.mxu0 0.0
        %2641 = vmatprep.subr.mxu0 0.0
        %2642 = vmatpush1.xpose.msra.mxu0 0.0
        %2643 = vmatprep.subr.mxu0 0.0
        %2644 = vmatpush1.xpose.msra.mxu0 0.0
        %2645 = vmatprep.subr.mxu0 0.0
        %2646 = vmatpush1.xpose.msra.mxu0 0.0
        %2647 = vmatprep.subr.mxu0 0.0
        %2648 = vmatpush1.xpose.msra.mxu0 0.0
        %2649 = vmatprep.mubr.f32.mxu0 0.0
        %2650 = vmatmul.mubr.f32.gmra.mrb[0].mxu0 %v2559
        %v2651 = vpop.f32.mrb[0].mxu0
        %v2652 = vadd.f32 0.0, %v2651
        %v2653 = vpop.f32.mrb[0].mxu0
        %2654 = vdwg.mxu0
        %v2655 = vld [vmem:[#allocation10] sm:$0xff]
        %v2656 = vld [vmem:[#allocation10 + $0x8] sm:$0xff]
        %v2657 = vld [vmem:[#allocation10 + $0x10] sm:$0xff]
        %v2658 = vld [vmem:[#allocation10 + $0x18] sm:$0xff]
        %v2660 = vlaneseq
        %v2661 = vshrl.u32 %v2660, 7
        %v2662 = vsub.s32 0, %v2661
        %v2663 = vrot.slane %v774, %v2662
        %2665 = vxpose.xlu0.b32.start [1/16] %v2361, 128
        %2666 = vxpose.xlu0.b32.cont [2/16] %v2458, 128
        %2667 = vxpose.xlu0.b32.cont [3/16] %v2555, 128
        %2668 = vxpose.xlu0.b32.cont [4/16] %v2652, 128
        %2669 = vxpose.xlu0.b32.cont [5/16] 0.0, 128
        %2670 = vxpose.xlu0.b32.cont [6/16] 0.0, 128
        %2671 = vxpose.xlu0.b32.cont [7/16] 0.0, 128
        %2672 = vxpose.xlu0.b32.cont [8/16] 0.0, 128
        %2673 = vxpose.xlu0.b32.cont [9/16] 0.0, 128
        %2674 = vxpose.xlu0.b32.cont [10/16] 0.0, 128
        %2675 = vxpose.xlu0.b32.cont [11/16] 0.0, 128
        %2676 = vxpose.xlu0.b32.cont [12/16] 0.0, 128
        %2677 = vxpose.xlu0.b32.cont [13/16] 0.0, 128
        %2678 = vxpose.xlu0.b32.cont [14/16] 0.0, 128
        %2679 = vxpose.xlu0.b32.cont [15/16] 0.0, 128
        %2680 = vxpose.xlu0.b32.end [16/16] 0.0, 128
        %v2681 = vpop.trf.xlu0
        %v2682 = vpop.trf.xlu0
        %v2683 = vpop.trf.xlu0
        %v2684 = vpop.trf.xlu0
        %v2685 = vpop.trf.xlu0
        %v2686 = vpop.trf.xlu0
        %v2687 = vpop.trf.xlu0
        %v2688 = vpop.trf.xlu0
        %v2689 = vpop.trf.xlu0
        %v2690 = vpop.trf.xlu0
        %v2691 = vpop.trf.xlu0
        %v2692 = vpop.trf.xlu0
        %v2693 = vpop.trf.xlu0
        %v2694 = vpop.trf.xlu0
        %v2695 = vpop.trf.xlu0
        %v2696 = vpop.trf.xlu0
        %v2698 = vsel %vm833, %v2681, 0
        %v2701 = vsel %vm833, %v2682, 0
        %v2704 = vsel %vm833, %v2683, 0
        %v2707 = vsel %vm833, %v2684, 0
        %v2710 = vsel %vm833, %v2685, 0
        %v2713 = vsel %vm833, %v2686, 0
        %v2716 = vsel %vm833, %v2687, 0
        %v2719 = vsel %vm833, %v2688, 0
        %2721 = vmatprep.subr.mxu0 0.0
        %2722 = vmatpush1.msra.mxu0 %v2655
        %2723 = vmatprep.subr.mxu0 0.0
        %2724 = vmatpush1.msra.mxu0 %v2656
        %2725 = vmatprep.subr.mxu0 0.0
        %2726 = vmatpush1.msra.mxu0 %v2657
        %2727 = vmatprep.subr.mxu0 0.0
        %2728 = vmatpush1.msra.mxu0 %v2658
        %2729 = vmatprep.subr.mxu0 0.0
        %2730 = vmatpush1.msra.mxu0 0.0
        %2731 = vmatprep.subr.mxu0 0.0
        %2732 = vmatpush1.msra.mxu0 0.0
        %2733 = vmatprep.subr.mxu0 0.0
        %2734 = vmatpush1.msra.mxu0 0.0
        %2735 = vmatprep.subr.mxu0 0.0
        %2736 = vmatpush1.msra.mxu0 0.0
        %2737 = vmatprep.subr.mxu0 0.0
        %2738 = vmatpush1.msra.mxu0 0.0
        %2739 = vmatprep.subr.mxu0 0.0
        %2740 = vmatpush1.msra.mxu0 0.0
        %2741 = vmatprep.subr.mxu0 0.0
        %2742 = vmatpush1.msra.mxu0 0.0
        %2743 = vmatprep.subr.mxu0 0.0
        %2744 = vmatpush1.msra.mxu0 0.0
        %2745 = vmatprep.subr.mxu0 0.0
        %2746 = vmatpush1.msra.mxu0 0.0
        %2747 = vmatprep.subr.mxu0 0.0
        %2748 = vmatpush1.msra.mxu0 0.0
        %2749 = vmatprep.subr.mxu0 0.0
        %2750 = vmatpush1.msra.mxu0 0.0
        %2751 = vmatprep.subr.mxu0 0.0
        %2752 = vmatpush1.msra.mxu0 0.0
        %2753 = vmatprep.subr.mxu0 0.0
        %2754 = vmatpush1.msra.mxu0 0.0
        %2755 = vmatprep.subr.mxu0 0.0
        %2756 = vmatpush1.msra.mxu0 0.0
        %2757 = vmatprep.subr.mxu0 0.0
        %2758 = vmatpush1.msra.mxu0 0.0
        %2759 = vmatprep.subr.mxu0 0.0
        %2760 = vmatpush1.msra.mxu0 0.0
        %2761 = vmatprep.subr.mxu0 0.0
        %2762 = vmatpush1.msra.mxu0 0.0
        %2763 = vmatprep.subr.mxu0 0.0
        %2764 = vmatpush1.msra.mxu0 0.0
        %2765 = vmatprep.subr.mxu0 0.0
        %2766 = vmatpush1.msra.mxu0 0.0
        %2767 = vmatprep.subr.mxu0 0.0
        %2768 = vmatpush1.msra.mxu0 0.0
        %2769 = vmatprep.subr.mxu0 0.0
        %2770 = vmatpush1.msra.mxu0 0.0
        %2771 = vmatprep.subr.mxu0 0.0
        %2772 = vmatpush1.msra.mxu0 0.0
        %2773 = vmatprep.subr.mxu0 0.0
        %2774 = vmatpush1.msra.mxu0 0.0
        %2775 = vmatprep.subr.mxu0 0.0
        %2776 = vmatpush1.msra.mxu0 0.0
        %2777 = vmatprep.subr.mxu0 0.0
        %2778 = vmatpush1.msra.mxu0 0.0
        %2779 = vmatprep.subr.mxu0 0.0
        %2780 = vmatpush1.msra.mxu0 0.0
        %2781 = vmatprep.subr.mxu0 0.0
        %2782 = vmatpush1.msra.mxu0 0.0
        %2783 = vmatprep.subr.mxu0 0.0
        %2784 = vmatpush1.msra.mxu0 0.0
        %2785 = vmatprep.mubr.f32.mxu0 0.0
        %2786 = vmatmul.mubr.f32.gmra.mrb[0].mxu0 %v2698
        %v2787 = vpop.f32.mrb[0].mxu0
        %v2788 = vadd.f32 %v2663, %v2787
        %v2789 = vpop.f32.mrb[0].mxu0
        %2790 = vmatprep.mubr.f32.mxu0 0.0
        %2791 = vmatmul.mubr.f32.gmra.mrb[0].mxu0 %v2701
        %v2792 = vpop.f32.mrb[0].mxu0
        %v2793 = vadd.f32 %v2663, %v2792
        %v2794 = vpop.f32.mrb[0].mxu0
        %2795 = vmatprep.mubr.f32.mxu0 0.0
        %2796 = vmatmul.mubr.f32.gmra.mrb[0].mxu0 %v2704
        %v2797 = vpop.f32.mrb[0].mxu0
        %v2798 = vadd.f32 %v2663, %v2797
        %v2799 = vpop.f32.mrb[0].mxu0
        %2800 = vmatprep.mubr.f32.mxu0 0.0
        %2801 = vmatmul.mubr.f32.gmra.mrb[0].mxu0 %v2707
        %v2802 = vpop.f32.mrb[0].mxu0
        %v2803 = vadd.f32 %v2663, %v2802
        %v2804 = vpop.f32.mrb[0].mxu0
        %2805 = vmatprep.mubr.f32.mxu0 0.0
        %2806 = vmatmul.mubr.f32.gmra.mrb[0].mxu0 %v2710
        %v2807 = vpop.f32.mrb[0].mxu0
        %v2808 = vadd.f32 %v2663, %v2807
        %v2809 = vpop.f32.mrb[0].mxu0
        %2810 = vmatprep.mubr.f32.mxu0 0.0
        %2811 = vmatmul.mubr.f32.gmra.mrb[0].mxu0 %v2713
        %v2812 = vpop.f32.mrb[0].mxu0
        %v2813 = vadd.f32 %v2663, %v2812
        %v2814 = vpop.f32.mrb[0].mxu0
        %2815 = vmatprep.mubr.f32.mxu0 0.0
        %2816 = vmatmul.mubr.f32.gmra.mrb[0].mxu0 %v2716
        %v2817 = vpop.f32.mrb[0].mxu0
        %v2818 = vadd.f32 %v2663, %v2817
        %v2819 = vpop.f32.mrb[0].mxu0
        %2820 = vmatprep.mubr.f32.mxu0 0.0
        %2821 = vmatmul.mubr.f32.gmra.mrb[0].mxu0 %v2719
        %v2822 = vpop.f32.mrb[0].mxu0
        %v2823 = vadd.f32 %v2663, %v2822
        %v2824 = vpop.f32.mrb[0].mxu0
        %2825 = vdwg.mxu0
        %v2826 = vadd.f32 %v2788, %v781
        %v2827 = vadd.f32 %v2793, %v782
        %v2828 = vadd.f32 %v2798, %v783
        %v2829 = vadd.f32 %v2803, %v784
        %v2830 = vadd.f32 %v2808, %v785
        %v2831 = vadd.f32 %v2813, %v786
        %v2832 = vadd.f32 %v2818, %v787
        %v2833 = vadd.f32 %v2823, %v788
        %v2834 = vsel %vm833, %v2826, 0.0
        %2835 = vadd.xlane.f32.xlu0 %v2834
        %v2836 = vpop.xlane.xlu0 %2835
        %v2837 = vsel %vm833, %v2827, 0.0
        %2838 = vadd.xlane.f32.xlu0 %v2837
        %v2839 = vpop.xlane.xlu0 %2838
        %v2840 = vsel %vm833, %v2828, 0.0
        %2841 = vadd.xlane.f32.xlu0 %v2840
        %v2842 = vpop.xlane.xlu0 %2841
        %v2843 = vsel %vm833, %v2829, 0.0
        %2844 = vadd.xlane.f32.xlu0 %v2843
        %v2845 = vpop.xlane.xlu0 %2844
        %v2846 = vsel %vm833, %v2830, 0.0
        %2847 = vadd.xlane.f32.xlu0 %v2846
        %v2848 = vpop.xlane.xlu0 %2847
        %v2849 = vsel %vm833, %v2831, 0.0
        %2850 = vadd.xlane.f32.xlu0 %v2849
        %v2851 = vpop.xlane.xlu0 %2850
        %v2852 = vsel %vm833, %v2832, 0.0
        %2853 = vadd.xlane.f32.xlu0 %v2852
        %v2854 = vpop.xlane.xlu0 %2853
        %v2855 = vsel %vm833, %v2833, 0.0
        %2856 = vadd.xlane.f32.xlu0 %v2855
        %v2857 = vpop.xlane.xlu0 %2856
        %v2858 = vrcp.pop 32.0
        %v2859 = vmul.f32 %v2836, %v2858
        %v2860 = vmul.f32 %v2839, %v2858
        %v2861 = vmul.f32 %v2842, %v2858
        %v2862 = vmul.f32 %v2845, %v2858
        %v2863 = vmul.f32 %v2848, %v2858
        %v2864 = vmul.f32 %v2851, %v2858
        %v2865 = vmul.f32 %v2854, %v2858
        %v2866 = vmul.f32 %v2857, %v2858
        %v2867 = vsub.f32 %v2826, %v2859
        %v2868 = vsub.f32 %v2827, %v2860
        %v2869 = vsub.f32 %v2828, %v2861
        %v2870 = vsub.f32 %v2829, %v2862
        %v2871 = vsub.f32 %v2830, %v2863
        %v2872 = vsub.f32 %v2831, %v2864
        %v2873 = vsub.f32 %v2832, %v2865
        %v2874 = vsub.f32 %v2833, %v2866
        %v2875 = vmul.f32 %v2867, %v2867
        %v2876 = vmul.f32 %v2868, %v2868
        %v2877 = vmul.f32 %v2869, %v2869
        %v2878 = vmul.f32 %v2870, %v2870
        %v2879 = vmul.f32 %v2871, %v2871
        %v2880 = vmul.f32 %v2872, %v2872
        %v2881 = vmul.f32 %v2873, %v2873
        %v2882 = vmul.f32 %v2874, %v2874
        %v2883 = vsel %vm833, %v2875, 0.0
        %2884 = vadd.xlane.f32.xlu0 %v2883
        %v2885 = vpop.xlane.xlu0 %2884
        %v2886 = vsel %vm833, %v2876, 0.0
        %2887 = vadd.xlane.f32.xlu0 %v2886
        %v2888 = vpop.xlane.xlu0 %2887
        %v2889 = vsel %vm833, %v2877, 0.0
        %2890 = vadd.xlane.f32.xlu0 %v2889
        %v2891 = vpop.xlane.xlu0 %2890
        %v2892 = vsel %vm833, %v2878, 0.0
        %2893 = vadd.xlane.f32.xlu0 %v2892
        %v2894 = vpop.xlane.xlu0 %2893
        %v2895 = vsel %vm833, %v2879, 0.0
        %2896 = vadd.xlane.f32.xlu0 %v2895
        %v2897 = vpop.xlane.xlu0 %2896
        %v2898 = vsel %vm833, %v2880, 0.0
        %2899 = vadd.xlane.f32.xlu0 %v2898
        %v2900 = vpop.xlane.xlu0 %2899
        %v2901 = vsel %vm833, %v2881, 0.0
        %2902 = vadd.xlane.f32.xlu0 %v2901
        %v2903 = vpop.xlane.xlu0 %2902
        %v2904 = vsel %vm833, %v2882, 0.0
        %2905 = vadd.xlane.f32.xlu0 %v2904
        %v2906 = vpop.xlane.xlu0 %2905
        %v2907 = vmul.f32 %v2885, %v2858
        %v2908 = vmul.f32 %v2888, %v2858
        %v2909 = vmul.f32 %v2891, %v2858
        %v2910 = vmul.f32 %v2894, %v2858
        %v2911 = vmul.f32 %v2897, %v2858
        %v2912 = vmul.f32 %v2900, %v2858
        %v2913 = vmul.f32 %v2903, %v2858
        %v2914 = vmul.f32 %v2906, %v2858
        %v2915 = vadd.f32 %v2907, 1e-05
        %v2916 = vadd.f32 %v2908, 1e-05
        %v2917 = vadd.f32 %v2909, 1e-05
        %v2918 = vadd.f32 %v2910, 1e-05
        %v2919 = vadd.f32 %v2911, 1e-05
        %v2920 = vadd.f32 %v2912, 1e-05
        %v2921 = vadd.f32 %v2913, 1e-05
        %v2922 = vadd.f32 %v2914, 1e-05
        %v2923 = vrsqrt.pop %v2915
        %v2924 = vrsqrt.pop %v2916
        %v2925 = vrsqrt.pop %v2917
        %v2926 = vrsqrt.pop %v2918
        %v2927 = vrsqrt.pop %v2919
        %v2928 = vrsqrt.pop %v2920
        %v2929 = vrsqrt.pop %v2921
        %v2930 = vrsqrt.pop %v2922
        %v2931 = vmul.f32 %v2867, %v2923
        %v2932 = vmul.f32 %v2868, %v2924
        %v2933 = vmul.f32 %v2869, %v2925
        %v2934 = vmul.f32 %v2870, %v2926
        %v2935 = vmul.f32 %v2871, %v2927
        %v2936 = vmul.f32 %v2872, %v2928
        %v2937 = vmul.f32 %v2873, %v2929
        %v2938 = vmul.f32 %v2874, %v2930
        %v2940 = vlaneseq
        %v2941 = vshrl.u32 %v2940, 7
        %v2942 = vsub.s32 0, %v2941
        %v2943 = vrot.slane %v775, %v2942
        %v2945 = vmul.f32 %v2931, %v2943
        %v2946 = vmul.f32 %v2932, %v2943
        %v2947 = vmul.f32 %v2933, %v2943
        %v2948 = vmul.f32 %v2934, %v2943
        %v2949 = vmul.f32 %v2935, %v2943
        %v2950 = vmul.f32 %v2936, %v2943
        %v2951 = vmul.f32 %v2937, %v2943
        %v2952 = vmul.f32 %v2938, %v2943
        %v2954 = vlaneseq
        %v2955 = vshrl.u32 %v2954, 7
        %v2956 = vsub.s32 0, %v2955
        %v2957 = vrot.slane %v776, %v2956
        %v2959 = vadd.f32 %v2945, %v2957
        %v2960 = vadd.f32 %v2946, %v2957
        %v2961 = vadd.f32 %v2947, %v2957
        %v2962 = vadd.f32 %v2948, %v2957
        %v2963 = vadd.f32 %v2949, %v2957
        %v2964 = vadd.f32 %v2950, %v2957
        %v2965 = vadd.f32 %v2951, %v2957
        %v2966 = vadd.f32 %v2952, %v2957
        %v2967 = vld [vmem:[#allocation13] sm:$0xff]
        %v2968 = vld [vmem:[#allocation13 + $0x8] sm:$0xff]
        %v2969 = vld [vmem:[#allocation13 + $0x10] sm:$0xff]
        %v2970 = vld [vmem:[#allocation13 + $0x18] sm:$0xff]
        %v2972 = vlaneseq
        %v2973 = vshrl.u32 %v2972, 7
        %v2974 = vsub.s32 0, %v2973
        %v2975 = vrot.slane %v777, %v2974
        %v2978 = vsel %vm833, %v2959, 0
        %v2981 = vsel %vm833, %v2960, 0
        %v2984 = vsel %vm833, %v2961, 0
        %v2987 = vsel %vm833, %v2962, 0
        %v2990 = vsel %vm833, %v2963, 0
        %v2993 = vsel %vm833, %v2964, 0
        %v2996 = vsel %vm833, %v2965, 0
        %v2999 = vsel %vm833, %v2966, 0
        %3001 = vmatprep.subr.mxu0 0.0
        %3002 = vmatpush1.msra.mxu0 %v2967
        %3003 = vmatprep.subr.mxu0 0.0
        %3004 = vmatpush1.msra.mxu0 %v2968
        %3005 = vmatprep.subr.mxu0 0.0
        %3006 = vmatpush1.msra.mxu0 %v2969
        %3007 = vmatprep.subr.mxu0 0.0
        %3008 = vmatpush1.msra.mxu0 %v2970
        %3009 = vmatprep.subr.mxu0 0.0
        %3010 = vmatpush1.msra.mxu0 0.0
        %3011 = vmatprep.subr.mxu0 0.0
        %3012 = vmatpush1.msra.mxu0 0.0
        %3013 = vmatprep.subr.mxu0 0.0
        %3014 = vmatpush1.msra.mxu0 0.0
        %3015 = vmatprep.subr.mxu0 0.0
        %3016 = vmatpush1.msra.mxu0 0.0
        %3017 = vmatprep.subr.mxu0 0.0
        %3018 = vmatpush1.msra.mxu0 0.0
        %3019 = vmatprep.subr.mxu0 0.0
        %3020 = vmatpush1.msra.mxu0 0.0
        %3021 = vmatprep.subr.mxu0 0.0
        %3022 = vmatpush1.msra.mxu0 0.0
        %3023 = vmatprep.subr.mxu0 0.0
        %3024 = vmatpush1.msra.mxu0 0.0
        %3025 = vmatprep.subr.mxu0 0.0
        %3026 = vmatpush1.msra.mxu0 0.0
        %3027 = vmatprep.subr.mxu0 0.0
        %3028 = vmatpush1.msra.mxu0 0.0
        %3029 = vmatprep.subr.mxu0 0.0
        %3030 = vmatpush1.msra.mxu0 0.0
        %3031 = vmatprep.subr.mxu0 0.0
        %3032 = vmatpush1.msra.mxu0 0.0
        %3033 = vmatprep.subr.mxu0 0.0
        %3034 = vmatpush1.msra.mxu0 0.0
        %3035 = vmatprep.subr.mxu0 0.0
        %3036 = vmatpush1.msra.mxu0 0.0
        %3037 = vmatprep.subr.mxu0 0.0
        %3038 = vmatpush1.msra.mxu0 0.0
        %3039 = vmatprep.subr.mxu0 0.0
        %3040 = vmatpush1.msra.mxu0 0.0
        %3041 = vmatprep.subr.mxu0 0.0
        %3042 = vmatpush1.msra.mxu0 0.0
        %3043 = vmatprep.subr.mxu0 0.0
        %3044 = vmatpush1.msra.mxu0 0.0
        %3045 = vmatprep.subr.mxu0 0.0
        %3046 = vmatpush1.msra.mxu0 0.0
        %3047 = vmatprep.subr.mxu0 0.0
        %3048 = vmatpush1.msra.mxu0 0.0
        %3049 = vmatprep.subr.mxu0 0.0
        %3050 = vmatpush1.msra.mxu0 0.0
        %3051 = vmatprep.subr.mxu0 0.0
        %3052 = vmatpush1.msra.mxu0 0.0
        %3053 = vmatprep.subr.mxu0 0.0
        %3054 = vmatpush1.msra.mxu0 0.0
        %3055 = vmatprep.subr.mxu0 0.0
        %3056 = vmatpush1.msra.mxu0 0.0
        %3057 = vmatprep.subr.mxu0 0.0
        %3058 = vmatpush1.msra.mxu0 0.0
        %3059 = vmatprep.subr.mxu0 0.0
        %3060 = vmatpush1.msra.mxu0 0.0
        %3061 = vmatprep.subr.mxu0 0.0
        %3062 = vmatpush1.msra.mxu0 0.0
        %3063 = vmatprep.subr.mxu0 0.0
        %3064 = vmatpush1.msra.mxu0 0.0
        %3065 = vmatprep.mubr.f32.mxu0 0.0
        %3066 = vmatmul.mubr.f32.gmra.mrb[0].mxu0 %v2978
        %v3067 = vpop.f32.mrb[0].mxu0
        %v3068 = vadd.f32 %v2975, %v3067
        %v3069 = vpop.f32.mrb[0].mxu0
        %3070 = vmatprep.mubr.f32.mxu0 0.0
        %3071 = vmatmul.mubr.f32.gmra.mrb[0].mxu0 %v2981
        %v3072 = vpop.f32.mrb[0].mxu0
        %v3073 = vadd.f32 %v2975, %v3072
        %v3074 = vpop.f32.mrb[0].mxu0
        %3075 = vmatprep.mubr.f32.mxu0 0.0
        %3076 = vmatmul.mubr.f32.gmra.mrb[0].mxu0 %v2984
        %v3077 = vpop.f32.mrb[0].mxu0
        %v3078 = vadd.f32 %v2975, %v3077
        %v3079 = vpop.f32.mrb[0].mxu0
        %3080 = vmatprep.mubr.f32.mxu0 0.0
        %3081 = vmatmul.mubr.f32.gmra.mrb[0].mxu0 %v2987
        %v3082 = vpop.f32.mrb[0].mxu0
        %v3083 = vadd.f32 %v2975, %v3082
        %v3084 = vpop.f32.mrb[0].mxu0
        %3085 = vmatprep.mubr.f32.mxu0 0.0
        %3086 = vmatmul.mubr.f32.gmra.mrb[0].mxu0 %v2990
        %v3087 = vpop.f32.mrb[0].mxu0
        %v3088 = vadd.f32 %v2975, %v3087
        %v3089 = vpop.f32.mrb[0].mxu0
        %3090 = vmatprep.mubr.f32.mxu0 0.0
        %3091 = vmatmul.mubr.f32.gmra.mrb[0].mxu0 %v2993
        %v3092 = vpop.f32.mrb[0].mxu0
        %v3093 = vadd.f32 %v2975, %v3092
        %v3094 = vpop.f32.mrb[0].mxu0
        %3095 = vmatprep.mubr.f32.mxu0 0.0
        %3096 = vmatmul.mubr.f32.gmra.mrb[0].mxu0 %v2996
        %v3097 = vpop.f32.mrb[0].mxu0
        %v3098 = vadd.f32 %v2975, %v3097
        %v3099 = vpop.f32.mrb[0].mxu0
        %3100 = vmatprep.mubr.f32.mxu0 0.0
        %3101 = vmatmul.mubr.f32.gmra.mrb[0].mxu0 %v2999
        %v3102 = vpop.f32.mrb[0].mxu0
        %v3103 = vadd.f32 %v2975, %v3102
        %v3104 = vpop.f32.mrb[0].mxu0
        %3105 = vdwg.mxu0
        %v3106 = vmax.f32 %v3068, 0.0
        %v3107 = vmax.f32 %v3073, 0.0
        %v3108 = vmax.f32 %v3078, 0.0
        %v3109 = vmax.f32 %v3083, 0.0
        %v3110 = vmax.f32 %v3088, 0.0
        %v3111 = vmax.f32 %v3093, 0.0
        %v3112 = vmax.f32 %v3098, 0.0
        %v3113 = vmax.f32 %v3103, 0.0
        %v3114 = vld [vmem:[%s12] sm:$0xff]
        %v3115 = vld [vmem:[%s12 + $0x8] sm:$0xff]
        %v3116 = vld [vmem:[%s12 + $0x10] sm:$0xff]
        %v3117 = vld [vmem:[%s12 + $0x18] sm:$0xff]
        %v3118 = vld [vmem:[%s12 + $0x20] sm:$0xff]
        %v3119 = vld [vmem:[%s12 + $0x28] sm:$0xff]
        %v3120 = vld [vmem:[%s12 + $0x30] sm:$0xff]
        %v3121 = vld [vmem:[%s12 + $0x38] sm:$0xff]
        %v3122 = vld [vmem:[%s12 + $0x40] sm:$0xff]
        %v3123 = vld [vmem:[%s12 + $0x48] sm:$0xff]
        %v3124 = vld [vmem:[%s12 + $0x50] sm:$0xff]
        %v3125 = vld [vmem:[%s12 + $0x58] sm:$0xff]
        %v3126 = vld [vmem:[%s12 + $0x60] sm:$0xff]
        %v3127 = vld [vmem:[%s12 + $0x68] sm:$0xff]
        %v3128 = vld [vmem:[%s12 + $0x70] sm:$0xff]
        %v3129 = vld [vmem:[%s12 + $0x78] sm:$0xff]
        %v3131 = vlaneseq
        %v3132 = vshrl.u32 %v3131, 7
        %v3133 = vsub.s32 0, %v3132
        %v3134 = vrot.slane %v778, %v3133
        %3136 = vmatprep.subr.mxu0 0.0
        %3137 = vmatpush1.msra.mxu0 %v3114
        %3138 = vmatprep.subr.mxu0 0.0
        %3139 = vmatpush1.msra.mxu0 %v3115
        %3140 = vmatprep.subr.mxu0 0.0
        %3141 = vmatpush1.msra.mxu0 %v3116
        %3142 = vmatprep.subr.mxu0 0.0
        %3143 = vmatpush1.msra.mxu0 %v3117
        %3144 = vmatprep.subr.mxu0 0.0
        %3145 = vmatpush1.msra.mxu0 %v3118
        %3146 = vmatprep.subr.mxu0 0.0
        %3147 = vmatpush1.msra.mxu0 %v3119
        %3148 = vmatprep.subr.mxu0 0.0
        %3149 = vmatpush1.msra.mxu0 %v3120
        %3150 = vmatprep.subr.mxu0 0.0
        %3151 = vmatpush1.msra.mxu0 %v3121
        %3152 = vmatprep.subr.mxu0 0.0
        %3153 = vmatpush1.msra.mxu0 %v3122
        %3154 = vmatprep.subr.mxu0 0.0
        %3155 = vmatpush1.msra.mxu0 %v3123
        %3156 = vmatprep.subr.mxu0 0.0
        %3157 = vmatpush1.msra.mxu0 %v3124
        %3158 = vmatprep.subr.mxu0 0.0
        %3159 = vmatpush1.msra.mxu0 %v3125
        %3160 = vmatprep.subr.mxu0 0.0
        %3161 = vmatpush1.msra.mxu0 %v3126
        %3162 = vmatprep.subr.mxu0 0.0
        %3163 = vmatpush1.msra.mxu0 %v3127
        %3164 = vmatprep.subr.mxu0 0.0
        %3165 = vmatpush1.msra.mxu0 %v3128
        %3166 = vmatprep.subr.mxu0 0.0
        %3167 = vmatpush1.msra.mxu0 %v3129
        %3168 = vmatprep.subr.mxu0 0.0
        %3169 = vmatpush1.msra.mxu0 0.0
        %3170 = vmatprep.subr.mxu0 0.0
        %3171 = vmatpush1.msra.mxu0 0.0
        %3172 = vmatprep.subr.mxu0 0.0
        %3173 = vmatpush1.msra.mxu0 0.0
        %3174 = vmatprep.subr.mxu0 0.0
        %3175 = vmatpush1.msra.mxu0 0.0
        %3176 = vmatprep.subr.mxu0 0.0
        %3177 = vmatpush1.msra.mxu0 0.0
        %3178 = vmatprep.subr.mxu0 0.0
        %3179 = vmatpush1.msra.mxu0 0.0
        %3180 = vmatprep.subr.mxu0 0.0
        %3181 = vmatpush1.msra.mxu0 0.0
        %3182 = vmatprep.subr.mxu0 0.0
        %3183 = vmatpush1.msra.mxu0 0.0
        %3184 = vmatprep.subr.mxu0 0.0
        %3185 = vmatpush1.msra.mxu0 0.0
        %3186 = vmatprep.subr.mxu0 0.0
        %3187 = vmatpush1.msra.mxu0 0.0
        %3188 = vmatprep.subr.mxu0 0.0
        %3189 = vmatpush1.msra.mxu0 0.0
        %3190 = vmatprep.subr.mxu0 0.0
        %3191 = vmatpush1.msra.mxu0 0.0
        %3192 = vmatprep.subr.mxu0 0.0
        %3193 = vmatpush1.msra.mxu0 0.0
        %3194 = vmatprep.subr.mxu0 0.0
        %3195 = vmatpush1.msra.mxu0 0.0
        %3196 = vmatprep.subr.mxu0 0.0
        %3197 = vmatpush1.msra.mxu0 0.0
        %3198 = vmatprep.subr.mxu0 0.0
        %3199 = vmatpush1.msra.mxu0 0.0
        %3200 = vmatprep.mubr.f32.mxu0 0.0
        %3201 = vmatmul.mubr.f32.gmra.mrb[0].mxu0 %v3106
        %v3202 = vpop.f32.mrb[0].mxu0
        %v3203 = vadd.f32 %v3134, %v3202
        %v3204 = vpop.f32.mrb[0].mxu0
        %3205 = vmatprep.mubr.f32.mxu0 0.0
        %3206 = vmatmul.mubr.f32.gmra.mrb[0].mxu0 %v3107
        %v3207 = vpop.f32.mrb[0].mxu0
        %v3208 = vadd.f32 %v3134, %v3207
        %v3209 = vpop.f32.mrb[0].mxu0
        %3210 = vmatprep.mubr.f32.mxu0 0.0
        %3211 = vmatmul.mubr.f32.gmra.mrb[0].mxu0 %v3108
        %v3212 = vpop.f32.mrb[0].mxu0
        %v3213 = vadd.f32 %v3134, %v3212
        %v3214 = vpop.f32.mrb[0].mxu0
        %3215 = vmatprep.mubr.f32.mxu0 0.0
        %3216 = vmatmul.mubr.f32.gmra.mrb[0].mxu0 %v3109
        %v3217 = vpop.f32.mrb[0].mxu0
        %v3218 = vadd.f32 %v3134, %v3217
        %v3219 = vpop.f32.mrb[0].mxu0
        %3220 = vmatprep.mubr.f32.mxu0 0.0
        %3221 = vmatmul.mubr.f32.gmra.mrb[0].mxu0 %v3110
        %v3222 = vpop.f32.mrb[0].mxu0
        %v3223 = vadd.f32 %v3134, %v3222
        %v3224 = vpop.f32.mrb[0].mxu0
        %3225 = vmatprep.mubr.f32.mxu0 0.0
        %3226 = vmatmul.mubr.f32.gmra.mrb[0].mxu0 %v3111
        %v3227 = vpop.f32.mrb[0].mxu0
        %v3228 = vadd.f32 %v3134, %v3227
        %v3229 = vpop.f32.mrb[0].mxu0
        %3230 = vmatprep.mubr.f32.mxu0 0.0
        %3231 = vmatmul.mubr.f32.gmra.mrb[0].mxu0 %v3112
        %v3232 = vpop.f32.mrb[0].mxu0
        %v3233 = vadd.f32 %v3134, %v3232
        %v3234 = vpop.f32.mrb[0].mxu0
        %3235 = vmatprep.mubr.f32.mxu0 0.0
        %3236 = vmatmul.mubr.f32.gmra.mrb[0].mxu0 %v3113
        %v3237 = vpop.f32.mrb[0].mxu0
        %v3238 = vadd.f32 %v3134, %v3237
        %v3239 = vpop.f32.mrb[0].mxu0
        %3240 = vdwg.mxu0
        %v3241 = vadd.f32 %v3203, %v2959
        %v3242 = vadd.f32 %v3208, %v2960
        %v3243 = vadd.f32 %v3213, %v2961
        %v3244 = vadd.f32 %v3218, %v2962
        %v3245 = vadd.f32 %v3223, %v2963
        %v3246 = vadd.f32 %v3228, %v2964
        %v3247 = vadd.f32 %v3233, %v2965
        %v3248 = vadd.f32 %v3238, %v2966
        %v3249 = vsel %vm833, %v3241, 0.0
        %3250 = vadd.xlane.f32.xlu0 %v3249
        %v3251 = vpop.xlane.xlu0 %3250
        %v3252 = vsel %vm833, %v3242, 0.0
        %3253 = vadd.xlane.f32.xlu0 %v3252
        %v3254 = vpop.xlane.xlu0 %3253
        %v3255 = vsel %vm833, %v3243, 0.0
        %3256 = vadd.xlane.f32.xlu0 %v3255
        %v3257 = vpop.xlane.xlu0 %3256
        %v3258 = vsel %vm833, %v3244, 0.0
        %3259 = vadd.xlane.f32.xlu0 %v3258
        %v3260 = vpop.xlane.xlu0 %3259
        %v3261 = vsel %vm833, %v3245, 0.0
        %3262 = vadd.xlane.f32.xlu0 %v3261
        %v3263 = vpop.xlane.xlu0 %3262
        %v3264 = vsel %vm833, %v3246, 0.0
        %3265 = vadd.xlane.f32.xlu0 %v3264
        %v3266 = vpop.xlane.xlu0 %3265
        %v3267 = vsel %vm833, %v3247, 0.0
        %3268 = vadd.xlane.f32.xlu0 %v3267
        %v3269 = vpop.xlane.xlu0 %3268
        %v3270 = vsel %vm833, %v3248, 0.0
        %3271 = vadd.xlane.f32.xlu0 %v3270
        %v3272 = vpop.xlane.xlu0 %3271
        %v3273 = vmul.f32 %v3251, %v2858
        %v3274 = vmul.f32 %v3254, %v2858
        %v3275 = vmul.f32 %v3257, %v2858
        %v3276 = vmul.f32 %v3260, %v2858
        %v3277 = vmul.f32 %v3263, %v2858
        %v3278 = vmul.f32 %v3266, %v2858
        %v3279 = vmul.f32 %v3269, %v2858
        %v3280 = vmul.f32 %v3272, %v2858
        %v3281 = vsub.f32 %v3241, %v3273
        %v3282 = vsub.f32 %v3242, %v3274
        %v3283 = vsub.f32 %v3243, %v3275
        %v3284 = vsub.f32 %v3244, %v3276
        %v3285 = vsub.f32 %v3245, %v3277
        %v3286 = vsub.f32 %v3246, %v3278
        %v3287 = vsub.f32 %v3247, %v3279
        %v3288 = vsub.f32 %v3248, %v3280
        %v3289 = vmul.f32 %v3281, %v3281
        %v3290 = vmul.f32 %v3282, %v3282
        %v3291 = vmul.f32 %v3283, %v3283
        %v3292 = vmul.f32 %v3284, %v3284
        %v3293 = vmul.f32 %v3285, %v3285
        %v3294 = vmul.f32 %v3286, %v3286
        %v3295 = vmul.f32 %v3287, %v3287
        %v3296 = vmul.f32 %v3288, %v3288
        %v3297 = vsel %vm833, %v3289, 0.0
        %3298 = vadd.xlane.f32.xlu0 %v3297
        %v3299 = vpop.xlane.xlu0 %3298
        %v3300 = vsel %vm833, %v3290, 0.0
        %3301 = vadd.xlane.f32.xlu0 %v3300
        %v3302 = vpop.xlane.xlu0 %3301
        %v3303 = vsel %vm833, %v3291, 0.0
        %3304 = vadd.xlane.f32.xlu0 %v3303
        %v3305 = vpop.xlane.xlu0 %3304
        %v3306 = vsel %vm833, %v3292, 0.0
        %3307 = vadd.xlane.f32.xlu0 %v3306
        %v3308 = vpop.xlane.xlu0 %3307
        %v3309 = vsel %vm833, %v3293, 0.0
        %3310 = vadd.xlane.f32.xlu0 %v3309
        %v3311 = vpop.xlane.xlu0 %3310
        %v3312 = vsel %vm833, %v3294, 0.0
        %3313 = vadd.xlane.f32.xlu0 %v3312
        %v3314 = vpop.xlane.xlu0 %3313
        %v3315 = vsel %vm833, %v3295, 0.0
        %3316 = vadd.xlane.f32.xlu0 %v3315
        %v3317 = vpop.xlane.xlu0 %3316
        %v3318 = vsel %vm833, %v3296, 0.0
        %3319 = vadd.xlane.f32.xlu0 %v3318
        %v3320 = vpop.xlane.xlu0 %3319
        %v3321 = vmul.f32 %v3299, %v2858
        %v3322 = vmul.f32 %v3302, %v2858
        %v3323 = vmul.f32 %v3305, %v2858
        %v3324 = vmul.f32 %v3308, %v2858
        %v3325 = vmul.f32 %v3311, %v2858
        %v3326 = vmul.f32 %v3314, %v2858
        %v3327 = vmul.f32 %v3317, %v2858
        %v3328 = vmul.f32 %v3320, %v2858
        %v3329 = vadd.f32 %v3321, 1e-05
        %v3330 = vadd.f32 %v3322, 1e-05
        %v3331 = vadd.f32 %v3323, 1e-05
        %v3332 = vadd.f32 %v3324, 1e-05
        %v3333 = vadd.f32 %v3325, 1e-05
        %v3334 = vadd.f32 %v3326, 1e-05
        %v3335 = vadd.f32 %v3327, 1e-05
        %v3336 = vadd.f32 %v3328, 1e-05
        %v3337 = vrsqrt.pop %v3329
        %v3338 = vrsqrt.pop %v3330
        %v3339 = vrsqrt.pop %v3331
        %v3340 = vrsqrt.pop %v3332
        %v3341 = vrsqrt.pop %v3333
        %v3342 = vrsqrt.pop %v3334
        %v3343 = vrsqrt.pop %v3335
        %v3344 = vrsqrt.pop %v3336
        %v3345 = vmul.f32 %v3281, %v3337
        %v3346 = vmul.f32 %v3282, %v3338
        %v3347 = vmul.f32 %v3283, %v3339
        %v3348 = vmul.f32 %v3284, %v3340
        %v3349 = vmul.f32 %v3285, %v3341
        %v3350 = vmul.f32 %v3286, %v3342
        %v3351 = vmul.f32 %v3287, %v3343
        %v3352 = vmul.f32 %v3288, %v3344
        %v3354 = vlaneseq
        %v3355 = vshrl.u32 %v3354, 7
        %v3356 = vsub.s32 0, %v3355
        %v3357 = vrot.slane %v779, %v3356
        %v3359 = vmul.f32 %v3345, %v3357
        %v3360 = vmul.f32 %v3346, %v3357
        %v3361 = vmul.f32 %v3347, %v3357
        %v3362 = vmul.f32 %v3348, %v3357
        %v3363 = vmul.f32 %v3349, %v3357
        %v3364 = vmul.f32 %v3350, %v3357
        %v3365 = vmul.f32 %v3351, %v3357
        %v3366 = vmul.f32 %v3352, %v3357
        %v3368 = vlaneseq
        %v3369 = vshrl.u32 %v3368, 7
        %v3370 = vsub.s32 0, %v3369
        %v3371 = vrot.slane %v780, %v3370
        %v3373 = vadd.f32 %v3359, %v3371
        %v3374 = vadd.f32 %v3360, %v3371
        %v3375 = vadd.f32 %v3361, %v3371
        %v3376 = vadd.f32 %v3362, %v3371
        %v3377 = vadd.f32 %v3363, %v3371
        %v3378 = vadd.f32 %v3364, %v3371
        %v3379 = vadd.f32 %v3365, %v3371
        %v3380 = vadd.f32 %v3366, %v3371
        %3381 = vst.msk [vmem:[%s773] sm:$0xff] %vm833, %v3373
        %3382 = vst.msk [vmem:[%s773 + $0x8] sm:$0xff] %vm833, %v3374
        %3383 = vst.msk [vmem:[%s773 + $0x10] sm:$0xff] %vm833, %v3375
        %3384 = vst.msk [vmem:[%s773 + $0x18] sm:$0xff] %vm833, %v3376
        %3385 = vst.msk [vmem:[%s773 + $0x20] sm:$0xff] %vm833, %v3377
        %3386 = vst.msk [vmem:[%s773 + $0x28] sm:$0xff] %vm833, %v3378
        %3387 = vst.msk [vmem:[%s773 + $0x30] sm:$0xff] %vm833, %v3379
        %3388 = vst.msk [vmem:[%s773 + $0x38] sm:$0xff] %vm833, %v3380
        %s3389 = sand.u32 %s395, 1
        %s3390 = scalar_lea.sflag [#allocation6], %s3389
        %s3391 = sand.u32 %s395, 1
        %s3392 = smul.addr %s3391, 64
        %s3393 = scalar_lea.vmem [#allocation15], %s3392
        // Predicated region
        $region185: #{tpu_custom_call.1} parent=151 // pred_check
          %p3394 = pneg %p405
        $region186: #{tpu_custom_call.1} parent=151 // pred_check_branch
          %3396 = sbr.rel (%p3394) target = $region188
        $region187: #{tpu_custom_call.1} parent=151 // pred_region
          %s3398 = ssub.s32 1024, 1024
          %3399 = vsyncadd %s3390, %s3398
          %s3400 = smul.addr %s36, 128
          %s3401 = scalar_lea.hbm %s16, %s3400
          %s3402 = sshll.u32 %s3393, 4
          %s3403 = int_to_ptr.vmem [resolvable:$true] %s3402
          %3408 = dma.vmem_to_hbm [thread:$0]  %s3403, 1024, %s3401, %s3390, 128, 256, 8
        $region188: #{tpu_custom_call.1} parent=151 // pred_fallthru
          _
      $region152: #{tpu_custom_call.1} parent=5 // pred_fallthru
        _
      %p3409 = scmp.le.s32.totalorder 2, %s31
      // Predicated region
      $region189: #{tpu_custom_call.1} parent=5 // pred_check
        %p3410 = pneg %p3409
      $region190: #{tpu_custom_call.1} parent=5 // pred_check_branch
        %3412 = sbr.rel (%p3410) target = $region192
      $region191: #{tpu_custom_call.1} parent=5 // pred_region
        %s3413 = ssub.s32 %s31, 2
        // Predicated region
        $region193: #{tpu_custom_call.1} parent=191 // pred_check
          %p3414 = pneg %p411
        $region194: #{tpu_custom_call.1} parent=191 // pred_check_branch
          %3416 = sbr.rel (%p3414) target = $region196
        $region195: #{tpu_custom_call.1} parent=191 // pred_region
          %s3417 = sand.u32 %s396, 1
          %s3418 = scalar_lea.sflag [#allocation6], %s3417
          %s3419 = sand.u32 %s396, 1
          %s3420 = smul.addr %s3419, 64
          %s3421 = scalar_lea.vmem [#allocation15], %s3420
          %3422 = dma.done %s3418, 1024
        $region196: #{tpu_custom_call.1} parent=191 // pred_fallthru
          _
      $region192: #{tpu_custom_call.1} parent=5 // pred_fallthru
        _
    $region6: #{tpu_custom_call.1} parent=1 // loop_footer
      %s35 = sadd.s32 1, %s31
    $region7: #{tpu_custom_call.1} parent=1 // loop_footer_branch
      %30 = sbr.rel target = $region3
    $region8: #{tpu_custom_call.1} parent=1 // loop_exit
      _
    %3423 = vsyncpa [#allocation5], 1
    %s3424 = scalar_lea.sflag [#allocation5], 1
    %3425 = vsyncpa %s3424, 1
    %3426 = vsyncpa [#allocation8], 1
    %3427 = vsyncpa [#allocation11], 1
    %3428 = vsyncpa [#allocation14], 1
    %3429 = vsyncpa [#allocation6], 1
    %s3430 = scalar_lea.sflag [#allocation6], 1
    %3431 = vsyncpa %s3430, 1

</llo_original>
